<compile_context>
chip_gen: v7x
topology: tpu7x:2x2x1
jax: 0.10.0
libtpu: 0.0.40
codegen_flags: <defaults>
</compile_context>

<pallas_src>
import functools
import math

import jax
import jax.numpy as jnp
from jax import lax
from jax.experimental import pallas as pl
from jax.experimental.pallas import tpu as pltpu

_VMEM_LIMIT = 64 * 1024 * 1024


# ----------------------------------------------------------------------------
# helpers
# ----------------------------------------------------------------------------
def _layernorm(x, gamma, beta, eps=1e-5):
    mu = jnp.mean(x, axis=-1, keepdims=True)
    var = jnp.mean(jnp.square(x - mu), axis=-1, keepdims=True)
    return (x - mu) * lax.rsqrt(var + eps) * gamma + beta


# ----------------------------------------------------------------------------
# fused reversible-Reformer-stack kernel (grid = (batch, layer))
# ----------------------------------------------------------------------------
def _reformer_layers_kernel(x_ref,
                            ln1g_ref, ln1b_ref,
                            wq_ref, bq_ref, wk_ref, bk_ref, wv_ref, bv_ref,
                            wo_ref, bo_ref,
                            ln2g_ref, ln2b_ref,
                            w1_ref, b1_ref, w2_ref, b2_ref,
                            y2_ref, y1_scr, *, n_heads):
    layer = pl.program_id(1)

    # initialise both reversible streams from the input at the first layer
    @pl.when(layer == 0)
    def _():
        x0 = x_ref[0]
        y1_scr[...] = x0
        y2_ref[0] = x0

    x1 = y1_scr[...]          # (L, D) f32 — stream 1 (VMEM-resident carry)
    x2 = y2_ref[0]            # (L, D) f32 — stream 2 (revisited output block)
    L, D = x1.shape
    dh = D // n_heads
    scale = 1.0 / math.sqrt(dh)

    # ---------------- attention sub-layer: y1 = x1 + MHA(LN(x2)) -------------
    xn = _layernorm(x2, ln1g_ref[0], ln1b_ref[0]).astype(jnp.bfloat16)
    acc = jnp.zeros((L, D), jnp.float32)
    for h in range(n_heads):              # static, per-head weight slabs
        qh = (jnp.dot(xn, wq_ref[0, h], preferred_element_type=jnp.float32)
              + bq_ref[0, h]) * scale
        kh = jnp.dot(xn, wk_ref[0, h],
                     preferred_element_type=jnp.float32) + bk_ref[0, h]
        vh = jnp.dot(xn, wv_ref[0, h],
                     preferred_element_type=jnp.float32) + bv_ref[0, h]
        # scores: contract the head dim of q and k (q @ k^T) on the MXU
        s = lax.dot_general(qh.astype(jnp.bfloat16), kh.astype(jnp.bfloat16),
                            (((1,), (1,)), ((), ())),
                            preferred_element_type=jnp.float32)      # (L, L)
        m = jnp.max(s, axis=-1, keepdims=True)
        p = jnp.exp(s - m)
        denom = jnp.sum(p, axis=-1, keepdims=True)
        ctx = jnp.dot(p.astype(jnp.bfloat16), vh.astype(jnp.bfloat16),
                      preferred_element_type=jnp.float32)            # (L, dh)
        ctx = ctx * pl.reciprocal(denom, approx=True)
        acc = acc + jnp.dot(ctx.astype(jnp.bfloat16), wo_ref[0, h],
                            preferred_element_type=jnp.float32)
    y1 = x1 + acc + bo_ref[0]

    # ---------------- feed-forward sub-layer: y2 = x2 + FFN(LN(y1)) ----------
    y1n = _layernorm(y1, ln2g_ref[0], ln2b_ref[0]).astype(jnp.bfloat16)
    hdn = jnp.dot(y1n, w1_ref[0], preferred_element_type=jnp.float32) + b1_ref[0]
    hdn = jnp.maximum(hdn, 0.0).astype(jnp.bfloat16)
    y2 = x2 + jnp.dot(hdn, w2_ref[0],
                      preferred_element_type=jnp.float32) + b2_ref[0]

    y1_scr[...] = y1
    y2_ref[0] = y2


def reformer_layers(x, lp, n_heads):
    """Runs the whole reversible stack in one pallas_call; returns stream 2."""
    B, L, D = x.shape
    n_layer = lp["wq"].shape[0]

    def wspec(shape):
        # one layer's slab per grid step; block index only changes with the
        # layer axis, so the pipeline fetches each slab exactly once per layer.
        nd = len(shape)
        return pl.BlockSpec((1,) + tuple(shape[1:]),
                            lambda b, l, _nd=nd: (l,) + (0,) * (_nd - 1))

    kernel = functools.partial(_reformer_layers_kernel, n_heads=n_heads)
    return pl.pallas_call(
        kernel,
        out_shape=jax.ShapeDtypeStruct((B, L, D), jnp.float32),
        grid=(B, n_layer),
        in_specs=[
            pl.BlockSpec((1, L, D), lambda b, l: (b, 0, 0)),        # inputs
            wspec(lp["ln1_g"].shape), wspec(lp["ln1_b"].shape),
            wspec(lp["wq"].shape), wspec(lp["bq"].shape),
            wspec(lp["wk"].shape), wspec(lp["bk"].shape),
            wspec(lp["wv"].shape), wspec(lp["bv"].shape),
            wspec(lp["wo"].shape), wspec(lp["bo"].shape),
            wspec(lp["ln2_g"].shape), wspec(lp["ln2_b"].shape),
            wspec(lp["w1"].shape), wspec(lp["b1"].shape),
            wspec(lp["w2"].shape), wspec(lp["b2"].shape),
        ],
        out_specs=pl.BlockSpec((1, L, D), lambda b, l: (b, 0, 0)),  # stream 2
        scratch_shapes=[pltpu.VMEM((L, D), jnp.float32)],           # stream 1
        compiler_params=pltpu.CompilerParams(
            dimension_semantics=("parallel", "arbitrary"),
            vmem_limit_bytes=_VMEM_LIMIT),
    )(x, lp["ln1_g"], lp["ln1_b"], lp["wq"], lp["bq"], lp["wk"], lp["bk"],
      lp["wv"], lp["bv"], lp["wo"], lp["bo"], lp["ln2_g"], lp["ln2_b"],
      lp["w1"], lp["b1"], lp["w2"], lp["b2"])


# ----------------------------------------------------------------------------
# per-token classifier kernel: Linear(d, 2d) -> ReLU -> Linear(2d, C)
# ----------------------------------------------------------------------------
def _classifier_kernel(x_ref, w1_ref, b1_ref, w2_ref, b2_ref, o_ref):
    h = jnp.dot(x_ref[...].astype(jnp.bfloat16), w1_ref[...],
                preferred_element_type=jnp.float32) + b1_ref[...]
    h = jnp.maximum(h, 0.0).astype(jnp.bfloat16)
    o_ref[...] = jnp.dot(h, w2_ref[...],
                         preferred_element_type=jnp.float32) + b2_ref[...]


def classifier_apply(x, p):
    B, L, D = x.shape
    Hd = p["w1"].shape[1]
    C = p["w2"].shape[1]
    rows = B * L
    R = rows
    for cand in (512, 256, 128):          # row tile: collapse (B, L), tile rows
        if rows % cand == 0:
            R = cand
            break
    xf = x.reshape(rows, D)
    out = pl.pallas_call(
        _classifier_kernel,
        out_shape=jax.ShapeDtypeStruct((rows, C), jnp.float32),
        grid=(rows // R,),
        in_specs=[
            pl.BlockSpec((R, D), lambda i: (i, 0)),
            pl.BlockSpec((D, Hd), lambda i: (0, 0)),
            pl.BlockSpec((1, Hd), lambda i: (0, 0)),
            pl.BlockSpec((Hd, C), lambda i: (0, 0)),
            pl.BlockSpec((1, C), lambda i: (0, 0)),
        ],
        out_specs=pl.BlockSpec((R, C), lambda i: (i, 0)),
        compiler_params=pltpu.CompilerParams(
            dimension_semantics=("parallel",),
            vmem_limit_bytes=_VMEM_LIMIT),
    )(xf, p["w1"], p["b1"], p["w2"], p["b2"])
    return out.reshape(B, L, C)


# ----------------------------------------------------------------------------
# parameter init (torch.nn.Linear-style uniform init; weights stored bf16)
# ----------------------------------------------------------------------------
def _linear_init(key, fan_in, fan_out):
    kw, kb = jax.random.split(key)
    bound = 1.0 / math.sqrt(fan_in)
    w = jax.random.uniform(kw, (fan_in, fan_out), jnp.float32, -bound, bound)
    b = jax.random.uniform(kb, (fan_out,), jnp.float32, -bound, bound)
    return w, b


def init_params(key, d_model, d_ff, n_heads, n_classes, n_layer):
    H, dh = n_heads, d_model // n_heads
    names = ("ln1_g", "ln1_b", "wq", "bq", "wk", "bk", "wv", "bv",
             "wo", "bo", "ln2_g", "ln2_b", "w1", "b1", "w2", "b2")
    acc = {k: [] for k in names}

    def split_qkv(w, b):       # (D, D) -> per-head (H, D, dh), bias (H, 1, dh)
        return (w.reshape(d_model, H, dh).transpose(1, 0, 2).astype(jnp.bfloat16),
                b.reshape(H, 1, dh))

    for i in range(n_layer):
        k = jax.random.fold_in(key, i)
        kq, kk, kv, ko, k1, k2 = jax.random.split(k, 6)
        wq, bq = split_qkv(*_linear_init(kq, d_model, d_model))
        wk, bk = split_qkv(*_linear_init(kk, d_model, d_model))
        wv, bv = split_qkv(*_linear_init(kv, d_model, d_model))
        wo_f, bo_f = _linear_init(ko, d_model, d_model)
        w1_f, b1_f = _linear_init(k1, d_model, d_ff)
        w2_f, b2_f = _linear_init(k2, d_ff, d_model)
        acc["ln1_g"].append(jnp.ones((1, d_model), jnp.float32))
        acc["ln1_b"].append(jnp.zeros((1, d_model), jnp.float32))
        acc["wq"].append(wq); acc["bq"].append(bq)
        acc["wk"].append(wk); acc["bk"].append(bk)
        acc["wv"].append(wv); acc["bv"].append(bv)
        acc["wo"].append(wo_f.reshape(H, dh, d_model).astype(jnp.bfloat16))
        acc["bo"].append(bo_f.reshape(1, d_model))
        acc["ln2_g"].append(jnp.ones((1, d_model), jnp.float32))
        acc["ln2_b"].append(jnp.zeros((1, d_model), jnp.float32))
        acc["w1"].append(w1_f.astype(jnp.bfloat16))
        acc["b1"].append(b1_f.reshape(1, d_ff))
        acc["w2"].append(w2_f.astype(jnp.bfloat16))
        acc["b2"].append(b2_f.reshape(1, d_model))
    layers = {k: jnp.stack(v) for k, v in acc.items()}

    kc = jax.random.fold_in(key, 10_000)
    kc1, kc2 = jax.random.split(kc)
    cw1, cb1 = _linear_init(kc1, d_model, 2 * d_model)
    cw2, cb2 = _linear_init(kc2, 2 * d_model, n_classes)
    classifier = dict(w1=cw1.astype(jnp.bfloat16), b1=cb1.reshape(1, 2 * d_model),
                      w2=cw2.astype(jnp.bfloat16), b2=cb2.reshape(1, n_classes))
    return dict(layers=layers, classifier=classifier)


# ----------------------------------------------------------------------------
# ReformerRes forward
# ----------------------------------------------------------------------------
def reformer_res_forward(inputs, params, n_heads):
    output = reformer_layers(inputs, params["layers"], n_heads)   # reformer(x, x)
    return classifier_apply(output, params["classifier"])         # per-token head


if __name__ == "__main__":
    # small shapes consistent with the module; d_model chosen lane-dense (128)
    B, L = 2, 16
    d_model, d_ff, n_heads = 128, 256, 4
    n_classes, n_layer = 8, 2
    n_chunk, rounds, bucket_length = 2, 2, 4   # LSH config (unused: dense attn)

    key = jax.random.PRNGKey(0)
    k_in, k_param = jax.random.split(key)
    inputs = jax.random.normal(k_in, (B, L, d_model), jnp.float32)
    params = init_params(k_param, d_model, d_ff, n_heads, n_classes, n_layer)

    fwd = jax.jit(functools.partial(reformer_res_forward, n_heads=n_heads))
    out = jax.block_until_ready(fwd(inputs, params))

    assert out.shape == (B, L, n_classes)
    assert bool(jnp.all(jnp.isfinite(out)))
    print("KERNEL_OK")
</pallas_src>

<mosaic_0001>
module attributes {stable_mosaic.version = 11 : i64} {
  func.func @_reformer_layers_kernel(%arg0: i32, %arg1: i32, %arg2: memref<1x16x128xf32, #tpu.memory_space<vmem>>, %arg3: memref<1x1x128xf32, #tpu.memory_space<vmem>>, %arg4: memref<1x1x128xf32, #tpu.memory_space<vmem>>, %arg5: memref<1x4x128x32xbf16, #tpu.memory_space<vmem>>, %arg6: memref<1x4x1x32xf32, #tpu.memory_space<vmem>>, %arg7: memref<1x4x128x32xbf16, #tpu.memory_space<vmem>>, %arg8: memref<1x4x1x32xf32, #tpu.memory_space<vmem>>, %arg9: memref<1x4x128x32xbf16, #tpu.memory_space<vmem>>, %arg10: memref<1x4x1x32xf32, #tpu.memory_space<vmem>>, %arg11: memref<1x4x32x128xbf16, #tpu.memory_space<vmem>>, %arg12: memref<1x1x128xf32, #tpu.memory_space<vmem>>, %arg13: memref<1x1x128xf32, #tpu.memory_space<vmem>>, %arg14: memref<1x1x128xf32, #tpu.memory_space<vmem>>, %arg15: memref<1x128x256xbf16, #tpu.memory_space<vmem>>, %arg16: memref<1x1x256xf32, #tpu.memory_space<vmem>>, %arg17: memref<1x256x128xbf16, #tpu.memory_space<vmem>>, %arg18: memref<1x1x128xf32, #tpu.memory_space<vmem>>, %arg19: memref<1x16x128xf32, #tpu.memory_space<vmem>>, %arg20: memref<16x128xf32, #tpu.memory_space<vmem>>) attributes {dimension_semantics = [#tpu.dimension_semantics<parallel>, #tpu.dimension_semantics<arbitrary>], iteration_bounds = array<i64: 2, 2>, scalar_prefetch = 0 : i64, scratch_operands = 1 : i64, tpu.core_type = #tpu.core_type<tc>, window_params = [{transform_indices = @transform_0, window_bounds = array<i64: 1, 16, 128>}, {transform_indices = @transform_1, window_bounds = array<i64: 1, 1, 128>}, {transform_indices = @transform_2, window_bounds = array<i64: 1, 1, 128>}, {transform_indices = @transform_3, window_bounds = array<i64: 1, 4, 128, 32>}, {transform_indices = @transform_4, window_bounds = array<i64: 1, 4, 1, 32>}, {transform_indices = @transform_5, window_bounds = array<i64: 1, 4, 128, 32>}, {transform_indices = @transform_6, window_bounds = array<i64: 1, 4, 1, 32>}, {transform_indices = @transform_7, window_bounds = array<i64: 1, 4, 128, 32>}, {transform_indices = @transform_8, window_bounds = array<i64: 1, 4, 1, 32>}, {transform_indices = @transform_9, window_bounds = array<i64: 1, 4, 32, 128>}, {transform_indices = @transform_10, window_bounds = array<i64: 1, 1, 128>}, {transform_indices = @transform_11, window_bounds = array<i64: 1, 1, 128>}, {transform_indices = @transform_12, window_bounds = array<i64: 1, 1, 128>}, {transform_indices = @transform_13, window_bounds = array<i64: 1, 128, 256>}, {transform_indices = @transform_14, window_bounds = array<i64: 1, 1, 256>}, {transform_indices = @transform_15, window_bounds = array<i64: 1, 256, 128>}, {transform_indices = @transform_16, window_bounds = array<i64: 1, 1, 128>}, {transform_indices = @transform_17, window_bounds = array<i64: 1, 16, 128>}]} {
    %c0_i32 = arith.constant 0 : i32
    %0 = arith.cmpi eq, %arg1, %c0_i32 : i32
    %1 = arith.extui %0 : i1 to i32
    %c0_i32_0 = arith.constant 0 : i32
    %2 = arith.cmpi ne, %1, %c0_i32_0 : i32
    scf.if %2 {
      %c0_195 = arith.constant 0 : index
      %c0_196 = arith.constant 0 : index
      %c0_197 = arith.constant 0 : index
      %264 = vector.load %arg2[%c0_195, %c0_196, %c0_197] : memref<1x16x128xf32, #tpu.memory_space<vmem>>, vector<1x16x128xf32>
      %265 = vector.shape_cast %264 : vector<1x16x128xf32> to vector<16x128xf32>
      %c0_198 = arith.constant 0 : index
      %c0_199 = arith.constant 0 : index
      %266 = vector.load %arg20[%c0_198, %c0_199] : memref<16x128xf32, #tpu.memory_space<vmem>>, vector<16x128xf32>
      tpu.vector_store %arg20[%c0_198, %c0_199], %265 {strides = array<i32>} : memref<16x128xf32, #tpu.memory_space<vmem>>, vector<16x128xf32>,
      %c0_200 = arith.constant 0 : index
      %c0_201 = arith.constant 0 : index
      %c0_202 = arith.constant 0 : index
      %267 = vector.load %arg19[%c0_200, %c0_201, %c0_202] : memref<1x16x128xf32, #tpu.memory_space<vmem>>, vector<1x16x128xf32>
      %268 = vector.shape_cast %267 : vector<1x16x128xf32> to vector<16x128xf32>
      %269 = vector.shape_cast %265 : vector<16x128xf32> to vector<1x16x128xf32>
      tpu.vector_store %arg19[%c0_200, %c0_201, %c0_202], %269 {strides = array<i32>} : memref<1x16x128xf32, #tpu.memory_space<vmem>>, vector<1x16x128xf32>,
    } else {
    }
    %c0 = arith.constant 0 : index
    %c0_1 = arith.constant 0 : index
    %3 = vector.load %arg20[%c0, %c0_1] : memref<16x128xf32, #tpu.memory_space<vmem>>, vector<16x128xf32>
    %c0_2 = arith.constant 0 : index
    %c0_3 = arith.constant 0 : index
    %c0_4 = arith.constant 0 : index
    %4 = vector.load %arg19[%c0_2, %c0_3, %c0_4] : memref<1x16x128xf32, #tpu.memory_space<vmem>>, vector<1x16x128xf32>
    %5 = vector.shape_cast %4 : vector<1x16x128xf32> to vector<16x128xf32>
    %c0_5 = arith.constant 0 : index
    %c0_6 = arith.constant 0 : index
    %c0_7 = arith.constant 0 : index
    %6 = vector.load %arg3[%c0_5, %c0_6, %c0_7] : memref<1x1x128xf32, #tpu.memory_space<vmem>>, vector<1x1x128xf32>
    %7 = vector.shape_cast %6 : vector<1x1x128xf32> to vector<1x128xf32>
    %c0_8 = arith.constant 0 : index
    %c0_9 = arith.constant 0 : index
    %c0_10 = arith.constant 0 : index
    %8 = vector.load %arg4[%c0_8, %c0_9, %c0_10] : memref<1x1x128xf32, #tpu.memory_space<vmem>>, vector<1x1x128xf32>
    %9 = vector.shape_cast %8 : vector<1x1x128xf32> to vector<1x128xf32>
    %cst = arith.constant dense<0.000000e+00> : vector<16xf32>
    %10 = vector.multi_reduction <add>, %5, %cst [1] : vector<16x128xf32> to vector<16xf32>
    %11 = vector.shape_cast %10 : vector<16xf32> to vector<16x1xf32>
    %cst_11 = arith.constant 1.280000e+02 : f32
    %12 = vector.broadcast %cst_11 : f32 to vector<16x1xf32>
    %13 = arith.divf %11, %12 : vector<16x1xf32>
    %14 = vector.broadcast %13 : vector<16x1xf32> to vector<16x128xf32>
    %15 = arith.subf %5, %14 : vector<16x128xf32>
    %16 = arith.mulf %15, %15 : vector<16x128xf32>
    %cst_12 = arith.constant dense<0.000000e+00> : vector<16xf32>
    %17 = vector.multi_reduction <add>, %16, %cst_12 [1] : vector<16x128xf32> to vector<16xf32>
    %18 = vector.shape_cast %17 : vector<16xf32> to vector<16x1xf32>
    %cst_13 = arith.constant 1.280000e+02 : f32
    %19 = vector.broadcast %cst_13 : f32 to vector<16x1xf32>
    %20 = arith.divf %18, %19 : vector<16x1xf32>
    %21 = vector.broadcast %13 : vector<16x1xf32> to vector<16x128xf32>
    %22 = arith.subf %5, %21 : vector<16x128xf32>
    %cst_14 = arith.constant 9.99999974E-6 : f32
    %23 = vector.broadcast %cst_14 : f32 to vector<16x1xf32>
    %24 = arith.addf %20, %23 : vector<16x1xf32>
    %25 = math.rsqrt %24 : vector<16x1xf32>
    %26 = vector.broadcast %25 : vector<16x1xf32> to vector<16x128xf32>
    %27 = arith.mulf %22, %26 : vector<16x128xf32>
    %28 = vector.broadcast %7 : vector<1x128xf32> to vector<16x128xf32>
    %29 = arith.mulf %27, %28 : vector<16x128xf32>
    %30 = vector.broadcast %9 : vector<1x128xf32> to vector<16x128xf32>
    %31 = arith.addf %29, %30 : vector<16x128xf32>
    %32 = arith.truncf %31 : vector<16x128xf32> to vector<16x128xbf16>
    %cst_15 = arith.constant 0.000000e+00 : f32
    %33 = vector.broadcast %cst_15 : f32 to vector<16x128xf32>
    %c0_16 = arith.constant 0 : index
    %c0_17 = arith.constant 0 : index
    %c0_18 = arith.constant 0 : index
    %c0_19 = arith.constant 0 : index
    %34 = vector.load %arg5[%c0_16, %c0_17, %c0_18, %c0_19] : memref<1x4x128x32xbf16, #tpu.memory_space<vmem>>, vector<1x1x128x32xbf16>
    %35 = vector.shape_cast %34 : vector<1x1x128x32xbf16> to vector<128x32xbf16>
    %cst_20 = arith.constant dense<0.000000e+00> : vector<16x32xf32>
    %36 = tpu.matmul %32, %35, %cst_20 {dimension_numbers = #tpu.dot_dimension_numbers<[1], [0], [0], [1], [0, 0, 1, 1], [], []>} : vector<16x128xbf16>, vector<128x32xbf16>, vector<16x32xf32> -> vector<16x32xf32>
    %c0_21 = arith.constant 0 : index
    %c0_22 = arith.constant 0 : index
    %c0_23 = arith.constant 0 : index
    %c0_24 = arith.constant 0 : index
    %37 = vector.load %arg6[%c0_21, %c0_22, %c0_23, %c0_24] : memref<1x4x1x32xf32, #tpu.memory_space<vmem>>, vector<1x1x1x32xf32>
    %38 = vector.shape_cast %37 : vector<1x1x1x32xf32> to vector<1x32xf32>
    %39 = vector.broadcast %38 : vector<1x32xf32> to vector<16x32xf32>
    %40 = arith.addf %36, %39 : vector<16x32xf32>
    %cst_25 = arith.constant 0.176776692 : f32
    %41 = vector.broadcast %cst_25 : f32 to vector<16x32xf32>
    %42 = arith.mulf %40, %41 : vector<16x32xf32>
    %c0_26 = arith.constant 0 : index
    %c0_27 = arith.constant 0 : index
    %c0_28 = arith.constant 0 : index
    %c0_29 = arith.constant 0 : index
    %43 = vector.load %arg7[%c0_26, %c0_27, %c0_28, %c0_29] : memref<1x4x128x32xbf16, #tpu.memory_space<vmem>>, vector<1x1x128x32xbf16>
    %44 = vector.shape_cast %43 : vector<1x1x128x32xbf16> to vector<128x32xbf16>
    %cst_30 = arith.constant dense<0.000000e+00> : vector<16x32xf32>
    %45 = tpu.matmul %32, %44, %cst_30 {dimension_numbers = #tpu.dot_dimension_numbers<[1], [0], [0], [1], [0, 0, 1, 1], [], []>} : vector<16x128xbf16>, vector<128x32xbf16>, vector<16x32xf32> -> vector<16x32xf32>
    %c0_31 = arith.constant 0 : index
    %c0_32 = arith.constant 0 : index
    %c0_33 = arith.constant 0 : index
    %c0_34 = arith.constant 0 : index
    %46 = vector.load %arg8[%c0_31, %c0_32, %c0_33, %c0_34] : memref<1x4x1x32xf32, #tpu.memory_space<vmem>>, vector<1x1x1x32xf32>
    %47 = vector.shape_cast %46 : vector<1x1x1x32xf32> to vector<1x32xf32>
    %48 = vector.broadcast %47 : vector<1x32xf32> to vector<16x32xf32>
    %49 = arith.addf %45, %48 : vector<16x32xf32>
    %c0_35 = arith.constant 0 : index
    %c0_36 = arith.constant 0 : index
    %c0_37 = arith.constant 0 : index
    %c0_38 = arith.constant 0 : index
    %50 = vector.load %arg9[%c0_35, %c0_36, %c0_37, %c0_38] : memref<1x4x128x32xbf16, #tpu.memory_space<vmem>>, vector<1x1x128x32xbf16>
    %51 = vector.shape_cast %50 : vector<1x1x128x32xbf16> to vector<128x32xbf16>
    %cst_39 = arith.constant dense<0.000000e+00> : vector<16x32xf32>
    %52 = tpu.matmul %32, %51, %cst_39 {dimension_numbers = #tpu.dot_dimension_numbers<[1], [0], [0], [1], [0, 0, 1, 1], [], []>} : vector<16x128xbf16>, vector<128x32xbf16>, vector<16x32xf32> -> vector<16x32xf32>
    %c0_40 = arith.constant 0 : index
    %c0_41 = arith.constant 0 : index
    %c0_42 = arith.constant 0 : index
    %c0_43 = arith.constant 0 : index
    %53 = vector.load %arg10[%c0_40, %c0_41, %c0_42, %c0_43] : memref<1x4x1x32xf32, #tpu.memory_space<vmem>>, vector<1x1x1x32xf32>
    %54 = vector.shape_cast %53 : vector<1x1x1x32xf32> to vector<1x32xf32>
    %55 = vector.broadcast %54 : vector<1x32xf32> to vector<16x32xf32>
    %56 = arith.addf %52, %55 : vector<16x32xf32>
    %57 = arith.truncf %42 : vector<16x32xf32> to vector<16x32xbf16>
    %58 = arith.truncf %49 : vector<16x32xf32> to vector<16x32xbf16>
    %cst_44 = arith.constant dense<0.000000e+00> : vector<16x16xf32>
    %59 = tpu.matmul %57, %58, %cst_44 {dimension_numbers = #tpu.dot_dimension_numbers<[1], [1], [0], [0], [0, 0, 1, 0], [], []>} : vector<16x32xbf16>, vector<16x32xbf16>, vector<16x16xf32> -> vector<16x16xf32>
    %cst_45 = arith.constant dense<0xFF800000> : vector<16xf32>
    %60 = vector.multi_reduction <maximumf>, %59, %cst_45 [1] : vector<16x16xf32> to vector<16xf32>
    %61 = vector.shape_cast %60 : vector<16xf32> to vector<16x1xf32>
    %62 = vector.broadcast %61 : vector<16x1xf32> to vector<16x16xf32>
    %63 = arith.subf %59, %62 : vector<16x16xf32>
    %64 = math.exp %63 : vector<16x16xf32>
    %cst_46 = arith.constant dense<0.000000e+00> : vector<16xf32>
    %65 = vector.multi_reduction <add>, %64, %cst_46 [1] : vector<16x16xf32> to vector<16xf32>
    %66 = vector.shape_cast %65 : vector<16xf32> to vector<16x1xf32>
    %67 = arith.truncf %64 : vector<16x16xf32> to vector<16x16xbf16>
    %68 = arith.truncf %56 : vector<16x32xf32> to vector<16x32xbf16>
    %cst_47 = arith.constant dense<0.000000e+00> : vector<16x32xf32>
    %69 = tpu.matmul %67, %68, %cst_47 {dimension_numbers = #tpu.dot_dimension_numbers<[1], [0], [0], [1], [0, 0, 1, 1], [], []>} : vector<16x16xbf16>, vector<16x32xbf16>, vector<16x32xf32> -> vector<16x32xf32>
    %70 = tpu.reciprocal %66 {approx = true} : vector<16x1xf32> -> vector<16x1xf32>
    %71 = vector.broadcast %70 : vector<16x1xf32> to vector<16x32xf32>
    %72 = arith.mulf %69, %71 : vector<16x32xf32>
    %73 = arith.truncf %72 : vector<16x32xf32> to vector<16x32xbf16>
    %c0_48 = arith.constant 0 : index
    %c0_49 = arith.constant 0 : index
    %c0_50 = arith.constant 0 : index
    %c0_51 = arith.constant 0 : index
    %74 = vector.load %arg11[%c0_48, %c0_49, %c0_50, %c0_51] : memref<1x4x32x128xbf16, #tpu.memory_space<vmem>>, vector<1x1x32x128xbf16>
    %75 = vector.shape_cast %74 : vector<1x1x32x128xbf16> to vector<32x128xbf16>
    %cst_52 = arith.constant dense<0.000000e+00> : vector<16x128xf32>
    %76 = tpu.matmul %73, %75, %cst_52 {dimension_numbers = #tpu.dot_dimension_numbers<[1], [0], [0], [1], [0, 0, 1, 1], [], []>} : vector<16x32xbf16>, vector<32x128xbf16>, vector<16x128xf32> -> vector<16x128xf32>
    %77 = arith.addf %33, %76 : vector<16x128xf32>
    %c0_53 = arith.constant 0 : index
    %c1 = arith.constant 1 : index
    %c0_54 = arith.constant 0 : index
    %c0_55 = arith.constant 0 : index
    %78 = vector.load %arg5[%c0_53, %c1, %c0_54, %c0_55] : memref<1x4x128x32xbf16, #tpu.memory_space<vmem>>, vector<1x1x128x32xbf16>
    %79 = vector.shape_cast %78 : vector<1x1x128x32xbf16> to vector<128x32xbf16>
    %cst_56 = arith.constant dense<0.000000e+00> : vector<16x32xf32>
    %80 = tpu.matmul %32, %79, %cst_56 {dimension_numbers = #tpu.dot_dimension_numbers<[1], [0], [0], [1], [0, 0, 1, 1], [], []>} : vector<16x128xbf16>, vector<128x32xbf16>, vector<16x32xf32> -> vector<16x32xf32>
    %c0_57 = arith.constant 0 : index
    %c1_58 = arith.constant 1 : index
    %c0_59 = arith.constant 0 : index
    %c0_60 = arith.constant 0 : index
    %81 = vector.load %arg6[%c0_57, %c1_58, %c0_59, %c0_60] : memref<1x4x1x32xf32, #tpu.memory_space<vmem>>, vector<1x1x1x32xf32>
    %82 = vector.shape_cast %81 : vector<1x1x1x32xf32> to vector<1x32xf32>
    %83 = vector.broadcast %82 : vector<1x32xf32> to vector<16x32xf32>
    %84 = arith.addf %80, %83 : vector<16x32xf32>
    %cst_61 = arith.constant 0.176776692 : f32
    %85 = vector.broadcast %cst_61 : f32 to vector<16x32xf32>
    %86 = arith.mulf %84, %85 : vector<16x32xf32>
    %c0_62 = arith.constant 0 : index
    %c1_63 = arith.constant 1 : index
    %c0_64 = arith.constant 0 : index
    %c0_65 = arith.constant 0 : index
    %87 = vector.load %arg7[%c0_62, %c1_63, %c0_64, %c0_65] : memref<1x4x128x32xbf16, #tpu.memory_space<vmem>>, vector<1x1x128x32xbf16>
    %88 = vector.shape_cast %87 : vector<1x1x128x32xbf16> to vector<128x32xbf16>
    %cst_66 = arith.constant dense<0.000000e+00> : vector<16x32xf32>
    %89 = tpu.matmul %32, %88, %cst_66 {dimension_numbers = #tpu.dot_dimension_numbers<[1], [0], [0], [1], [0, 0, 1, 1], [], []>} : vector<16x128xbf16>, vector<128x32xbf16>, vector<16x32xf32> -> vector<16x32xf32>
    %c0_67 = arith.constant 0 : index
    %c1_68 = arith.constant 1 : index
    %c0_69 = arith.constant 0 : index
    %c0_70 = arith.constant 0 : index
    %90 = vector.load %arg8[%c0_67, %c1_68, %c0_69, %c0_70] : memref<1x4x1x32xf32, #tpu.memory_space<vmem>>, vector<1x1x1x32xf32>
    %91 = vector.shape_cast %90 : vector<1x1x1x32xf32> to vector<1x32xf32>
    %92 = vector.broadcast %91 : vector<1x32xf32> to vector<16x32xf32>
    %93 = arith.addf %89, %92 : vector<16x32xf32>
    %c0_71 = arith.constant 0 : index
    %c1_72 = arith.constant 1 : index
    %c0_73 = arith.constant 0 : index
    %c0_74 = arith.constant 0 : index
    %94 = vector.load %arg9[%c0_71, %c1_72, %c0_73, %c0_74] : memref<1x4x128x32xbf16, #tpu.memory_space<vmem>>, vector<1x1x128x32xbf16>
    %95 = vector.shape_cast %94 : vector<1x1x128x32xbf16> to vector<128x32xbf16>
    %cst_75 = arith.constant dense<0.000000e+00> : vector<16x32xf32>
    %96 = tpu.matmul %32, %95, %cst_75 {dimension_numbers = #tpu.dot_dimension_numbers<[1], [0], [0], [1], [0, 0, 1, 1], [], []>} : vector<16x128xbf16>, vector<128x32xbf16>, vector<16x32xf32> -> vector<16x32xf32>
    %c0_76 = arith.constant 0 : index
    %c1_77 = arith.constant 1 : index
    %c0_78 = arith.constant 0 : index
    %c0_79 = arith.constant 0 : index
    %97 = vector.load %arg10[%c0_76, %c1_77, %c0_78, %c0_79] : memref<1x4x1x32xf32, #tpu.memory_space<vmem>>, vector<1x1x1x32xf32>
    %98 = vector.shape_cast %97 : vector<1x1x1x32xf32> to vector<1x32xf32>
    %99 = vector.broadcast %98 : vector<1x32xf32> to vector<16x32xf32>
    %100 = arith.addf %96, %99 : vector<16x32xf32>
    %101 = arith.truncf %86 : vector<16x32xf32> to vector<16x32xbf16>
    %102 = arith.truncf %93 : vector<16x32xf32> to vector<16x32xbf16>
    %cst_80 = arith.constant dense<0.000000e+00> : vector<16x16xf32>
    %103 = tpu.matmul %101, %102, %cst_80 {dimension_numbers = #tpu.dot_dimension_numbers<[1], [1], [0], [0], [0, 0, 1, 0], [], []>} : vector<16x32xbf16>, vector<16x32xbf16>, vector<16x16xf32> -> vector<16x16xf32>
    %cst_81 = arith.constant dense<0xFF800000> : vector<16xf32>
    %104 = vector.multi_reduction <maximumf>, %103, %cst_81 [1] : vector<16x16xf32> to vector<16xf32>
    %105 = vector.shape_cast %104 : vector<16xf32> to vector<16x1xf32>
    %106 = vector.broadcast %105 : vector<16x1xf32> to vector<16x16xf32>
    %107 = arith.subf %103, %106 : vector<16x16xf32>
    %108 = math.exp %107 : vector<16x16xf32>
    %cst_82 = arith.constant dense<0.000000e+00> : vector<16xf32>
    %109 = vector.multi_reduction <add>, %108, %cst_82 [1] : vector<16x16xf32> to vector<16xf32>
    %110 = vector.shape_cast %109 : vector<16xf32> to vector<16x1xf32>
    %111 = arith.truncf %108 : vector<16x16xf32> to vector<16x16xbf16>
    %112 = arith.truncf %100 : vector<16x32xf32> to vector<16x32xbf16>
    %cst_83 = arith.constant dense<0.000000e+00> : vector<16x32xf32>
    %113 = tpu.matmul %111, %112, %cst_83 {dimension_numbers = #tpu.dot_dimension_numbers<[1], [0], [0], [1], [0, 0, 1, 1], [], []>} : vector<16x16xbf16>, vector<16x32xbf16>, vector<16x32xf32> -> vector<16x32xf32>
    %114 = tpu.reciprocal %110 {approx = true} : vector<16x1xf32> -> vector<16x1xf32>
    %115 = vector.broadcast %114 : vector<16x1xf32> to vector<16x32xf32>
    %116 = arith.mulf %113, %115 : vector<16x32xf32>
    %117 = arith.truncf %116 : vector<16x32xf32> to vector<16x32xbf16>
    %c0_84 = arith.constant 0 : index
    %c1_85 = arith.constant 1 : index
    %c0_86 = arith.constant 0 : index
    %c0_87 = arith.constant 0 : index
    %118 = vector.load %arg11[%c0_84, %c1_85, %c0_86, %c0_87] : memref<1x4x32x128xbf16, #tpu.memory_space<vmem>>, vector<1x1x32x128xbf16>
    %119 = vector.shape_cast %118 : vector<1x1x32x128xbf16> to vector<32x128xbf16>
    %cst_88 = arith.constant dense<0.000000e+00> : vector<16x128xf32>
    %120 = tpu.matmul %117, %119, %cst_88 {dimension_numbers = #tpu.dot_dimension_numbers<[1], [0], [0], [1], [0, 0, 1, 1], [], []>} : vector<16x32xbf16>, vector<32x128xbf16>, vector<16x128xf32> -> vector<16x128xf32>
    %121 = arith.addf %77, %120 : vector<16x128xf32>
    %c0_89 = arith.constant 0 : index
    %c2 = arith.constant 2 : index
    %c0_90 = arith.constant 0 : index
    %c0_91 = arith.constant 0 : index
    %122 = vector.load %arg5[%c0_89, %c2, %c0_90, %c0_91] : memref<1x4x128x32xbf16, #tpu.memory_space<vmem>>, vector<1x1x128x32xbf16>
    %123 = vector.shape_cast %122 : vector<1x1x128x32xbf16> to vector<128x32xbf16>
    %cst_92 = arith.constant dense<0.000000e+00> : vector<16x32xf32>
    %124 = tpu.matmul %32, %123, %cst_92 {dimension_numbers = #tpu.dot_dimension_numbers<[1], [0], [0], [1], [0, 0, 1, 1], [], []>} : vector<16x128xbf16>, vector<128x32xbf16>, vector<16x32xf32> -> vector<16x32xf32>
    %c0_93 = arith.constant 0 : index
    %c2_94 = arith.constant 2 : index
    %c0_95 = arith.constant 0 : index
    %c0_96 = arith.constant 0 : index
    %125 = vector.load %arg6[%c0_93, %c2_94, %c0_95, %c0_96] : memref<1x4x1x32xf32, #tpu.memory_space<vmem>>, vector<1x1x1x32xf32>
    %126 = vector.shape_cast %125 : vector<1x1x1x32xf32> to vector<1x32xf32>
    %127 = vector.broadcast %126 : vector<1x32xf32> to vector<16x32xf32>
    %128 = arith.addf %124, %127 : vector<16x32xf32>
    %cst_97 = arith.constant 0.176776692 : f32
    %129 = vector.broadcast %cst_97 : f32 to vector<16x32xf32>
    %130 = arith.mulf %128, %129 : vector<16x32xf32>
    %c0_98 = arith.constant 0 : index
    %c2_99 = arith.constant 2 : index
    %c0_100 = arith.constant 0 : index
    %c0_101 = arith.constant 0 : index
    %131 = vector.load %arg7[%c0_98, %c2_99, %c0_100, %c0_101] : memref<1x4x128x32xbf16, #tpu.memory_space<vmem>>, vector<1x1x128x32xbf16>
    %132 = vector.shape_cast %131 : vector<1x1x128x32xbf16> to vector<128x32xbf16>
    %cst_102 = arith.constant dense<0.000000e+00> : vector<16x32xf32>
    %133 = tpu.matmul %32, %132, %cst_102 {dimension_numbers = #tpu.dot_dimension_numbers<[1], [0], [0], [1], [0, 0, 1, 1], [], []>} : vector<16x128xbf16>, vector<128x32xbf16>, vector<16x32xf32> -> vector<16x32xf32>
    %c0_103 = arith.constant 0 : index
    %c2_104 = arith.constant 2 : index
    %c0_105 = arith.constant 0 : index
    %c0_106 = arith.constant 0 : index
    %134 = vector.load %arg8[%c0_103, %c2_104, %c0_105, %c0_106] : memref<1x4x1x32xf32, #tpu.memory_space<vmem>>, vector<1x1x1x32xf32>
    %135 = vector.shape_cast %134 : vector<1x1x1x32xf32> to vector<1x32xf32>
    %136 = vector.broadcast %135 : vector<1x32xf32> to vector<16x32xf32>
    %137 = arith.addf %133, %136 : vector<16x32xf32>
    %c0_107 = arith.constant 0 : index
    %c2_108 = arith.constant 2 : index
    %c0_109 = arith.constant 0 : index
    %c0_110 = arith.constant 0 : index
    %138 = vector.load %arg9[%c0_107, %c2_108, %c0_109, %c0_110] : memref<1x4x128x32xbf16, #tpu.memory_space<vmem>>, vector<1x1x128x32xbf16>
    %139 = vector.shape_cast %138 : vector<1x1x128x32xbf16> to vector<128x32xbf16>
    %cst_111 = arith.constant dense<0.000000e+00> : vector<16x32xf32>
    %140 = tpu.matmul %32, %139, %cst_111 {dimension_numbers = #tpu.dot_dimension_numbers<[1], [0], [0], [1], [0, 0, 1, 1], [], []>} : vector<16x128xbf16>, vector<128x32xbf16>, vector<16x32xf32> -> vector<16x32xf32>
    %c0_112 = arith.constant 0 : index
    %c2_113 = arith.constant 2 : index
    %c0_114 = arith.constant 0 : index
    %c0_115 = arith.constant 0 : index
    %141 = vector.load %arg10[%c0_112, %c2_113, %c0_114, %c0_115] : memref<1x4x1x32xf32, #tpu.memory_space<vmem>>, vector<1x1x1x32xf32>
    %142 = vector.shape_cast %141 : vector<1x1x1x32xf32> to vector<1x32xf32>
    %143 = vector.broadcast %142 : vector<1x32xf32> to vector<16x32xf32>
    %144 = arith.addf %140, %143 : vector<16x32xf32>
    %145 = arith.truncf %130 : vector<16x32xf32> to vector<16x32xbf16>
    %146 = arith.truncf %137 : vector<16x32xf32> to vector<16x32xbf16>
    %cst_116 = arith.constant dense<0.000000e+00> : vector<16x16xf32>
    %147 = tpu.matmul %145, %146, %cst_116 {dimension_numbers = #tpu.dot_dimension_numbers<[1], [1], [0], [0], [0, 0, 1, 0], [], []>} : vector<16x32xbf16>, vector<16x32xbf16>, vector<16x16xf32> -> vector<16x16xf32>
    %cst_117 = arith.constant dense<0xFF800000> : vector<16xf32>
    %148 = vector.multi_reduction <maximumf>, %147, %cst_117 [1] : vector<16x16xf32> to vector<16xf32>
    %149 = vector.shape_cast %148 : vector<16xf32> to vector<16x1xf32>
    %150 = vector.broadcast %149 : vector<16x1xf32> to vector<16x16xf32>
    %151 = arith.subf %147, %150 : vector<16x16xf32>
    %152 = math.exp %151 : vector<16x16xf32>
    %cst_118 = arith.constant dense<0.000000e+00> : vector<16xf32>
    %153 = vector.multi_reduction <add>, %152, %cst_118 [1] : vector<16x16xf32> to vector<16xf32>
    %154 = vector.shape_cast %153 : vector<16xf32> to vector<16x1xf32>
    %155 = arith.truncf %152 : vector<16x16xf32> to vector<16x16xbf16>
    %156 = arith.truncf %144 : vector<16x32xf32> to vector<16x32xbf16>
    %cst_119 = arith.constant dense<0.000000e+00> : vector<16x32xf32>
    %157 = tpu.matmul %155, %156, %cst_119 {dimension_numbers = #tpu.dot_dimension_numbers<[1], [0], [0], [1], [0, 0, 1, 1], [], []>} : vector<16x16xbf16>, vector<16x32xbf16>, vector<16x32xf32> -> vector<16x32xf32>
    %158 = tpu.reciprocal %154 {approx = true} : vector<16x1xf32> -> vector<16x1xf32>
    %159 = vector.broadcast %158 : vector<16x1xf32> to vector<16x32xf32>
    %160 = arith.mulf %157, %159 : vector<16x32xf32>
    %161 = arith.truncf %160 : vector<16x32xf32> to vector<16x32xbf16>
    %c0_120 = arith.constant 0 : index
    %c2_121 = arith.constant 2 : index
    %c0_122 = arith.constant 0 : index
    %c0_123 = arith.constant 0 : index
    %162 = vector.load %arg11[%c0_120, %c2_121, %c0_122, %c0_123] : memref<1x4x32x128xbf16, #tpu.memory_space<vmem>>, vector<1x1x32x128xbf16>
    %163 = vector.shape_cast %162 : vector<1x1x32x128xbf16> to vector<32x128xbf16>
    %cst_124 = arith.constant dense<0.000000e+00> : vector<16x128xf32>
    %164 = tpu.matmul %161, %163, %cst_124 {dimension_numbers = #tpu.dot_dimension_numbers<[1], [0], [0], [1], [0, 0, 1, 1], [], []>} : vector<16x32xbf16>, vector<32x128xbf16>, vector<16x128xf32> -> vector<16x128xf32>
    %165 = arith.addf %121, %164 : vector<16x128xf32>
    %c0_125 = arith.constant 0 : index
    %c3 = arith.constant 3 : index
    %c0_126 = arith.constant 0 : index
    %c0_127 = arith.constant 0 : index
    %166 = vector.load %arg5[%c0_125, %c3, %c0_126, %c0_127] : memref<1x4x128x32xbf16, #tpu.memory_space<vmem>>, vector<1x1x128x32xbf16>
    %167 = vector.shape_cast %166 : vector<1x1x128x32xbf16> to vector<128x32xbf16>
    %cst_128 = arith.constant dense<0.000000e+00> : vector<16x32xf32>
    %168 = tpu.matmul %32, %167, %cst_128 {dimension_numbers = #tpu.dot_dimension_numbers<[1], [0], [0], [1], [0, 0, 1, 1], [], []>} : vector<16x128xbf16>, vector<128x32xbf16>, vector<16x32xf32> -> vector<16x32xf32>
    %c0_129 = arith.constant 0 : index
    %c3_130 = arith.constant 3 : index
    %c0_131 = arith.constant 0 : index
    %c0_132 = arith.constant 0 : index
    %169 = vector.load %arg6[%c0_129, %c3_130, %c0_131, %c0_132] : memref<1x4x1x32xf32, #tpu.memory_space<vmem>>, vector<1x1x1x32xf32>
    %170 = vector.shape_cast %169 : vector<1x1x1x32xf32> to vector<1x32xf32>
    %171 = vector.broadcast %170 : vector<1x32xf32> to vector<16x32xf32>
    %172 = arith.addf %168, %171 : vector<16x32xf32>
    %cst_133 = arith.constant 0.176776692 : f32
    %173 = vector.broadcast %cst_133 : f32 to vector<16x32xf32>
    %174 = arith.mulf %172, %173 : vector<16x32xf32>
    %c0_134 = arith.constant 0 : index
    %c3_135 = arith.constant 3 : index
    %c0_136 = arith.constant 0 : index
    %c0_137 = arith.constant 0 : index
    %175 = vector.load %arg7[%c0_134, %c3_135, %c0_136, %c0_137] : memref<1x4x128x32xbf16, #tpu.memory_space<vmem>>, vector<1x1x128x32xbf16>
    %176 = vector.shape_cast %175 : vector<1x1x128x32xbf16> to vector<128x32xbf16>
    %cst_138 = arith.constant dense<0.000000e+00> : vector<16x32xf32>
    %177 = tpu.matmul %32, %176, %cst_138 {dimension_numbers = #tpu.dot_dimension_numbers<[1], [0], [0], [1], [0, 0, 1, 1], [], []>} : vector<16x128xbf16>, vector<128x32xbf16>, vector<16x32xf32> -> vector<16x32xf32>
    %c0_139 = arith.constant 0 : index
    %c3_140 = arith.constant 3 : index
    %c0_141 = arith.constant 0 : index
    %c0_142 = arith.constant 0 : index
    %178 = vector.load %arg8[%c0_139, %c3_140, %c0_141, %c0_142] : memref<1x4x1x32xf32, #tpu.memory_space<vmem>>, vector<1x1x1x32xf32>
    %179 = vector.shape_cast %178 : vector<1x1x1x32xf32> to vector<1x32xf32>
    %180 = vector.broadcast %179 : vector<1x32xf32> to vector<16x32xf32>
    %181 = arith.addf %177, %180 : vector<16x32xf32>
    %c0_143 = arith.constant 0 : index
    %c3_144 = arith.constant 3 : index
    %c0_145 = arith.constant 0 : index
    %c0_146 = arith.constant 0 : index
    %182 = vector.load %arg9[%c0_143, %c3_144, %c0_145, %c0_146] : memref<1x4x128x32xbf16, #tpu.memory_space<vmem>>, vector<1x1x128x32xbf16>
    %183 = vector.shape_cast %182 : vector<1x1x128x32xbf16> to vector<128x32xbf16>
    %cst_147 = arith.constant dense<0.000000e+00> : vector<16x32xf32>
    %184 = tpu.matmul %32, %183, %cst_147 {dimension_numbers = #tpu.dot_dimension_numbers<[1], [0], [0], [1], [0, 0, 1, 1], [], []>} : vector<16x128xbf16>, vector<128x32xbf16>, vector<16x32xf32> -> vector<16x32xf32>
    %c0_148 = arith.constant 0 : index
    %c3_149 = arith.constant 3 : index
    %c0_150 = arith.constant 0 : index
    %c0_151 = arith.constant 0 : index
    %185 = vector.load %arg10[%c0_148, %c3_149, %c0_150, %c0_151] : memref<1x4x1x32xf32, #tpu.memory_space<vmem>>, vector<1x1x1x32xf32>
    %186 = vector.shape_cast %185 : vector<1x1x1x32xf32> to vector<1x32xf32>
    %187 = vector.broadcast %186 : vector<1x32xf32> to vector<16x32xf32>
    %188 = arith.addf %184, %187 : vector<16x32xf32>
    %189 = arith.truncf %174 : vector<16x32xf32> to vector<16x32xbf16>
    %190 = arith.truncf %181 : vector<16x32xf32> to vector<16x32xbf16>
    %cst_152 = arith.constant dense<0.000000e+00> : vector<16x16xf32>
    %191 = tpu.matmul %189, %190, %cst_152 {dimension_numbers = #tpu.dot_dimension_numbers<[1], [1], [0], [0], [0, 0, 1, 0], [], []>} : vector<16x32xbf16>, vector<16x32xbf16>, vector<16x16xf32> -> vector<16x16xf32>
    %cst_153 = arith.constant dense<0xFF800000> : vector<16xf32>
    %192 = vector.multi_reduction <maximumf>, %191, %cst_153 [1] : vector<16x16xf32> to vector<16xf32>
    %193 = vector.shape_cast %192 : vector<16xf32> to vector<16x1xf32>
    %194 = vector.broadcast %193 : vector<16x1xf32> to vector<16x16xf32>
    %195 = arith.subf %191, %194 : vector<16x16xf32>
    %196 = math.exp %195 : vector<16x16xf32>
    %cst_154 = arith.constant dense<0.000000e+00> : vector<16xf32>
    %197 = vector.multi_reduction <add>, %196, %cst_154 [1] : vector<16x16xf32> to vector<16xf32>
    %198 = vector.shape_cast %197 : vector<16xf32> to vector<16x1xf32>
    %199 = arith.truncf %196 : vector<16x16xf32> to vector<16x16xbf16>
    %200 = arith.truncf %188 : vector<16x32xf32> to vector<16x32xbf16>
    %cst_155 = arith.constant dense<0.000000e+00> : vector<16x32xf32>
    %201 = tpu.matmul %199, %200, %cst_155 {dimension_numbers = #tpu.dot_dimension_numbers<[1], [0], [0], [1], [0, 0, 1, 1], [], []>} : vector<16x16xbf16>, vector<16x32xbf16>, vector<16x32xf32> -> vector<16x32xf32>
    %202 = tpu.reciprocal %198 {approx = true} : vector<16x1xf32> -> vector<16x1xf32>
    %203 = vector.broadcast %202 : vector<16x1xf32> to vector<16x32xf32>
    %204 = arith.mulf %201, %203 : vector<16x32xf32>
    %205 = arith.truncf %204 : vector<16x32xf32> to vector<16x32xbf16>
    %c0_156 = arith.constant 0 : index
    %c3_157 = arith.constant 3 : index
    %c0_158 = arith.constant 0 : index
    %c0_159 = arith.constant 0 : index
    %206 = vector.load %arg11[%c0_156, %c3_157, %c0_158, %c0_159] : memref<1x4x32x128xbf16, #tpu.memory_space<vmem>>, vector<1x1x32x128xbf16>
    %207 = vector.shape_cast %206 : vector<1x1x32x128xbf16> to vector<32x128xbf16>
    %cst_160 = arith.constant dense<0.000000e+00> : vector<16x128xf32>
    %208 = tpu.matmul %205, %207, %cst_160 {dimension_numbers = #tpu.dot_dimension_numbers<[1], [0], [0], [1], [0, 0, 1, 1], [], []>} : vector<16x32xbf16>, vector<32x128xbf16>, vector<16x128xf32> -> vector<16x128xf32>
    %209 = arith.addf %165, %208 : vector<16x128xf32>
    %210 = arith.addf %3, %209 : vector<16x128xf32>
    %c0_161 = arith.constant 0 : index
    %c0_162 = arith.constant 0 : index
    %c0_163 = arith.constant 0 : index
    %211 = vector.load %arg12[%c0_161, %c0_162, %c0_163] : memref<1x1x128xf32, #tpu.memory_space<vmem>>, vector<1x1x128xf32>
    %212 = vector.shape_cast %211 : vector<1x1x128xf32> to vector<1x128xf32>
    %213 = vector.broadcast %212 : vector<1x128xf32> to vector<16x128xf32>
    %214 = arith.addf %210, %213 : vector<16x128xf32>
    %c0_164 = arith.constant 0 : index
    %c0_165 = arith.constant 0 : index
    %c0_166 = arith.constant 0 : index
    %215 = vector.load %arg13[%c0_164, %c0_165, %c0_166] : memref<1x1x128xf32, #tpu.memory_space<vmem>>, vector<1x1x128xf32>
    %216 = vector.shape_cast %215 : vector<1x1x128xf32> to vector<1x128xf32>
    %c0_167 = arith.constant 0 : index
    %c0_168 = arith.constant 0 : index
    %c0_169 = arith.constant 0 : index
    %217 = vector.load %arg14[%c0_167, %c0_168, %c0_169] : memref<1x1x128xf32, #tpu.memory_space<vmem>>, vector<1x1x128xf32>
    %218 = vector.shape_cast %217 : vector<1x1x128xf32> to vector<1x128xf32>
    %cst_170 = arith.constant dense<0.000000e+00> : vector<16xf32>
    %219 = vector.multi_reduction <add>, %214, %cst_170 [1] : vector<16x128xf32> to vector<16xf32>
    %220 = vector.shape_cast %219 : vector<16xf32> to vector<16x1xf32>
    %cst_171 = arith.constant 1.280000e+02 : f32
    %221 = vector.broadcast %cst_171 : f32 to vector<16x1xf32>
    %222 = arith.divf %220, %221 : vector<16x1xf32>
    %223 = vector.broadcast %222 : vector<16x1xf32> to vector<16x128xf32>
    %224 = arith.subf %214, %223 : vector<16x128xf32>
    %225 = arith.mulf %224, %224 : vector<16x128xf32>
    %cst_172 = arith.constant dense<0.000000e+00> : vector<16xf32>
    %226 = vector.multi_reduction <add>, %225, %cst_172 [1] : vector<16x128xf32> to vector<16xf32>
    %227 = vector.shape_cast %226 : vector<16xf32> to vector<16x1xf32>
    %cst_173 = arith.constant 1.280000e+02 : f32
    %228 = vector.broadcast %cst_173 : f32 to vector<16x1xf32>
    %229 = arith.divf %227, %228 : vector<16x1xf32>
    %230 = vector.broadcast %222 : vector<16x1xf32> to vector<16x128xf32>
    %231 = arith.subf %214, %230 : vector<16x128xf32>
    %cst_174 = arith.constant 9.99999974E-6 : f32
    %232 = vector.broadcast %cst_174 : f32 to vector<16x1xf32>
    %233 = arith.addf %229, %232 : vector<16x1xf32>
    %234 = math.rsqrt %233 : vector<16x1xf32>
    %235 = vector.broadcast %234 : vector<16x1xf32> to vector<16x128xf32>
    %236 = arith.mulf %231, %235 : vector<16x128xf32>
    %237 = vector.broadcast %216 : vector<1x128xf32> to vector<16x128xf32>
    %238 = arith.mulf %236, %237 : vector<16x128xf32>
    %239 = vector.broadcast %218 : vector<1x128xf32> to vector<16x128xf32>
    %240 = arith.addf %238, %239 : vector<16x128xf32>
    %241 = arith.truncf %240 : vector<16x128xf32> to vector<16x128xbf16>
    %c0_175 = arith.constant 0 : index
    %c0_176 = arith.constant 0 : index
    %c0_177 = arith.constant 0 : index
    %242 = vector.load %arg15[%c0_175, %c0_176, %c0_177] : memref<1x128x256xbf16, #tpu.memory_space<vmem>>, vector<1x128x256xbf16>
    %243 = vector.shape_cast %242 : vector<1x128x256xbf16> to vector<128x256xbf16>
    %cst_178 = arith.constant dense<0.000000e+00> : vector<16x256xf32>
    %244 = tpu.matmul %241, %243, %cst_178 {dimension_numbers = #tpu.dot_dimension_numbers<[1], [0], [0], [1], [0, 0, 1, 1], [], []>} : vector<16x128xbf16>, vector<128x256xbf16>, vector<16x256xf32> -> vector<16x256xf32>
    %c0_179 = arith.constant 0 : index
    %c0_180 = arith.constant 0 : index
    %c0_181 = arith.constant 0 : index
    %245 = vector.load %arg16[%c0_179, %c0_180, %c0_181] : memref<1x1x256xf32, #tpu.memory_space<vmem>>, vector<1x1x256xf32>
    %246 = vector.shape_cast %245 : vector<1x1x256xf32> to vector<1x256xf32>
    %247 = vector.broadcast %246 : vector<1x256xf32> to vector<16x256xf32>
    %248 = arith.addf %244, %247 : vector<16x256xf32>
    %cst_182 = arith.constant 0.000000e+00 : f32
    %249 = vector.broadcast %cst_182 : f32 to vector<16x256xf32>
    %250 = arith.maximumf %248, %249 : vector<16x256xf32>
    %251 = arith.truncf %250 : vector<16x256xf32> to vector<16x256xbf16>
    %c0_183 = arith.constant 0 : index
    %c0_184 = arith.constant 0 : index
    %c0_185 = arith.constant 0 : index
    %252 = vector.load %arg17[%c0_183, %c0_184, %c0_185] : memref<1x256x128xbf16, #tpu.memory_space<vmem>>, vector<1x256x128xbf16>
    %253 = vector.shape_cast %252 : vector<1x256x128xbf16> to vector<256x128xbf16>
    %cst_186 = arith.constant dense<0.000000e+00> : vector<16x128xf32>
    %254 = tpu.matmul %251, %253, %cst_186 {dimension_numbers = #tpu.dot_dimension_numbers<[1], [0], [0], [1], [0, 0, 1, 1], [], []>} : vector<16x256xbf16>, vector<256x128xbf16>, vector<16x128xf32> -> vector<16x128xf32>
    %255 = arith.addf %5, %254 : vector<16x128xf32>
    %c0_187 = arith.constant 0 : index
    %c0_188 = arith.constant 0 : index
    %c0_189 = arith.constant 0 : index
    %256 = vector.load %arg18[%c0_187, %c0_188, %c0_189] : memref<1x1x128xf32, #tpu.memory_space<vmem>>, vector<1x1x128xf32>
    %257 = vector.shape_cast %256 : vector<1x1x128xf32> to vector<1x128xf32>
    %258 = vector.broadcast %257 : vector<1x128xf32> to vector<16x128xf32>
    %259 = arith.addf %255, %258 : vector<16x128xf32>
    %c0_190 = arith.constant 0 : index
    %c0_191 = arith.constant 0 : index
    %260 = vector.load %arg20[%c0_190, %c0_191] : memref<16x128xf32, #tpu.memory_space<vmem>>, vector<16x128xf32>
    tpu.vector_store %arg20[%c0_190, %c0_191], %214 {strides = array<i32>} : memref<16x128xf32, #tpu.memory_space<vmem>>, vector<16x128xf32>,
    %c0_192 = arith.constant 0 : index
    %c0_193 = arith.constant 0 : index
    %c0_194 = arith.constant 0 : index
    %261 = vector.load %arg19[%c0_192, %c0_193, %c0_194] : memref<1x16x128xf32, #tpu.memory_space<vmem>>, vector<1x16x128xf32>
    %262 = vector.shape_cast %261 : vector<1x16x128xf32> to vector<16x128xf32>
    %263 = vector.shape_cast %259 : vector<16x128xf32> to vector<1x16x128xf32>
    tpu.vector_store %arg19[%c0_192, %c0_193, %c0_194], %263 {strides = array<i32>} : memref<1x16x128xf32, #tpu.memory_space<vmem>>, vector<1x16x128xf32>,
    return
  }
  func.func @transform_0(%arg0: i32, %arg1: i32) -> (i32, i32, i32) {
    %c0_i32 = arith.constant 0 : i32
    %c0_i32_0 = arith.constant 0 : i32
    %c0_i32_1 = arith.constant 0 : i32
    return %arg0, %c0_i32, %c0_i32_0 : i32, i32, i32
  }
  func.func @transform_1(%arg0: i32, %arg1: i32) -> (i32, i32, i32) {
    %c0_i32 = arith.constant 0 : i32
    %c0_i32_0 = arith.constant 0 : i32
    %c0_i32_1 = arith.constant 0 : i32
    return %arg1, %c0_i32, %c0_i32_0 : i32, i32, i32
  }
  func.func @transform_2(%arg0: i32, %arg1: i32) -> (i32, i32, i32) {
    %c0_i32 = arith.constant 0 : i32
    %c0_i32_0 = arith.constant 0 : i32
    %c0_i32_1 = arith.constant 0 : i32
    return %arg1, %c0_i32, %c0_i32_0 : i32, i32, i32
  }
  func.func @transform_3(%arg0: i32, %arg1: i32) -> (i32, i32, i32, i32) {
    %c0_i32 = arith.constant 0 : i32
    %c0_i32_0 = arith.constant 0 : i32
    %c0_i32_1 = arith.constant 0 : i32
    %c0_i32_2 = arith.constant 0 : i32
    return %arg1, %c0_i32, %c0_i32_0, %c0_i32_1 : i32, i32, i32, i32
  }
  func.func @transform_4(%arg0: i32, %arg1: i32) -> (i32, i32, i32, i32) {
    %c0_i32 = arith.constant 0 : i32
    %c0_i32_0 = arith.constant 0 : i32
    %c0_i32_1 = arith.constant 0 : i32
    %c0_i32_2 = arith.constant 0 : i32
    return %arg1, %c0_i32, %c0_i32_0, %c0_i32_1 : i32, i32, i32, i32
  }
  func.func @transform_5(%arg0: i32, %arg1: i32) -> (i32, i32, i32, i32) {
    %c0_i32 = arith.constant 0 : i32
    %c0_i32_0 = arith.constant 0 : i32
    %c0_i32_1 = arith.constant 0 : i32
    %c0_i32_2 = arith.constant 0 : i32
    return %arg1, %c0_i32, %c0_i32_0, %c0_i32_1 : i32, i32, i32, i32
  }
  func.func @transform_6(%arg0: i32, %arg1: i32) -> (i32, i32, i32, i32) {
    %c0_i32 = arith.constant 0 : i32
    %c0_i32_0 = arith.constant 0 : i32
    %c0_i32_1 = arith.constant 0 : i32
    %c0_i32_2 = arith.constant 0 : i32
    return %arg1, %c0_i32, %c0_i32_0, %c0_i32_1 : i32, i32, i32, i32
  }
  func.func @transform_7(%arg0: i32, %arg1: i32) -> (i32, i32, i32, i32) {
    %c0_i32 = arith.constant 0 : i32
    %c0_i32_0 = arith.constant 0 : i32
    %c0_i32_1 = arith.constant 0 : i32
    %c0_i32_2 = arith.constant 0 : i32
    return %arg1, %c0_i32, %c0_i32_0, %c0_i32_1 : i32, i32, i32, i32
  }
  func.func @transform_8(%arg0: i32, %arg1: i32) -> (i32, i32, i32, i32) {
    %c0_i32 = arith.constant 0 : i32
    %c0_i32_0 = arith.constant 0 : i32
    %c0_i32_1 = arith.constant 0 : i32
    %c0_i32_2 = arith.constant 0 : i32
    return %arg1, %c0_i32, %c0_i32_0, %c0_i32_1 : i32, i32, i32, i32
  }
  func.func @transform_9(%arg0: i32, %arg1: i32) -> (i32, i32, i32, i32) {
    %c0_i32 = arith.constant 0 : i32
    %c0_i32_0 = arith.constant 0 : i32
    %c0_i32_1 = arith.constant 0 : i32
    %c0_i32_2 = arith.constant 0 : i32
    return %arg1, %c0_i32, %c0_i32_0, %c0_i32_1 : i32, i32, i32, i32
  }
  func.func @transform_10(%arg0: i32, %arg1: i32) -> (i32, i32, i32) {
    %c0_i32 = arith.constant 0 : i32
    %c0_i32_0 = arith.constant 0 : i32
    %c0_i32_1 = arith.constant 0 : i32
    return %arg1, %c0_i32, %c0_i32_0 : i32, i32, i32
  }
  func.func @transform_11(%arg0: i32, %arg1: i32) -> (i32, i32, i32) {
    %c0_i32 = arith.constant 0 : i32
    %c0_i32_0 = arith.constant 0 : i32
    %c0_i32_1 = arith.constant 0 : i32
    return %arg1, %c0_i32, %c0_i32_0 : i32, i32, i32
  }
  func.func @transform_12(%arg0: i32, %arg1: i32) -> (i32, i32, i32) {
    %c0_i32 = arith.constant 0 : i32
    %c0_i32_0 = arith.constant 0 : i32
    %c0_i32_1 = arith.constant 0 : i32
    return %arg1, %c0_i32, %c0_i32_0 : i32, i32, i32
  }
  func.func @transform_13(%arg0: i32, %arg1: i32) -> (i32, i32, i32) {
    %c0_i32 = arith.constant 0 : i32
    %c0_i32_0 = arith.constant 0 : i32
    %c0_i32_1 = arith.constant 0 : i32
    return %arg1, %c0_i32, %c0_i32_0 : i32, i32, i32
  }
  func.func @transform_14(%arg0: i32, %arg1: i32) -> (i32, i32, i32) {
    %c0_i32 = arith.constant 0 : i32
    %c0_i32_0 = arith.constant 0 : i32
    %c0_i32_1 = arith.constant 0 : i32
    return %arg1, %c0_i32, %c0_i32_0 : i32, i32, i32
  }
  func.func @transform_15(%arg0: i32, %arg1: i32) -> (i32, i32, i32) {
    %c0_i32 = arith.constant 0 : i32
    %c0_i32_0 = arith.constant 0 : i32
    %c0_i32_1 = arith.constant 0 : i32
    return %arg1, %c0_i32, %c0_i32_0 : i32, i32, i32
  }
  func.func @transform_16(%arg0: i32, %arg1: i32) -> (i32, i32, i32) {
    %c0_i32 = arith.constant 0 : i32
    %c0_i32_0 = arith.constant 0 : i32
    %c0_i32_1 = arith.constant 0 : i32
    return %arg1, %c0_i32, %c0_i32_0 : i32, i32, i32
  }
  func.func @transform_17(%arg0: i32, %arg1: i32) -> (i32, i32, i32) {
    %c0_i32 = arith.constant 0 : i32
    %c0_i32_0 = arith.constant 0 : i32
    %c0_i32_1 = arith.constant 0 : i32
    return %arg0, %c0_i32, %c0_i32_0 : i32, i32, i32
  }
}

module attributes {stable_mosaic.version = 11 : i64} {
  func.func @_classifier_kernel(%arg0: i32, %arg1: memref<32x128xf32, #tpu.memory_space<vmem>>, %arg2: memref<128x256xbf16, #tpu.memory_space<vmem>>, %arg3: memref<1x256xf32, #tpu.memory_space<vmem>>, %arg4: memref<256x8xbf16, #tpu.memory_space<vmem>>, %arg5: memref<1x8xf32, #tpu.memory_space<vmem>>, %arg6: memref<32x8xf32, #tpu.memory_space<vmem>>) attributes {dimension_semantics = [#tpu.dimension_semantics<parallel>], iteration_bounds = array<i64: 1>, scalar_prefetch = 0 : i64, scratch_operands = 0 : i64, tpu.core_type = #tpu.core_type<tc>, window_params = [{transform_indices = @transform_0, window_bounds = array<i64: 32, 128>}, {pipeline_mode = #tpu.pipeline_mode<synchronous>, transform_indices = @transform_1, window_bounds = array<i64: 128, 256>}, {pipeline_mode = #tpu.pipeline_mode<synchronous>, transform_indices = @transform_2, window_bounds = array<i64: 1, 256>}, {pipeline_mode = #tpu.pipeline_mode<synchronous>, transform_indices = @transform_3, window_bounds = array<i64: 256, 8>}, {pipeline_mode = #tpu.pipeline_mode<synchronous>, transform_indices = @transform_4, window_bounds = array<i64: 1, 8>}, {transform_indices = @transform_5, window_bounds = array<i64: 32, 8>}]} {
    %c0 = arith.constant 0 : index
    %c0_0 = arith.constant 0 : index
    %0 = vector.load %arg1[%c0, %c0_0] : memref<32x128xf32, #tpu.memory_space<vmem>>, vector<32x128xf32>
    %1 = arith.truncf %0 : vector<32x128xf32> to vector<32x128xbf16>
    %c0_1 = arith.constant 0 : index
    %c0_2 = arith.constant 0 : index
    %2 = vector.load %arg2[%c0_1, %c0_2] : memref<128x256xbf16, #tpu.memory_space<vmem>>, vector<128x256xbf16>
    %cst = arith.constant dense<0.000000e+00> : vector<32x256xf32>
    %3 = tpu.matmul %1, %2, %cst {dimension_numbers = #tpu.dot_dimension_numbers<[1], [0], [0], [1], [0, 0, 1, 1], [], []>} : vector<32x128xbf16>, vector<128x256xbf16>, vector<32x256xf32> -> vector<32x256xf32>
    %c0_3 = arith.constant 0 : index
    %c0_4 = arith.constant 0 : index
    %4 = vector.load %arg3[%c0_3, %c0_4] : memref<1x256xf32, #tpu.memory_space<vmem>>, vector<1x256xf32>
    %5 = vector.broadcast %4 : vector<1x256xf32> to vector<32x256xf32>
    %6 = arith.addf %3, %5 : vector<32x256xf32>
    %cst_5 = arith.constant 0.000000e+00 : f32
    %7 = vector.broadcast %cst_5 : f32 to vector<32x256xf32>
    %8 = arith.maximumf %6, %7 : vector<32x256xf32>
    %9 = arith.truncf %8 : vector<32x256xf32> to vector<32x256xbf16>
    %c0_6 = arith.constant 0 : index
    %c0_7 = arith.constant 0 : index
    %10 = vector.load %arg4[%c0_6, %c0_7] : memref<256x8xbf16, #tpu.memory_space<vmem>>, vector<256x8xbf16>
    %cst_8 = arith.constant dense<0.000000e+00> : vector<32x8xf32>
    %11 = tpu.matmul %9, %10, %cst_8 {dimension_numbers = #tpu.dot_dimension_numbers<[1], [0], [0], [1], [0, 0, 1, 1], [], []>} : vector<32x256xbf16>, vector<256x8xbf16>, vector<32x8xf32> -> vector<32x8xf32>
    %c0_9 = arith.constant 0 : index
    %c0_10 = arith.constant 0 : index
    %12 = vector.load %arg5[%c0_9, %c0_10] : memref<1x8xf32, #tpu.memory_space<vmem>>, vector<1x8xf32>
    %13 = vector.broadcast %12 : vector<1x8xf32> to vector<32x8xf32>
    %14 = arith.addf %11, %13 : vector<32x8xf32>
    %c0_11 = arith.constant 0 : index
    %c0_12 = arith.constant 0 : index
    %15 = vector.load %arg6[%c0_11, %c0_12] : memref<32x8xf32, #tpu.memory_space<vmem>>, vector<32x8xf32>
    tpu.vector_store %arg6[%c0_11, %c0_12], %14 {strides = array<i32>} : memref<32x8xf32, #tpu.memory_space<vmem>>, vector<32x8xf32>,
    return
  }
  func.func @transform_0(%arg0: i32) -> (i32, i32) {
    %c0_i32 = arith.constant 0 : i32
    %c0_i32_0 = arith.constant 0 : i32
    return %arg0, %c0_i32 : i32, i32
  }
  func.func @transform_1(%arg0: i32) -> (i32, i32) {
    %c0_i32 = arith.constant 0 : i32
    %c0_i32_0 = arith.constant 0 : i32
    %c0_i32_1 = arith.constant 0 : i32
    return %c0_i32, %c0_i32_0 : i32, i32
  }
  func.func @transform_2(%arg0: i32) -> (i32, i32) {
    %c0_i32 = arith.constant 0 : i32
    %c0_i32_0 = arith.constant 0 : i32
    %c0_i32_1 = arith.constant 0 : i32
    return %c0_i32, %c0_i32_0 : i32, i32
  }
  func.func @transform_3(%arg0: i32) -> (i32, i32) {
    %c0_i32 = arith.constant 0 : i32
    %c0_i32_0 = arith.constant 0 : i32
    %c0_i32_1 = arith.constant 0 : i32
    return %c0_i32, %c0_i32_0 : i32, i32
  }
  func.func @transform_4(%arg0: i32) -> (i32, i32) {
    %c0_i32 = arith.constant 0 : i32
    %c0_i32_0 = arith.constant 0 : i32
    %c0_i32_1 = arith.constant 0 : i32
    return %c0_i32, %c0_i32_0 : i32, i32
  }
  func.func @transform_5(%arg0: i32) -> (i32, i32) {
    %c0_i32 = arith.constant 0 : i32
    %c0_i32_0 = arith.constant 0 : i32
    return %arg0, %c0_i32 : i32, i32
  }
}

</mosaic_0001>

<llo_original>
// kernel: reformer_res_forward.3
$region0: #{reformer_res_forward.3}
  #allocation0 [shape = 'u32[]', space=smem, size = 0x4, offset = 0x4, fixed_abs, tag = 'smem constant byte address 0x4 - core index']
  #allocation1 [shape = 'u32[144,128]{1,0:T(1,128)}', space=vmem, size = 0x12000, scoped, tag = 'internal scratch']
  %s0 = inlined_call_operand.hbm [shape: f32[32,128], index: 0, kind: input, shape index: {}]
  %s1 = inlined_call_operand.hbm [shape: bf16[128,256], index: 1, kind: input, shape index: {}]
  %s2 = inlined_call_operand.hbm [shape: f32[1,256], index: 2, kind: input, shape index: {}]
  %s3 = inlined_call_operand.hbm [shape: bf16[256,8], index: 3, kind: input, shape index: {}]
  %s4 = inlined_call_operand.hbm [shape: f32[1,8], index: 4, kind: input, shape index: {}]
  %s5 = inlined_call_operand.hbm [shape: f32[32,8], index: 5, kind: output, shape index: {}]
  %s6 = sld [smem:[#allocation0]]
  $region50: #{reformer_res_forward.3} parent=0
    _
  %s8 = ssub.s32 1, %s6
  %s9 = scalar_select 0, %s8, %s6
  $region1: #{reformer_res_forward.3} parent=0
    #allocation2 [shape = 'u8[16384]{0}', space=vmem, size = 0x4000, scoped, tag = 'input window, operand 0, single buffered']
    #allocation3 [shape = 's32[1]{0}', space=sflag, size = 0x4, scoped, tag = 'scoped memory for reformer_res_forward.3']
    #allocation4 [shape = 's32[1]{0}', space=sflag, size = 0x4, scoped, tag = 'scoped memory for reformer_res_forward.3']
    #allocation5 [shape = 'u8[65536]{0}', space=vmem, size = 0x10000, scoped, tag = 'input window, operand 1, single buffered']
    #allocation6 [shape = 's32[1]{0}', space=sflag, size = 0x4, scoped, tag = 'scoped memory for reformer_res_forward.3']
    #allocation7 [shape = 'u8[1024]{0}', space=vmem, size = 0x400, scoped, tag = 'input window, operand 2, single buffered']
    #allocation8 [shape = 'u8[65536]{0}', space=vmem, size = 0x10000, scoped, tag = 'input window, operand 3, single buffered']
    #allocation9 [shape = 's32[1]{0}', space=sflag, size = 0x4, scoped, tag = 'scoped memory for reformer_res_forward.3']
    #allocation10 [shape = 'u8[512]{0}', space=vmem, size = 0x400, scoped, tag = 'input window, operand 4, single buffered']
    #allocation11 [shape = 'u8[16384]{0}', space=vmem, size = 0x4000, scoped, tag = 'output window, operand 0, single buffered']
    %10 = vsyncpa [#allocation3], 0
    %11 = vsyncpa [#allocation6], 0
    %12 = vsyncpa [#allocation9], 0
    %13 = vsyncpa [#allocation4], 0
    // Predicated region
    $region2: #{reformer_res_forward.3} parent=1 // pred_check
      _
    $region3: #{reformer_res_forward.3} parent=1 // pred_check_branch
      %15 = sbr.rel (0) target = $region5
    $region4: #{reformer_res_forward.3} parent=1 // pred_region
      %s17 = ssub.s32 512, 512
      %18 = vsyncadd [#allocation3], %s17
      %s19 = sshll.u32 [#allocation2], 4
      %s20 = int_to_ptr.vmem [resolvable:$true] %s19
      %25 = dma.hbm_to_vmem [thread:$0]  %s0, 512, %s20, [#allocation3], 128, 128, 8
    $region5: #{reformer_res_forward.3} parent=1 // pred_fallthru
      _
    // Predicated region
    $region6: #{reformer_res_forward.3} parent=1 // pred_check
      _
    $region7: #{reformer_res_forward.3} parent=1 // pred_check_branch
      %27 = sbr.rel (0) target = $region9
    $region8: #{reformer_res_forward.3} parent=1 // pred_region
      %s29 = ssub.s32 2048, 2048
      %30 = vsyncadd [#allocation6], %s29
      %s31 = sshll.u32 [#allocation5], 4
      %s32 = int_to_ptr.vmem [resolvable:$true] %s31
      %37 = dma.hbm_to_vmem [thread:$0]  %s1, 2048, %s32, [#allocation6], 128, 128, 8
    $region9: #{reformer_res_forward.3} parent=1 // pred_fallthru
      _
    // Predicated region
    $region10: #{reformer_res_forward.3} parent=1 // pred_check
      _
    $region11: #{reformer_res_forward.3} parent=1 // pred_check_branch
      %39 = sbr.rel (0) target = $region13
    $region12: #{reformer_res_forward.3} parent=1 // pred_region
      %s41 = ssub.s32 32, 32
      %42 = vsyncadd [#allocation6], %s41
      %s44 = sshll.u32 [#allocation7], 4
      %s45 = int_to_ptr.vmem [resolvable:$true] %s44
      %47 = dma.hbm_to_vmem [thread:$0]  %s2, 32, %s45, [#allocation6]
    $region13: #{reformer_res_forward.3} parent=1 // pred_fallthru
      _
    // Predicated region
    $region14: #{reformer_res_forward.3} parent=1 // pred_check
      _
    $region15: #{reformer_res_forward.3} parent=1 // pred_check_branch
      %49 = sbr.rel (0) target = $region17
    $region16: #{reformer_res_forward.3} parent=1 // pred_region
      %s51 = ssub.s32 2048, 2048
      %52 = vsyncadd [#allocation9], %s51
      %s53 = sshll.u32 [#allocation8], 4
      %s54 = int_to_ptr.vmem [resolvable:$true] %s53
      %59 = dma.hbm_to_vmem [thread:$0]  %s3, 2048, %s54, [#allocation9], 64, 64, 4
    $region17: #{reformer_res_forward.3} parent=1 // pred_fallthru
      _
    // Predicated region
    $region18: #{reformer_res_forward.3} parent=1 // pred_check
      _
    $region19: #{reformer_res_forward.3} parent=1 // pred_check_branch
      %61 = sbr.rel (0) target = $region21
    $region20: #{reformer_res_forward.3} parent=1 // pred_region
      %s63 = ssub.s32 16, 16
      %64 = vsyncadd [#allocation9], %s63
      %s66 = sshll.u32 [#allocation10], 4
      %s67 = int_to_ptr.vmem [resolvable:$true] %s66
      %69 = dma.hbm_to_vmem [thread:$0]  %s4, 16, %s67, [#allocation9]
    $region21: #{reformer_res_forward.3} parent=1 // pred_fallthru
      _
    // Predicated region
    $region22: #{reformer_res_forward.3} parent=1 // pred_check
      _
    $region23: #{reformer_res_forward.3} parent=1 // pred_check_branch
      %71 = sbr.rel (0) target = $region25
    $region24: #{reformer_res_forward.3} parent=1 // pred_region
      %72 = dma.done [#allocation3], 512
    $region25: #{reformer_res_forward.3} parent=1 // pred_fallthru
      _
    // Predicated region
    $region26: #{reformer_res_forward.3} parent=1 // pred_check
      _
    $region27: #{reformer_res_forward.3} parent=1 // pred_check_branch
      %74 = sbr.rel (0) target = $region29
    $region28: #{reformer_res_forward.3} parent=1 // pred_region
      %75 = dma.done [#allocation6], 2048
    $region29: #{reformer_res_forward.3} parent=1 // pred_fallthru
      _
    // Predicated region
    $region30: #{reformer_res_forward.3} parent=1 // pred_check
      _
    $region31: #{reformer_res_forward.3} parent=1 // pred_check_branch
      %77 = sbr.rel (0) target = $region33
    $region32: #{reformer_res_forward.3} parent=1 // pred_region
      %78 = dma.done [#allocation6], 32
    $region33: #{reformer_res_forward.3} parent=1 // pred_fallthru
      _
    // Predicated region
    $region34: #{reformer_res_forward.3} parent=1 // pred_check
      _
    $region35: #{reformer_res_forward.3} parent=1 // pred_check_branch
      %80 = sbr.rel (0) target = $region37
    $region36: #{reformer_res_forward.3} parent=1 // pred_region
      %81 = dma.done [#allocation9], 2048
    $region37: #{reformer_res_forward.3} parent=1 // pred_fallthru
      _
    // Predicated region
    $region38: #{reformer_res_forward.3} parent=1 // pred_check
      _
    $region39: #{reformer_res_forward.3} parent=1 // pred_check_branch
      %83 = sbr.rel (0) target = $region41
    $region40: #{reformer_res_forward.3} parent=1 // pred_region
      %84 = dma.done [#allocation9], 16
    $region41: #{reformer_res_forward.3} parent=1 // pred_fallthru
      _
    %v86 = vld [vmem:[#allocation2] sm:$0xff]
    %v87 = vld [vmem:[#allocation2 + $0x8] sm:$0xff]
    %v88 = vld [vmem:[#allocation2 + $0x10] sm:$0xff]
    %v89 = vld [vmem:[#allocation2 + $0x18] sm:$0xff]
    %v90 = vpack.c.bf16 %v87, %v86
    %v91 = vpack.c.bf16 %v89, %v88
    %v92 = vld [vmem:[#allocation5] sm:$0xff]
    %v93 = vld [vmem:[#allocation5 + $0x8] sm:$0xff]
    %v94 = vld [vmem:[#allocation5 + $0x10] sm:$0xff]
    %v95 = vld [vmem:[#allocation5 + $0x18] sm:$0xff]
    %v96 = vld [vmem:[#allocation5 + $0x20] sm:$0xff]
    %v97 = vld [vmem:[#allocation5 + $0x28] sm:$0xff]
    %v98 = vld [vmem:[#allocation5 + $0x30] sm:$0xff]
    %v99 = vld [vmem:[#allocation5 + $0x38] sm:$0xff]
    %v100 = vld [vmem:[#allocation5 + $0x40] sm:$0xff]
    %v101 = vld [vmem:[#allocation5 + $0x48] sm:$0xff]
    %v102 = vld [vmem:[#allocation5 + $0x50] sm:$0xff]
    %v103 = vld [vmem:[#allocation5 + $0x58] sm:$0xff]
    %v104 = vld [vmem:[#allocation5 + $0x60] sm:$0xff]
    %v105 = vld [vmem:[#allocation5 + $0x68] sm:$0xff]
    %v106 = vld [vmem:[#allocation5 + $0x70] sm:$0xff]
    %v107 = vld [vmem:[#allocation5 + $0x78] sm:$0xff]
    %v108 = vld [vmem:[#allocation7] sm:$0x3]
    %v110 = vlaneseq
    %v111 = vshrl.u32 %v110, 7
    %v112 = vsub.s32 0, %v111
    %v113 = vrot.slane %v108, %v112
    %v114 = vlaneseq
    %v115 = vshrl.u32 %v114, 7
    %v116 = vsub.s32 1, %v115
    %v117 = vrot.slane %v108, %v116
    %v136 = vunpack.c.l.b16 %v92
    %v137 = vunpack.c.h.b16 %v92
    %v138 = vunpack.c.l.b16 %v93
    %v139 = vunpack.c.h.b16 %v93
    %v140 = vunpack.c.l.b16 %v94
    %v141 = vunpack.c.h.b16 %v94
    %v142 = vunpack.c.l.b16 %v95
    %v143 = vunpack.c.h.b16 %v95
    %v144 = vunpack.c.l.b16 %v96
    %v145 = vunpack.c.h.b16 %v96
    %v146 = vunpack.c.l.b16 %v97
    %v147 = vunpack.c.h.b16 %v97
    %v148 = vunpack.c.l.b16 %v98
    %v149 = vunpack.c.h.b16 %v98
    %v150 = vunpack.c.l.b16 %v99
    %v151 = vunpack.c.h.b16 %v99
    %v152 = vunpack.c.l.b16 %v100
    %v153 = vunpack.c.h.b16 %v100
    %v154 = vunpack.c.l.b16 %v101
    %v155 = vunpack.c.h.b16 %v101
    %v156 = vunpack.c.l.b16 %v102
    %v157 = vunpack.c.h.b16 %v102
    %v158 = vunpack.c.l.b16 %v103
    %v159 = vunpack.c.h.b16 %v103
    %v160 = vunpack.c.l.b16 %v104
    %v161 = vunpack.c.h.b16 %v104
    %v162 = vunpack.c.l.b16 %v105
    %v163 = vunpack.c.h.b16 %v105
    %v164 = vunpack.c.l.b16 %v106
    %v165 = vunpack.c.h.b16 %v106
    %v166 = vunpack.c.l.b16 %v107
    %v167 = vunpack.c.h.b16 %v107
    %v168 = vpack.c.b16 %v138, %v136
    %v169 = vpack.c.b16 %v139, %v137
    %v170 = vpack.c.b16 %v142, %v140
    %v171 = vpack.c.b16 %v143, %v141
    %v172 = vpack.c.b16 %v146, %v144
    %v173 = vpack.c.b16 %v147, %v145
    %v174 = vpack.c.b16 %v150, %v148
    %v175 = vpack.c.b16 %v151, %v149
    %v176 = vpack.c.b16 %v154, %v152
    %v177 = vpack.c.b16 %v155, %v153
    %v178 = vpack.c.b16 %v158, %v156
    %v179 = vpack.c.b16 %v159, %v157
    %v180 = vpack.c.b16 %v162, %v160
    %v181 = vpack.c.b16 %v163, %v161
    %v182 = vpack.c.b16 %v166, %v164
    %v183 = vpack.c.b16 %v167, %v165
    %200 = vmatprep.subr.bf16.mxu0 %v169
    %201 = vmatpush1.bf16.msra.mxu0 %v168
    %202 = vmatprep.subr.bf16.mxu0 %v171
    %203 = vmatpush1.bf16.msra.mxu0 %v170
    %204 = vmatprep.subr.bf16.mxu0 %v173
    %205 = vmatpush1.bf16.msra.mxu0 %v172
    %206 = vmatprep.subr.bf16.mxu0 %v175
    %207 = vmatpush1.bf16.msra.mxu0 %v174
    %208 = vmatprep.subr.bf16.mxu0 %v177
    %209 = vmatpush1.bf16.msra.mxu0 %v176
    %210 = vmatprep.subr.bf16.mxu0 %v179
    %211 = vmatpush1.bf16.msra.mxu0 %v178
    %212 = vmatprep.subr.bf16.mxu0 %v181
    %213 = vmatpush1.bf16.msra.mxu0 %v180
    %214 = vmatprep.subr.bf16.mxu0 %v183
    %215 = vmatpush1.bf16.msra.mxu0 %v182
    %216 = vmatprep.subr.bf16.mxu0 0
    %217 = vmatpush1.bf16.msra.mxu0 0
    %218 = vmatprep.subr.bf16.mxu0 0
    %219 = vmatpush1.bf16.msra.mxu0 0
    %220 = vmatprep.subr.bf16.mxu0 0
    %221 = vmatpush1.bf16.msra.mxu0 0
    %222 = vmatprep.subr.bf16.mxu0 0
    %223 = vmatpush1.bf16.msra.mxu0 0
    %224 = vmatprep.subr.bf16.mxu0 0
    %225 = vmatpush1.bf16.msra.mxu0 0
    %226 = vmatprep.subr.bf16.mxu0 0
    %227 = vmatpush1.bf16.msra.mxu0 0
    %228 = vmatprep.subr.bf16.mxu0 0
    %229 = vmatpush1.bf16.msra.mxu0 0
    %230 = vmatprep.subr.bf16.mxu0 0
    %231 = vmatpush1.bf16.msra.mxu0 0
    %232 = vmatprep.mubr.bf16.mxu0 0
    %233 = vmatmul.mubr.bf16.gmra.mrb[0].mxu0 %v90
    %v234 = vpop.f32.mrb[0].mxu0
    %v235 = vadd.f32 %v113, %v234
    %v236 = vpop.f32.mrb[0].mxu0
    %v237 = vadd.f32 %v117, %v236
    %v238 = vpop.f32.mrb[0].mxu0
    %v239 = vadd.f32 %v113, %v238
    %v240 = vpop.f32.mrb[0].mxu0
    %v241 = vadd.f32 %v117, %v240
    %242 = vmatprep.mubr.bf16.mxu0 0
    %243 = vmatmul.mubr.bf16.gmra.mrb[0].mxu0 %v91
    %v244 = vpop.f32.mrb[0].mxu0
    %v245 = vadd.f32 %v113, %v244
    %v246 = vpop.f32.mrb[0].mxu0
    %v247 = vadd.f32 %v117, %v246
    %v248 = vpop.f32.mrb[0].mxu0
    %v249 = vadd.f32 %v113, %v248
    %v250 = vpop.f32.mrb[0].mxu0
    %v251 = vadd.f32 %v117, %v250
    %252 = vdwg.mxu0
    %v253 = vmax.f32 %v235, 0.0
    %v254 = vmax.f32 %v237, 0.0
    %v255 = vmax.f32 %v239, 0.0
    %v256 = vmax.f32 %v241, 0.0
    %v257 = vmax.f32 %v245, 0.0
    %v258 = vmax.f32 %v247, 0.0
    %v259 = vmax.f32 %v249, 0.0
    %v260 = vmax.f32 %v251, 0.0
    %v261 = vpack.c.bf16 %v255, %v253
    %v262 = vpack.c.bf16 %v256, %v254
    %v263 = vpack.c.bf16 %v259, %v257
    %v264 = vpack.c.bf16 %v260, %v258
    %v265 = vld [vmem:[#allocation8] sm:$0xf]
    %v266 = vld [vmem:[#allocation8 + $0x4] sm:$0xf]
    %v267 = vld [vmem:[#allocation8 + $0x8] sm:$0xf]
    %v268 = vld [vmem:[#allocation8 + $0xc] sm:$0xf]
    %v269 = vld [vmem:[#allocation8 + $0x10] sm:$0xf]
    %v270 = vld [vmem:[#allocation8 + $0x14] sm:$0xf]
    %v271 = vld [vmem:[#allocation8 + $0x18] sm:$0xf]
    %v272 = vld [vmem:[#allocation8 + $0x1c] sm:$0xf]
    %v273 = vld [vmem:[#allocation8 + $0x20] sm:$0xf]
    %v274 = vld [vmem:[#allocation8 + $0x24] sm:$0xf]
    %v275 = vld [vmem:[#allocation8 + $0x28] sm:$0xf]
    %v276 = vld [vmem:[#allocation8 + $0x2c] sm:$0xf]
    %v277 = vld [vmem:[#allocation8 + $0x30] sm:$0xf]
    %v278 = vld [vmem:[#allocation8 + $0x34] sm:$0xf]
    %v279 = vld [vmem:[#allocation8 + $0x38] sm:$0xf]
    %v280 = vld [vmem:[#allocation8 + $0x3c] sm:$0xf]
    %v281 = vld [vmem:[#allocation8 + $0x40] sm:$0xf]
    %v282 = vld [vmem:[#allocation8 + $0x44] sm:$0xf]
    %v283 = vld [vmem:[#allocation8 + $0x48] sm:$0xf]
    %v284 = vld [vmem:[#allocation8 + $0x4c] sm:$0xf]
    %v285 = vld [vmem:[#allocation8 + $0x50] sm:$0xf]
    %v286 = vld [vmem:[#allocation8 + $0x54] sm:$0xf]
    %v287 = vld [vmem:[#allocation8 + $0x58] sm:$0xf]
    %v288 = vld [vmem:[#allocation8 + $0x5c] sm:$0xf]
    %v289 = vld [vmem:[#allocation8 + $0x60] sm:$0xf]
    %v290 = vld [vmem:[#allocation8 + $0x64] sm:$0xf]
    %v291 = vld [vmem:[#allocation8 + $0x68] sm:$0xf]
    %v292 = vld [vmem:[#allocation8 + $0x6c] sm:$0xf]
    %v293 = vld [vmem:[#allocation8 + $0x70] sm:$0xf]
    %v294 = vld [vmem:[#allocation8 + $0x74] sm:$0xf]
    %v295 = vld [vmem:[#allocation8 + $0x78] sm:$0xf]
    %v296 = vld [vmem:[#allocation8 + $0x7c] sm:$0xf]
    %v297 = vld [vmem:[#allocation10] sm:$0x1]
    %v299 = vlaneseq
    %v300 = vshrl.u32 %v299, 7
    %v301 = vsub.s32 0, %v300
    %v302 = vrot.slane %v297, %v301
    %v336 = vunpack.c.l.b16 %v265
    %v337 = vunpack.c.l.b16 %v266
    %v338 = vunpack.c.l.b16 %v267
    %v339 = vunpack.c.l.b16 %v268
    %v340 = vunpack.c.l.b16 %v269
    %v341 = vunpack.c.l.b16 %v270
    %v342 = vunpack.c.l.b16 %v271
    %v343 = vunpack.c.l.b16 %v272
    %v344 = vunpack.c.l.b16 %v273
    %v345 = vunpack.c.l.b16 %v274
    %v346 = vunpack.c.l.b16 %v275
    %v347 = vunpack.c.l.b16 %v276
    %v348 = vunpack.c.l.b16 %v277
    %v349 = vunpack.c.l.b16 %v278
    %v350 = vunpack.c.l.b16 %v279
    %v351 = vunpack.c.l.b16 %v280
    %v352 = vunpack.c.l.b16 %v281
    %v353 = vunpack.c.l.b16 %v282
    %v354 = vunpack.c.l.b16 %v283
    %v355 = vunpack.c.l.b16 %v284
    %v356 = vunpack.c.l.b16 %v285
    %v357 = vunpack.c.l.b16 %v286
    %v358 = vunpack.c.l.b16 %v287
    %v359 = vunpack.c.l.b16 %v288
    %v360 = vunpack.c.l.b16 %v289
    %v361 = vunpack.c.l.b16 %v290
    %v362 = vunpack.c.l.b16 %v291
    %v363 = vunpack.c.l.b16 %v292
    %v364 = vunpack.c.l.b16 %v293
    %v365 = vunpack.c.l.b16 %v294
    %v366 = vunpack.c.l.b16 %v295
    %v367 = vunpack.c.l.b16 %v296
    %v368 = vpack.c.b16 %v337, %v336
    %v369 = vpack.c.b16 %v339, %v338
    %v370 = vpack.c.b16 %v341, %v340
    %v371 = vpack.c.b16 %v343, %v342
    %v372 = vpack.c.b16 %v345, %v344
    %v373 = vpack.c.b16 %v347, %v346
    %v374 = vpack.c.b16 %v349, %v348
    %v375 = vpack.c.b16 %v351, %v350
    %v376 = vpack.c.b16 %v353, %v352
    %v377 = vpack.c.b16 %v355, %v354
    %v378 = vpack.c.b16 %v357, %v356
    %v379 = vpack.c.b16 %v359, %v358
    %v380 = vpack.c.b16 %v361, %v360
    %v381 = vpack.c.b16 %v363, %v362
    %v382 = vpack.c.b16 %v365, %v364
    %v383 = vpack.c.b16 %v367, %v366
    %400 = vmatprep.subr.bf16.mxu0 0
    %401 = vmatpush1.bf16.msra.mxu0 %v368
    %402 = vmatprep.subr.bf16.mxu0 0
    %403 = vmatpush1.bf16.msra.mxu0 %v369
    %404 = vmatprep.subr.bf16.mxu0 0
    %405 = vmatpush1.bf16.msra.mxu0 %v370
    %406 = vmatprep.subr.bf16.mxu0 0
    %407 = vmatpush1.bf16.msra.mxu0 %v371
    %408 = vmatprep.subr.bf16.mxu0 0
    %409 = vmatpush1.bf16.msra.mxu0 %v372
    %410 = vmatprep.subr.bf16.mxu0 0
    %411 = vmatpush1.bf16.msra.mxu0 %v373
    %412 = vmatprep.subr.bf16.mxu0 0
    %413 = vmatpush1.bf16.msra.mxu0 %v374
    %414 = vmatprep.subr.bf16.mxu0 0
    %415 = vmatpush1.bf16.msra.mxu0 %v375
    %416 = vmatprep.subr.bf16.mxu0 0
    %417 = vmatpush1.bf16.msra.mxu0 %v376
    %418 = vmatprep.subr.bf16.mxu0 0
    %419 = vmatpush1.bf16.msra.mxu0 %v377
    %420 = vmatprep.subr.bf16.mxu0 0
    %421 = vmatpush1.bf16.msra.mxu0 %v378
    %422 = vmatprep.subr.bf16.mxu0 0
    %423 = vmatpush1.bf16.msra.mxu0 %v379
    %424 = vmatprep.subr.bf16.mxu0 0
    %425 = vmatpush1.bf16.msra.mxu0 %v380
    %426 = vmatprep.subr.bf16.mxu0 0
    %427 = vmatpush1.bf16.msra.mxu0 %v381
    %428 = vmatprep.subr.bf16.mxu0 0
    %429 = vmatpush1.bf16.msra.mxu0 %v382
    %430 = vmatprep.subr.bf16.mxu0 0
    %431 = vmatpush1.bf16.msra.mxu0 %v383
    %432 = vmatprep.mubr.bf16.mxu0 %v262
    %433 = vmatmul.mubr.bf16.gmra.mrb[0].mxu0 %v261
    %v434 = vpop.f32.mrb[0].mxu0
    %v435 = vadd.f32 %v302, %v434
    %v436 = vpop.f32.mrb[0].mxu0
    %v437 = vpop.f32.mrb[0].mxu0
    %v438 = vadd.f32 %v302, %v437
    %v439 = vpop.f32.mrb[0].mxu0
    %440 = vmatprep.mubr.bf16.mxu0 %v264
    %441 = vmatmul.mubr.bf16.gmra.mrb[0].mxu0 %v263
    %v442 = vpop.f32.mrb[0].mxu0
    %v443 = vadd.f32 %v302, %v442
    %v444 = vpop.f32.mrb[0].mxu0
    %v445 = vpop.f32.mrb[0].mxu0
    %v446 = vadd.f32 %v302, %v445
    %v447 = vpop.f32.mrb[0].mxu0
    %448 = vdwg.mxu0
    %vm449 = vcmask 64512
    %450 = vst.msk [vmem:[#allocation11] sm:$0xff] %vm449, %v435
    %451 = vst.msk [vmem:[#allocation11 + $0x8] sm:$0xff] %vm449, %v438
    %452 = vst.msk [vmem:[#allocation11 + $0x10] sm:$0xff] %vm449, %v443
    %453 = vst.msk [vmem:[#allocation11 + $0x18] sm:$0xff] %vm449, %v446
    // Predicated region
    $region42: #{reformer_res_forward.3} parent=1 // pred_check
      _
    $region43: #{reformer_res_forward.3} parent=1 // pred_check_branch
      %455 = sbr.rel (0) target = $region45
    $region44: #{reformer_res_forward.3} parent=1 // pred_region
      %s457 = ssub.s32 512, 512
      %458 = vsyncadd [#allocation4], %s457
      %s459 = sshll.u32 [#allocation11], 4
      %s460 = int_to_ptr.vmem [resolvable:$true] %s459
      %465 = dma.vmem_to_hbm [thread:$0]  %s460, 512, %s5, [#allocation4], 128, 128, 8
    $region45: #{reformer_res_forward.3} parent=1 // pred_fallthru
      _
    // Predicated region
    $region46: #{reformer_res_forward.3} parent=1 // pred_check
      _
    $region47: #{reformer_res_forward.3} parent=1 // pred_check_branch
      %467 = sbr.rel (0) target = $region49
    $region48: #{reformer_res_forward.3} parent=1 // pred_region
      %468 = dma.done [#allocation4], 512
    $region49: #{reformer_res_forward.3} parent=1 // pred_fallthru
      _
    %469 = vsyncpa [#allocation3], 1
    %470 = vsyncpa [#allocation6], 1
    %471 = vsyncpa [#allocation9], 1
    %472 = vsyncpa [#allocation4], 1

// kernel: reformer_res_forward.2
$region0: #{reformer_res_forward.2}
  #allocation0 [shape = 'u32[]', space=smem, size = 0x4, offset = 0x4, fixed_abs, tag = 'smem constant byte address 0x4 - core index']
  #allocation1 [shape = 'u32[144,128]{1,0:T(1,128)}', space=vmem, size = 0x12000, scoped, tag = 'internal scratch']
  #allocation2 [shape = 'f32[16,128]{1,0:T(8,128)}', space=vmem, size = 0x2000, scoped, tag = 'scratch operand']
  %s0 = inlined_call_operand.hbm [shape: f32[2,16,128], index: 0, kind: input, shape index: {}]
  %s1 = inlined_call_operand.hbm [shape: f32[2,1,128], index: 1, kind: input, shape index: {}]
  %s2 = inlined_call_operand.hbm [shape: f32[2,1,128], index: 2, kind: input, shape index: {}]
  %s3 = inlined_call_operand.hbm [shape: bf16[2,4,128,32], index: 3, kind: input, shape index: {}]
  %s4 = inlined_call_operand.hbm [shape: f32[2,4,1,32], index: 4, kind: input, shape index: {}]
  %s5 = inlined_call_operand.hbm [shape: bf16[2,4,128,32], index: 5, kind: input, shape index: {}]
  %s6 = inlined_call_operand.hbm [shape: f32[2,4,1,32], index: 6, kind: input, shape index: {}]
  %s7 = inlined_call_operand.hbm [shape: bf16[2,4,128,32], index: 7, kind: input, shape index: {}]
  %s8 = inlined_call_operand.hbm [shape: f32[2,4,1,32], index: 8, kind: input, shape index: {}]
  %s9 = inlined_call_operand.hbm [shape: bf16[2,4,32,128], index: 9, kind: input, shape index: {}]
  %s10 = inlined_call_operand.hbm [shape: f32[2,1,128], index: 10, kind: input, shape index: {}]
  %s11 = inlined_call_operand.hbm [shape: f32[2,1,128], index: 11, kind: input, shape index: {}]
  %s12 = inlined_call_operand.hbm [shape: f32[2,1,128], index: 12, kind: input, shape index: {}]
  %s13 = inlined_call_operand.hbm [shape: bf16[2,128,256], index: 13, kind: input, shape index: {}]
  %s14 = inlined_call_operand.hbm [shape: f32[2,1,256], index: 14, kind: input, shape index: {}]
  %s15 = inlined_call_operand.hbm [shape: bf16[2,256,128], index: 15, kind: input, shape index: {}]
  %s16 = inlined_call_operand.hbm [shape: f32[2,1,128], index: 16, kind: input, shape index: {}]
  %s17 = inlined_call_operand.hbm [shape: f32[2,16,128], index: 17, kind: output, shape index: {}]
  %s18 = sld [smem:[#allocation0]]
  $region173: #{reformer_res_forward.2} parent=0
    _
  %s20 = ssub.s32 1, %s18
  %s21 = scalar_select 0, %s20, %s18
  $region1: #{reformer_res_forward.2} parent=0
    #allocation3 [shape = 'u8[16384]{0}', space=vmem, size = 0x4000, scoped, tag = 'input window, operand 0']
    #allocation4 [shape = 's32[2]{0}', space=sflag, size = 0x8, scoped, tag = 'scoped memory for reformer_res_forward.2']
    #allocation5 [shape = 's32[2]{0}', space=sflag, size = 0x8, scoped, tag = 'scoped memory for reformer_res_forward.2']
    #allocation6 [shape = 'u8[1024]{0}', space=vmem, size = 0x400, scoped, tag = 'input window, operand 1']
    #allocation7 [shape = 's32[2]{0}', space=sflag, size = 0x8, scoped, tag = 'scoped memory for reformer_res_forward.2']
    #allocation8 [shape = 'u8[1024]{0}', space=vmem, size = 0x400, scoped, tag = 'input window, operand 2']
    #allocation9 [shape = 'u8[262144]{0}', space=vmem, size = 0x40000, scoped, tag = 'input window, operand 3']
    #allocation10 [shape = 's32[2]{0}', space=sflag, size = 0x8, scoped, tag = 'scoped memory for reformer_res_forward.2']
    #allocation11 [shape = 'u8[4096]{0}', space=vmem, size = 0x1000, scoped, tag = 'input window, operand 4']
    #allocation12 [shape = 'u8[262144]{0}', space=vmem, size = 0x40000, scoped, tag = 'input window, operand 5']
    #allocation13 [shape = 's32[2]{0}', space=sflag, size = 0x8, scoped, tag = 'scoped memory for reformer_res_forward.2']
    #allocation14 [shape = 'u8[4096]{0}', space=vmem, size = 0x1000, scoped, tag = 'input window, operand 6']
    #allocation15 [shape = 'u8[262144]{0}', space=vmem, size = 0x40000, scoped, tag = 'input window, operand 7']
    #allocation16 [shape = 's32[2]{0}', space=sflag, size = 0x8, scoped, tag = 'scoped memory for reformer_res_forward.2']
    #allocation17 [shape = 'u8[4096]{0}', space=vmem, size = 0x1000, scoped, tag = 'input window, operand 8']
    #allocation18 [shape = 'u8[65536]{0}', space=vmem, size = 0x10000, scoped, tag = 'input window, operand 9']
    #allocation19 [shape = 's32[2]{0}', space=sflag, size = 0x8, scoped, tag = 'scoped memory for reformer_res_forward.2']
    #allocation20 [shape = 'u8[1024]{0}', space=vmem, size = 0x400, scoped, tag = 'input window, operand 10']
    #allocation21 [shape = 'u8[1024]{0}', space=vmem, size = 0x400, scoped, tag = 'input window, operand 11']
    #allocation22 [shape = 's32[2]{0}', space=sflag, size = 0x8, scoped, tag = 'scoped memory for reformer_res_forward.2']
    #allocation23 [shape = 'u8[1024]{0}', space=vmem, size = 0x400, scoped, tag = 'input window, operand 12']
    #allocation24 [shape = 'u8[131072]{0}', space=vmem, size = 0x20000, scoped, tag = 'input window, operand 13']
    #allocation25 [shape = 's32[2]{0}', space=sflag, size = 0x8, scoped, tag = 'scoped memory for reformer_res_forward.2']
    #allocation26 [shape = 'u8[2048]{0}', space=vmem, size = 0x800, scoped, tag = 'input window, operand 14']
    #allocation27 [shape = 'u8[131072]{0}', space=vmem, size = 0x20000, scoped, tag = 'input window, operand 15']
    #allocation28 [shape = 's32[2]{0}', space=sflag, size = 0x8, scoped, tag = 'scoped memory for reformer_res_forward.2']
    #allocation29 [shape = 'u8[1024]{0}', space=vmem, size = 0x400, scoped, tag = 'input window, operand 16']
    #allocation30 [shape = 'u8[16384]{0}', space=vmem, size = 0x4000, scoped, tag = 'output window, operand 0']
    %22 = vsyncpa [#allocation4], 0
    %s23 = scalar_lea.sflag [#allocation4], 1
    %24 = vsyncpa %s23, 0
    %25 = vsyncpa [#allocation7], 0
    %s26 = scalar_lea.sflag [#allocation7], 1
    %27 = vsyncpa %s26, 0
    %28 = vsyncpa [#allocation10], 0
    %s29 = scalar_lea.sflag [#allocation10], 1
    %30 = vsyncpa %s29, 0
    %31 = vsyncpa [#allocation13], 0
    %s32 = scalar_lea.sflag [#allocation13], 1
    %33 = vsyncpa %s32, 0
    %34 = vsyncpa [#allocation16], 0
    %s35 = scalar_lea.sflag [#allocation16], 1
    %36 = vsyncpa %s35, 0
    %37 = vsyncpa [#allocation19], 0
    %s38 = scalar_lea.sflag [#allocation19], 1
    %39 = vsyncpa %s38, 0
    %40 = vsyncpa [#allocation22], 0
    %s41 = scalar_lea.sflag [#allocation22], 1
    %42 = vsyncpa %s41, 0
    %43 = vsyncpa [#allocation25], 0
    %s44 = scalar_lea.sflag [#allocation25], 1
    %45 = vsyncpa %s44, 0
    %46 = vsyncpa [#allocation28], 0
    %s47 = scalar_lea.sflag [#allocation28], 1
    %48 = vsyncpa %s47, 0
    %49 = vsyncpa [#allocation5], 0
    %s50 = scalar_lea.sflag [#allocation5], 1
    %51 = vsyncpa %s50, 0
    loop: start=0, step=1, limit=6
    $region2: #{reformer_res_forward.2} parent=1 // loop_pre_header
      _
    $region3: #{reformer_res_forward.2} parent=1 // loop_header
      %s53 = sphi 0, %s57
      %p54 = scmp.ge.s32.totalorder %s53, 6
      %s60 = sphi 0, %s72
      %s61 = sphi 0, %s68
      %s62 = sphi 0, %s60
      %s63 = sphi 0, %s61
      %s64 = sphi 0, %s62
      %s65 = sphi 0, %s63
      %s75 = sphi 0, %s77
      %s78 = sphi 0, %s75
      %s79 = sphi 0, %s78
      %s95 = sphi 0, %s79
      %s101 = sphi 0, %s103
      %s104 = sphi 0, %s101
      %s105 = sphi 0, %s104
      %s121 = sphi 0, %s105
      %s127 = sphi 0, %s129
      %s130 = sphi 0, %s127
      %s131 = sphi 0, %s130
      %s147 = sphi 0, %s131
      %s153 = sphi 0, %s155
      %s156 = sphi 0, %s153
      %s157 = sphi 0, %s156
      %s173 = sphi 0, %s157
      %s179 = sphi 0, %s181
      %s182 = sphi 0, %s179
      %s183 = sphi 0, %s182
      %s199 = sphi 0, %s183
      %s205 = sphi 0, %s207
      %s208 = sphi 0, %s205
      %s209 = sphi 0, %s208
      %s225 = sphi 0, %s209
      %s231 = sphi 0, %s233
      %s234 = sphi 0, %s231
      %s235 = sphi 0, %s234
      %s251 = sphi 0, %s235
      %s257 = sphi 0, %s259
      %s260 = sphi 0, %s257
      %s261 = sphi 0, %s260
      %s277 = sphi 0, %s261
      %s283 = sphi 0, %s285
      %s286 = sphi 0, %s283
      %s287 = sphi 0, %s286
      %s303 = sphi 0, %s287
      %s309 = sphi 0, %s311
      %s312 = sphi 0, %s309
      %s313 = sphi 0, %s312
      %s329 = sphi 0, %s313
      %s335 = sphi 0, %s337
      %s338 = sphi 0, %s335
      %s339 = sphi 0, %s338
      %s355 = sphi 0, %s339
      %s361 = sphi 0, %s363
      %s364 = sphi 0, %s361
      %s365 = sphi 0, %s364
      %s381 = sphi 0, %s365
      %s387 = sphi 0, %s389
      %s390 = sphi 0, %s387
      %s391 = sphi 0, %s390
      %s407 = sphi 0, %s391
      %s413 = sphi 0, %s415
      %s416 = sphi 0, %s413
      %s417 = sphi 0, %s416
      %s433 = sphi 0, %s417
      %s439 = sphi 0, %s441
      %s442 = sphi 0, %s439
      %s443 = sphi 0, %s442
      %s459 = sphi 0, %s443
      %s465 = sphi 0, %s467
      %s468 = sphi 0, %s465
      %s469 = sphi 0, %s468
      %s485 = sphi 0, %s469
      %s491 = sphi 0, %s493
      %s494 = sphi 0, %s491
      %s495 = sphi 0, %s494
      %s511 = sphi 0, %s495
      %s517 = sphi 0, %s519
      %s520 = sphi 0, %s517
      %s521 = sphi 0, %s520
      %s537 = sphi 0, %s521
    $region4: #{reformer_res_forward.2} parent=1 // loop_header_branch
      %56 = sbr.rel (%p54) target = $region8
    $region5: #{reformer_res_forward.2} parent=1 // loop_body
      %s58 = ssub.s32 %s53, 1
      %s59 = ssub.s32 %s53, 2
      %s66 = sadd.s32 1, %s61
      %p67 = scmp.ge.s32.totalorder %s66, 2
      %s68 = scalar_select %p67, 0, %s66
      %s69 = sadd.s32 1, %s60
      %s70 = scalar_select %p67, %s69, %s60
      %p71 = scmp.ge.s32.totalorder %s70, 2
      %s72 = scalar_select %p71, 0, %s70
      %s73 = ssub.s32 %s60, %s72
      %p74 = scmp.eq.s32.totalorder %s73, 0
      %s76 = sadd.s32 %s75, 1
      %s77 = scalar_select %p74, %s75, %s76
      %p80 = pneg %p74
      %p81 = scmp.eq.s32.totalorder %s53, 3
      %p82 = por %p80, %p81
      %p83 = scmp.ne.s32.totalorder %s75, %s78
      %p84 = scmp.eq.s32.totalorder %s53, 0
      %p85 = por %p83, %p84
      %p86 = scmp.ne.s32.totalorder %s75, %s78
      %p87 = scmp.eq.s32.totalorder %s58, 3
      %p88 = por %p86, %p87
      %p89 = scmp.ne.s32.totalorder %s78, %s79
      %p90 = scmp.eq.s32.totalorder %s58, 0
      %p91 = por %p89, %p90
      %p92 = scmp.ne.s32.totalorder %s78, %s79
      %p93 = scmp.eq.s32.totalorder %s59, 3
      %p94 = por %p92, %p93
      %p96 = scmp.ne.s32.totalorder %s79, %s95
      %p97 = scmp.eq.s32.totalorder %s59, 0
      %p98 = por %p96, %p97
      %s99 = ssub.s32 %s61, %s68
      %p100 = scmp.eq.s32.totalorder %s99, 0
      %s102 = sadd.s32 %s101, 1
      %s103 = scalar_select %p100, %s101, %s102
      %p106 = pneg %p100
      %p107 = scmp.eq.s32.totalorder %s53, 3
      %p108 = por %p106, %p107
      %p109 = scmp.ne.s32.totalorder %s101, %s104
      %p110 = scmp.eq.s32.totalorder %s53, 0
      %p111 = por %p109, %p110
      %p112 = scmp.ne.s32.totalorder %s101, %s104
      %p113 = scmp.eq.s32.totalorder %s58, 3
      %p114 = por %p112, %p113
      %p115 = scmp.ne.s32.totalorder %s104, %s105
      %p116 = scmp.eq.s32.totalorder %s58, 0
      %p117 = por %p115, %p116
      %p118 = scmp.ne.s32.totalorder %s104, %s105
      %p119 = scmp.eq.s32.totalorder %s59, 3
      %p120 = por %p118, %p119
      %p122 = scmp.ne.s32.totalorder %s105, %s121
      %p123 = scmp.eq.s32.totalorder %s59, 0
      %p124 = por %p122, %p123
      %s125 = ssub.s32 %s61, %s68
      %p126 = scmp.eq.s32.totalorder %s125, 0
      %s128 = sadd.s32 %s127, 1
      %s129 = scalar_select %p126, %s127, %s128
      %p132 = pneg %p126
      %p133 = scmp.eq.s32.totalorder %s53, 3
      %p134 = por %p132, %p133
      %p135 = scmp.ne.s32.totalorder %s127, %s130
      %p136 = scmp.eq.s32.totalorder %s53, 0
      %p137 = por %p135, %p136
      %p138 = scmp.ne.s32.totalorder %s127, %s130
      %p139 = scmp.eq.s32.totalorder %s58, 3
      %p140 = por %p138, %p139
      %p141 = scmp.ne.s32.totalorder %s130, %s131
      %p142 = scmp.eq.s32.totalorder %s58, 0
      %p143 = por %p141, %p142
      %p144 = scmp.ne.s32.totalorder %s130, %s131
      %p145 = scmp.eq.s32.totalorder %s59, 3
      %p146 = por %p144, %p145
      %p148 = scmp.ne.s32.totalorder %s131, %s147
      %p149 = scmp.eq.s32.totalorder %s59, 0
      %p150 = por %p148, %p149
      %s151 = ssub.s32 %s61, %s68
      %p152 = scmp.eq.s32.totalorder %s151, 0
      %s154 = sadd.s32 %s153, 1
      %s155 = scalar_select %p152, %s153, %s154
      %p158 = pneg %p152
      %p159 = scmp.eq.s32.totalorder %s53, 3
      %p160 = por %p158, %p159
      %p161 = scmp.ne.s32.totalorder %s153, %s156
      %p162 = scmp.eq.s32.totalorder %s53, 0
      %p163 = por %p161, %p162
      %p164 = scmp.ne.s32.totalorder %s153, %s156
      %p165 = scmp.eq.s32.totalorder %s58, 3
      %p166 = por %p164, %p165
      %p167 = scmp.ne.s32.totalorder %s156, %s157
      %p168 = scmp.eq.s32.totalorder %s58, 0
      %p169 = por %p167, %p168
      %p170 = scmp.ne.s32.totalorder %s156, %s157
      %p171 = scmp.eq.s32.totalorder %s59, 3
      %p172 = por %p170, %p171
      %p174 = scmp.ne.s32.totalorder %s157, %s173
      %p175 = scmp.eq.s32.totalorder %s59, 0
      %p176 = por %p174, %p175
      %s177 = ssub.s32 %s61, %s68
      %p178 = scmp.eq.s32.totalorder %s177, 0
      %s180 = sadd.s32 %s179, 1
      %s181 = scalar_select %p178, %s179, %s180
      %p184 = pneg %p178
      %p185 = scmp.eq.s32.totalorder %s53, 3
      %p186 = por %p184, %p185
      %p187 = scmp.ne.s32.totalorder %s179, %s182
      %p188 = scmp.eq.s32.totalorder %s53, 0
      %p189 = por %p187, %p188
      %p190 = scmp.ne.s32.totalorder %s179, %s182
      %p191 = scmp.eq.s32.totalorder %s58, 3
      %p192 = por %p190, %p191
      %p193 = scmp.ne.s32.totalorder %s182, %s183
      %p194 = scmp.eq.s32.totalorder %s58, 0
      %p195 = por %p193, %p194
      %p196 = scmp.ne.s32.totalorder %s182, %s183
      %p197 = scmp.eq.s32.totalorder %s59, 3
      %p198 = por %p196, %p197
      %p200 = scmp.ne.s32.totalorder %s183, %s199
      %p201 = scmp.eq.s32.totalorder %s59, 0
      %p202 = por %p200, %p201
      %s203 = ssub.s32 %s61, %s68
      %p204 = scmp.eq.s32.totalorder %s203, 0
      %s206 = sadd.s32 %s205, 1
      %s207 = scalar_select %p204, %s205, %s206
      %p210 = pneg %p204
      %p211 = scmp.eq.s32.totalorder %s53, 3
      %p212 = por %p210, %p211
      %p213 = scmp.ne.s32.totalorder %s205, %s208
      %p214 = scmp.eq.s32.totalorder %s53, 0
      %p215 = por %p213, %p214
      %p216 = scmp.ne.s32.totalorder %s205, %s208
      %p217 = scmp.eq.s32.totalorder %s58, 3
      %p218 = por %p216, %p217
      %p219 = scmp.ne.s32.totalorder %s208, %s209
      %p220 = scmp.eq.s32.totalorder %s58, 0
      %p221 = por %p219, %p220
      %p222 = scmp.ne.s32.totalorder %s208, %s209
      %p223 = scmp.eq.s32.totalorder %s59, 3
      %p224 = por %p222, %p223
      %p226 = scmp.ne.s32.totalorder %s209, %s225
      %p227 = scmp.eq.s32.totalorder %s59, 0
      %p228 = por %p226, %p227
      %s229 = ssub.s32 %s61, %s68
      %p230 = scmp.eq.s32.totalorder %s229, 0
      %s232 = sadd.s32 %s231, 1
      %s233 = scalar_select %p230, %s231, %s232
      %p236 = pneg %p230
      %p237 = scmp.eq.s32.totalorder %s53, 3
      %p238 = por %p236, %p237
      %p239 = scmp.ne.s32.totalorder %s231, %s234
      %p240 = scmp.eq.s32.totalorder %s53, 0
      %p241 = por %p239, %p240
      %p242 = scmp.ne.s32.totalorder %s231, %s234
      %p243 = scmp.eq.s32.totalorder %s58, 3
      %p244 = por %p242, %p243
      %p245 = scmp.ne.s32.totalorder %s234, %s235
      %p246 = scmp.eq.s32.totalorder %s58, 0
      %p247 = por %p245, %p246
      %p248 = scmp.ne.s32.totalorder %s234, %s235
      %p249 = scmp.eq.s32.totalorder %s59, 3
      %p250 = por %p248, %p249
      %p252 = scmp.ne.s32.totalorder %s235, %s251
      %p253 = scmp.eq.s32.totalorder %s59, 0
      %p254 = por %p252, %p253
      %s255 = ssub.s32 %s61, %s68
      %p256 = scmp.eq.s32.totalorder %s255, 0
      %s258 = sadd.s32 %s257, 1
      %s259 = scalar_select %p256, %s257, %s258
      %p262 = pneg %p256
      %p263 = scmp.eq.s32.totalorder %s53, 3
      %p264 = por %p262, %p263
      %p265 = scmp.ne.s32.totalorder %s257, %s260
      %p266 = scmp.eq.s32.totalorder %s53, 0
      %p267 = por %p265, %p266
      %p268 = scmp.ne.s32.totalorder %s257, %s260
      %p269 = scmp.eq.s32.totalorder %s58, 3
      %p270 = por %p268, %p269
      %p271 = scmp.ne.s32.totalorder %s260, %s261
      %p272 = scmp.eq.s32.totalorder %s58, 0
      %p273 = por %p271, %p272
      %p274 = scmp.ne.s32.totalorder %s260, %s261
      %p275 = scmp.eq.s32.totalorder %s59, 3
      %p276 = por %p274, %p275
      %p278 = scmp.ne.s32.totalorder %s261, %s277
      %p279 = scmp.eq.s32.totalorder %s59, 0
      %p280 = por %p278, %p279
      %s281 = ssub.s32 %s61, %s68
      %p282 = scmp.eq.s32.totalorder %s281, 0
      %s284 = sadd.s32 %s283, 1
      %s285 = scalar_select %p282, %s283, %s284
      %p288 = pneg %p282
      %p289 = scmp.eq.s32.totalorder %s53, 3
      %p290 = por %p288, %p289
      %p291 = scmp.ne.s32.totalorder %s283, %s286
      %p292 = scmp.eq.s32.totalorder %s53, 0
      %p293 = por %p291, %p292
      %p294 = scmp.ne.s32.totalorder %s283, %s286
      %p295 = scmp.eq.s32.totalorder %s58, 3
      %p296 = por %p294, %p295
      %p297 = scmp.ne.s32.totalorder %s286, %s287
      %p298 = scmp.eq.s32.totalorder %s58, 0
      %p299 = por %p297, %p298
      %p300 = scmp.ne.s32.totalorder %s286, %s287
      %p301 = scmp.eq.s32.totalorder %s59, 3
      %p302 = por %p300, %p301
      %p304 = scmp.ne.s32.totalorder %s287, %s303
      %p305 = scmp.eq.s32.totalorder %s59, 0
      %p306 = por %p304, %p305
      %s307 = ssub.s32 %s61, %s68
      %p308 = scmp.eq.s32.totalorder %s307, 0
      %s310 = sadd.s32 %s309, 1
      %s311 = scalar_select %p308, %s309, %s310
      %p314 = pneg %p308
      %p315 = scmp.eq.s32.totalorder %s53, 3
      %p316 = por %p314, %p315
      %p317 = scmp.ne.s32.totalorder %s309, %s312
      %p318 = scmp.eq.s32.totalorder %s53, 0
      %p319 = por %p317, %p318
      %p320 = scmp.ne.s32.totalorder %s309, %s312
      %p321 = scmp.eq.s32.totalorder %s58, 3
      %p322 = por %p320, %p321
      %p323 = scmp.ne.s32.totalorder %s312, %s313
      %p324 = scmp.eq.s32.totalorder %s58, 0
      %p325 = por %p323, %p324
      %p326 = scmp.ne.s32.totalorder %s312, %s313
      %p327 = scmp.eq.s32.totalorder %s59, 3
      %p328 = por %p326, %p327
      %p330 = scmp.ne.s32.totalorder %s313, %s329
      %p331 = scmp.eq.s32.totalorder %s59, 0
      %p332 = por %p330, %p331
      %s333 = ssub.s32 %s61, %s68
      %p334 = scmp.eq.s32.totalorder %s333, 0
      %s336 = sadd.s32 %s335, 1
      %s337 = scalar_select %p334, %s335, %s336
      %p340 = pneg %p334
      %p341 = scmp.eq.s32.totalorder %s53, 3
      %p342 = por %p340, %p341
      %p343 = scmp.ne.s32.totalorder %s335, %s338
      %p344 = scmp.eq.s32.totalorder %s53, 0
      %p345 = por %p343, %p344
      %p346 = scmp.ne.s32.totalorder %s335, %s338
      %p347 = scmp.eq.s32.totalorder %s58, 3
      %p348 = por %p346, %p347
      %p349 = scmp.ne.s32.totalorder %s338, %s339
      %p350 = scmp.eq.s32.totalorder %s58, 0
      %p351 = por %p349, %p350
      %p352 = scmp.ne.s32.totalorder %s338, %s339
      %p353 = scmp.eq.s32.totalorder %s59, 3
      %p354 = por %p352, %p353
      %p356 = scmp.ne.s32.totalorder %s339, %s355
      %p357 = scmp.eq.s32.totalorder %s59, 0
      %p358 = por %p356, %p357
      %s359 = ssub.s32 %s61, %s68
      %p360 = scmp.eq.s32.totalorder %s359, 0
      %s362 = sadd.s32 %s361, 1
      %s363 = scalar_select %p360, %s361, %s362
      %p366 = pneg %p360
      %p367 = scmp.eq.s32.totalorder %s53, 3
      %p368 = por %p366, %p367
      %p369 = scmp.ne.s32.totalorder %s361, %s364
      %p370 = scmp.eq.s32.totalorder %s53, 0
      %p371 = por %p369, %p370
      %p372 = scmp.ne.s32.totalorder %s361, %s364
      %p373 = scmp.eq.s32.totalorder %s58, 3
      %p374 = por %p372, %p373
      %p375 = scmp.ne.s32.totalorder %s364, %s365
      %p376 = scmp.eq.s32.totalorder %s58, 0
      %p377 = por %p375, %p376
      %p378 = scmp.ne.s32.totalorder %s364, %s365
      %p379 = scmp.eq.s32.totalorder %s59, 3
      %p380 = por %p378, %p379
      %p382 = scmp.ne.s32.totalorder %s365, %s381
      %p383 = scmp.eq.s32.totalorder %s59, 0
      %p384 = por %p382, %p383
      %s385 = ssub.s32 %s61, %s68
      %p386 = scmp.eq.s32.totalorder %s385, 0
      %s388 = sadd.s32 %s387, 1
      %s389 = scalar_select %p386, %s387, %s388
      %p392 = pneg %p386
      %p393 = scmp.eq.s32.totalorder %s53, 3
      %p394 = por %p392, %p393
      %p395 = scmp.ne.s32.totalorder %s387, %s390
      %p396 = scmp.eq.s32.totalorder %s53, 0
      %p397 = por %p395, %p396
      %p398 = scmp.ne.s32.totalorder %s387, %s390
      %p399 = scmp.eq.s32.totalorder %s58, 3
      %p400 = por %p398, %p399
      %p401 = scmp.ne.s32.totalorder %s390, %s391
      %p402 = scmp.eq.s32.totalorder %s58, 0
      %p403 = por %p401, %p402
      %p404 = scmp.ne.s32.totalorder %s390, %s391
      %p405 = scmp.eq.s32.totalorder %s59, 3
      %p406 = por %p404, %p405
      %p408 = scmp.ne.s32.totalorder %s391, %s407
      %p409 = scmp.eq.s32.totalorder %s59, 0
      %p410 = por %p408, %p409
      %s411 = ssub.s32 %s61, %s68
      %p412 = scmp.eq.s32.totalorder %s411, 0
      %s414 = sadd.s32 %s413, 1
      %s415 = scalar_select %p412, %s413, %s414
      %p418 = pneg %p412
      %p419 = scmp.eq.s32.totalorder %s53, 3
      %p420 = por %p418, %p419
      %p421 = scmp.ne.s32.totalorder %s413, %s416
      %p422 = scmp.eq.s32.totalorder %s53, 0
      %p423 = por %p421, %p422
      %p424 = scmp.ne.s32.totalorder %s413, %s416
      %p425 = scmp.eq.s32.totalorder %s58, 3
      %p426 = por %p424, %p425
      %p427 = scmp.ne.s32.totalorder %s416, %s417
      %p428 = scmp.eq.s32.totalorder %s58, 0
      %p429 = por %p427, %p428
      %p430 = scmp.ne.s32.totalorder %s416, %s417
      %p431 = scmp.eq.s32.totalorder %s59, 3
      %p432 = por %p430, %p431
      %p434 = scmp.ne.s32.totalorder %s417, %s433
      %p435 = scmp.eq.s32.totalorder %s59, 0
      %p436 = por %p434, %p435
      %s437 = ssub.s32 %s61, %s68
      %p438 = scmp.eq.s32.totalorder %s437, 0
      %s440 = sadd.s32 %s439, 1
      %s441 = scalar_select %p438, %s439, %s440
      %p444 = pneg %p438
      %p445 = scmp.eq.s32.totalorder %s53, 3
      %p446 = por %p444, %p445
      %p447 = scmp.ne.s32.totalorder %s439, %s442
      %p448 = scmp.eq.s32.totalorder %s53, 0
      %p449 = por %p447, %p448
      %p450 = scmp.ne.s32.totalorder %s439, %s442
      %p451 = scmp.eq.s32.totalorder %s58, 3
      %p452 = por %p450, %p451
      %p453 = scmp.ne.s32.totalorder %s442, %s443
      %p454 = scmp.eq.s32.totalorder %s58, 0
      %p455 = por %p453, %p454
      %p456 = scmp.ne.s32.totalorder %s442, %s443
      %p457 = scmp.eq.s32.totalorder %s59, 3
      %p458 = por %p456, %p457
      %p460 = scmp.ne.s32.totalorder %s443, %s459
      %p461 = scmp.eq.s32.totalorder %s59, 0
      %p462 = por %p460, %p461
      %s463 = ssub.s32 %s61, %s68
      %p464 = scmp.eq.s32.totalorder %s463, 0
      %s466 = sadd.s32 %s465, 1
      %s467 = scalar_select %p464, %s465, %s466
      %p470 = pneg %p464
      %p471 = scmp.eq.s32.totalorder %s53, 3
      %p472 = por %p470, %p471
      %p473 = scmp.ne.s32.totalorder %s465, %s468
      %p474 = scmp.eq.s32.totalorder %s53, 0
      %p475 = por %p473, %p474
      %p476 = scmp.ne.s32.totalorder %s465, %s468
      %p477 = scmp.eq.s32.totalorder %s58, 3
      %p478 = por %p476, %p477
      %p479 = scmp.ne.s32.totalorder %s468, %s469
      %p480 = scmp.eq.s32.totalorder %s58, 0
      %p481 = por %p479, %p480
      %p482 = scmp.ne.s32.totalorder %s468, %s469
      %p483 = scmp.eq.s32.totalorder %s59, 3
      %p484 = por %p482, %p483
      %p486 = scmp.ne.s32.totalorder %s469, %s485
      %p487 = scmp.eq.s32.totalorder %s59, 0
      %p488 = por %p486, %p487
      %s489 = ssub.s32 %s61, %s68
      %p490 = scmp.eq.s32.totalorder %s489, 0
      %s492 = sadd.s32 %s491, 1
      %s493 = scalar_select %p490, %s491, %s492
      %p496 = pneg %p490
      %p497 = scmp.eq.s32.totalorder %s53, 3
      %p498 = por %p496, %p497
      %p499 = scmp.ne.s32.totalorder %s491, %s494
      %p500 = scmp.eq.s32.totalorder %s53, 0
      %p501 = por %p499, %p500
      %p502 = scmp.ne.s32.totalorder %s491, %s494
      %p503 = scmp.eq.s32.totalorder %s58, 3
      %p504 = por %p502, %p503
      %p505 = scmp.ne.s32.totalorder %s494, %s495
      %p506 = scmp.eq.s32.totalorder %s58, 0
      %p507 = por %p505, %p506
      %p508 = scmp.ne.s32.totalorder %s494, %s495
      %p509 = scmp.eq.s32.totalorder %s59, 3
      %p510 = por %p508, %p509
      %p512 = scmp.ne.s32.totalorder %s495, %s511
      %p513 = scmp.eq.s32.totalorder %s59, 0
      %p514 = por %p512, %p513
      %s515 = ssub.s32 %s60, %s72
      %p516 = scmp.eq.s32.totalorder %s515, 0
      %s518 = sadd.s32 %s517, 1
      %s519 = scalar_select %p516, %s517, %s518
      %p522 = pneg %p516
      %p523 = scmp.eq.s32.totalorder %s53, 3
      %p524 = por %p522, %p523
      %p525 = scmp.ne.s32.totalorder %s517, %s520
      %p526 = scmp.eq.s32.totalorder %s53, 0
      %p527 = por %p525, %p526
      %p528 = scmp.ne.s32.totalorder %s517, %s520
      %p529 = scmp.eq.s32.totalorder %s58, 3
      %p530 = por %p528, %p529
      %p531 = scmp.ne.s32.totalorder %s520, %s521
      %p532 = scmp.eq.s32.totalorder %s58, 0
      %p533 = por %p531, %p532
      %p534 = scmp.ne.s32.totalorder %s520, %s521
      %p535 = scmp.eq.s32.totalorder %s59, 3
      %p536 = por %p534, %p535
      %p538 = scmp.ne.s32.totalorder %s521, %s537
      %p539 = scmp.eq.s32.totalorder %s59, 0
      %p540 = por %p538, %p539
      %p541 = scmp.le.s32.totalorder 1, %s53
      %p542 = scmp.lt.s32.totalorder %s53, 5
      %p543 = pnand %p541, %p542
      %p544 = pneg %p543
      // Predicated region
      $region9: #{reformer_res_forward.2} parent=5 // pred_check
        _
      $region10: #{reformer_res_forward.2} parent=5 // pred_check_branch
        %546 = sbr.rel (%p543) target = $region12
      $region11: #{reformer_res_forward.2} parent=5 // pred_region
        %s547 = ssub.s32 %s53, 1
      $region12: #{reformer_res_forward.2} parent=5 // pred_fallthru
        _
      %p548 = scmp.lt.s32.totalorder %s53, 4
      // Predicated region
      $region13: #{reformer_res_forward.2} parent=5 // pred_check
        %p549 = pneg %p548
      $region14: #{reformer_res_forward.2} parent=5 // pred_check_branch
        %551 = sbr.rel (%p549) target = $region16
      $region15: #{reformer_res_forward.2} parent=5 // pred_region
        // Predicated region
        $region17: #{reformer_res_forward.2} parent=15 // pred_check
          %p552 = pneg %p85
        $region18: #{reformer_res_forward.2} parent=15 // pred_check_branch
          %554 = sbr.rel (%p552) target = $region20
        $region19: #{reformer_res_forward.2} parent=15 // pred_region
          %s555 = sand.u32 %s75, 1
          %s556 = scalar_lea.sflag [#allocation4], %s555
          %s557 = sand.u32 %s75, 1
          %s558 = smul.addr %s557, 16
          %s559 = scalar_lea.vmem [#allocation3], %s558
          %s561 = ssub.s32 256, 256
          %562 = vsyncadd %s556, %s561
          %s563 = smul.addr %s60, 2
          %s564 = smul.addr %s563, 128
          %s565 = scalar_lea.hbm %s0, %s564
          %s566 = sshll.u32 %s559, 4
          %s567 = int_to_ptr.vmem [resolvable:$true] %s566
          %572 = dma.hbm_to_vmem [thread:$0]  %s565, 256, %s567, %s556, 128, 128, 8
        $region20: #{reformer_res_forward.2} parent=15 // pred_fallthru
          _
        // Predicated region
        $region21: #{reformer_res_forward.2} parent=15 // pred_check
          %p573 = pneg %p111
        $region22: #{reformer_res_forward.2} parent=15 // pred_check_branch
          %575 = sbr.rel (%p573) target = $region24
        $region23: #{reformer_res_forward.2} parent=15 // pred_region
          %s576 = sand.u32 %s53, 1
          %s577 = scalar_lea.sflag [#allocation7], %s576
          %s578 = sand.u32 %s101, 1
          %s579 = scalar_lea.vmem [#allocation6], %s578
          %s581 = ssub.s32 16, 16
          %582 = vsyncadd %s577, %s581
          %s583 = smul.addr %s61, 16
          %s584 = scalar_lea.hbm %s1, %s583
          %s586 = sshll.u32 %s579, 4
          %s587 = int_to_ptr.vmem [resolvable:$true] %s586
          %589 = dma.hbm_to_vmem [thread:$0]  %s584, 16, %s587, %s577
        $region24: #{reformer_res_forward.2} parent=15 // pred_fallthru
          _
        // Predicated region
        $region25: #{reformer_res_forward.2} parent=15 // pred_check
          %p590 = pneg %p137
        $region26: #{reformer_res_forward.2} parent=15 // pred_check_branch
          %592 = sbr.rel (%p590) target = $region28
        $region27: #{reformer_res_forward.2} parent=15 // pred_region
          %s593 = sand.u32 %s53, 1
          %s594 = scalar_lea.sflag [#allocation7], %s593
          %s595 = sand.u32 %s127, 1
          %s596 = scalar_lea.vmem [#allocation8], %s595
          %s598 = ssub.s32 16, 16
          %599 = vsyncadd %s594, %s598
          %s600 = smul.addr %s61, 16
          %s601 = scalar_lea.hbm %s2, %s600
          %s603 = sshll.u32 %s596, 4
          %s604 = int_to_ptr.vmem [resolvable:$true] %s603
          %606 = dma.hbm_to_vmem [thread:$0]  %s601, 16, %s604, %s594
        $region28: #{reformer_res_forward.2} parent=15 // pred_fallthru
          _
        // Predicated region
        $region29: #{reformer_res_forward.2} parent=15 // pred_check
          %p607 = pneg %p163
        $region30: #{reformer_res_forward.2} parent=15 // pred_check_branch
          %609 = sbr.rel (%p607) target = $region32
        $region31: #{reformer_res_forward.2} parent=15 // pred_region
          %s610 = sand.u32 %s53, 1
          %s611 = scalar_lea.sflag [#allocation10], %s610
          %s612 = sand.u32 %s153, 1
          %s613 = smul.addr %s612, 256
          %s614 = scalar_lea.vmem [#allocation9], %s613
          %s616 = ssub.s32 4096, 4096
          %617 = vsyncadd %s611, %s616
          %s618 = smul.addr %s61, 64
          %s619 = smul.addr %s618, 64
          %s620 = scalar_lea.hbm %s3, %s619
          %s621 = sshll.u32 %s614, 4
          %s622 = int_to_ptr.vmem [resolvable:$true] %s621
          %627 = dma.hbm_to_vmem [thread:$0]  %s620, 4096, %s622, %s611, 64, 64, 4
        $region32: #{reformer_res_forward.2} parent=15 // pred_fallthru
          _
        // Predicated region
        $region33: #{reformer_res_forward.2} parent=15 // pred_check
          %p628 = pneg %p189
        $region34: #{reformer_res_forward.2} parent=15 // pred_check_branch
          %630 = sbr.rel (%p628) target = $region36
        $region35: #{reformer_res_forward.2} parent=15 // pred_region
          %s631 = sand.u32 %s53, 1
          %s632 = scalar_lea.sflag [#allocation10], %s631
          %s633 = sand.u32 %s179, 1
          %s634 = smul.addr %s633, 4
          %s635 = scalar_lea.vmem [#allocation11], %s634
          %s637 = ssub.s32 64, 64
          %638 = vsyncadd %s632, %s637
          %s639 = smul.addr %s61, 4
          %s640 = smul.addr %s639, 16
          %s641 = scalar_lea.hbm %s4, %s640
          %s642 = sshll.u32 %s635, 4
          %s643 = int_to_ptr.vmem [resolvable:$true] %s642
          %648 = dma.hbm_to_vmem [thread:$0]  %s641, 64, %s643, %s632, 16, 16, 1
        $region36: #{reformer_res_forward.2} parent=15 // pred_fallthru
          _
        // Predicated region
        $region37: #{reformer_res_forward.2} parent=15 // pred_check
          %p649 = pneg %p215
        $region38: #{reformer_res_forward.2} parent=15 // pred_check_branch
          %651 = sbr.rel (%p649) target = $region40
        $region39: #{reformer_res_forward.2} parent=15 // pred_region
          %s652 = sand.u32 %s53, 1
          %s653 = scalar_lea.sflag [#allocation13], %s652
          %s654 = sand.u32 %s205, 1
          %s655 = smul.addr %s654, 256
          %s656 = scalar_lea.vmem [#allocation12], %s655
          %s658 = ssub.s32 4096, 4096
          %659 = vsyncadd %s653, %s658
          %s660 = smul.addr %s61, 64
          %s661 = smul.addr %s660, 64
          %s662 = scalar_lea.hbm %s5, %s661
          %s663 = sshll.u32 %s656, 4
          %s664 = int_to_ptr.vmem [resolvable:$true] %s663
          %669 = dma.hbm_to_vmem [thread:$0]  %s662, 4096, %s664, %s653, 64, 64, 4
        $region40: #{reformer_res_forward.2} parent=15 // pred_fallthru
          _
        // Predicated region
        $region41: #{reformer_res_forward.2} parent=15 // pred_check
          %p670 = pneg %p241
        $region42: #{reformer_res_forward.2} parent=15 // pred_check_branch
          %672 = sbr.rel (%p670) target = $region44
        $region43: #{reformer_res_forward.2} parent=15 // pred_region
          %s673 = sand.u32 %s53, 1
          %s674 = scalar_lea.sflag [#allocation13], %s673
          %s675 = sand.u32 %s231, 1
          %s676 = smul.addr %s675, 4
          %s677 = scalar_lea.vmem [#allocation14], %s676
          %s679 = ssub.s32 64, 64
          %680 = vsyncadd %s674, %s679
          %s681 = smul.addr %s61, 4
          %s682 = smul.addr %s681, 16
          %s683 = scalar_lea.hbm %s6, %s682
          %s684 = sshll.u32 %s677, 4
          %s685 = int_to_ptr.vmem [resolvable:$true] %s684
          %690 = dma.hbm_to_vmem [thread:$0]  %s683, 64, %s685, %s674, 16, 16, 1
        $region44: #{reformer_res_forward.2} parent=15 // pred_fallthru
          _
        // Predicated region
        $region45: #{reformer_res_forward.2} parent=15 // pred_check
          %p691 = pneg %p267
        $region46: #{reformer_res_forward.2} parent=15 // pred_check_branch
          %693 = sbr.rel (%p691) target = $region48
        $region47: #{reformer_res_forward.2} parent=15 // pred_region
          %s694 = sand.u32 %s53, 1
          %s695 = scalar_lea.sflag [#allocation16], %s694
          %s696 = sand.u32 %s257, 1
          %s697 = smul.addr %s696, 256
          %s698 = scalar_lea.vmem [#allocation15], %s697
          %s700 = ssub.s32 4096, 4096
          %701 = vsyncadd %s695, %s700
          %s702 = smul.addr %s61, 64
          %s703 = smul.addr %s702, 64
          %s704 = scalar_lea.hbm %s7, %s703
          %s705 = sshll.u32 %s698, 4
          %s706 = int_to_ptr.vmem [resolvable:$true] %s705
          %711 = dma.hbm_to_vmem [thread:$0]  %s704, 4096, %s706, %s695, 64, 64, 4
        $region48: #{reformer_res_forward.2} parent=15 // pred_fallthru
          _
        // Predicated region
        $region49: #{reformer_res_forward.2} parent=15 // pred_check
          %p712 = pneg %p293
        $region50: #{reformer_res_forward.2} parent=15 // pred_check_branch
          %714 = sbr.rel (%p712) target = $region52
        $region51: #{reformer_res_forward.2} parent=15 // pred_region
          %s715 = sand.u32 %s53, 1
          %s716 = scalar_lea.sflag [#allocation16], %s715
          %s717 = sand.u32 %s283, 1
          %s718 = smul.addr %s717, 4
          %s719 = scalar_lea.vmem [#allocation17], %s718
          %s721 = ssub.s32 64, 64
          %722 = vsyncadd %s716, %s721
          %s723 = smul.addr %s61, 4
          %s724 = smul.addr %s723, 16
          %s725 = scalar_lea.hbm %s8, %s724
          %s726 = sshll.u32 %s719, 4
          %s727 = int_to_ptr.vmem [resolvable:$true] %s726
          %732 = dma.hbm_to_vmem [thread:$0]  %s725, 64, %s727, %s716, 16, 16, 1
        $region52: #{reformer_res_forward.2} parent=15 // pred_fallthru
          _
        // Predicated region
        $region53: #{reformer_res_forward.2} parent=15 // pred_check
          %p733 = pneg %p319
        $region54: #{reformer_res_forward.2} parent=15 // pred_check_branch
          %735 = sbr.rel (%p733) target = $region56
        $region55: #{reformer_res_forward.2} parent=15 // pred_region
          %s736 = sand.u32 %s53, 1
          %s737 = scalar_lea.sflag [#allocation19], %s736
          %s738 = sand.u32 %s309, 1
          %s739 = smul.addr %s738, 64
          %s740 = scalar_lea.vmem [#allocation18], %s739
          %s742 = ssub.s32 1024, 1024
          %743 = vsyncadd %s737, %s742
          %s744 = smul.addr %s61, 16
          %s745 = smul.addr %s744, 64
          %s746 = scalar_lea.hbm %s9, %s745
          %s747 = sshll.u32 %s740, 4
          %s748 = int_to_ptr.vmem [resolvable:$true] %s747
          %753 = dma.hbm_to_vmem [thread:$0]  %s746, 1024, %s748, %s737, 64, 64, 4
        $region56: #{reformer_res_forward.2} parent=15 // pred_fallthru
          _
        // Predicated region
        $region57: #{reformer_res_forward.2} parent=15 // pred_check
          %p754 = pneg %p345
        $region58: #{reformer_res_forward.2} parent=15 // pred_check_branch
          %756 = sbr.rel (%p754) target = $region60
        $region59: #{reformer_res_forward.2} parent=15 // pred_region
          %s757 = sand.u32 %s53, 1
          %s758 = scalar_lea.sflag [#allocation19], %s757
          %s759 = sand.u32 %s335, 1
          %s760 = scalar_lea.vmem [#allocation20], %s759
          %s762 = ssub.s32 16, 16
          %763 = vsyncadd %s758, %s762
          %s764 = smul.addr %s61, 16
          %s765 = scalar_lea.hbm %s10, %s764
          %s767 = sshll.u32 %s760, 4
          %s768 = int_to_ptr.vmem [resolvable:$true] %s767
          %770 = dma.hbm_to_vmem [thread:$0]  %s765, 16, %s768, %s758
        $region60: #{reformer_res_forward.2} parent=15 // pred_fallthru
          _
        // Predicated region
        $region61: #{reformer_res_forward.2} parent=15 // pred_check
          %p771 = pneg %p371
        $region62: #{reformer_res_forward.2} parent=15 // pred_check_branch
          %773 = sbr.rel (%p771) target = $region64
        $region63: #{reformer_res_forward.2} parent=15 // pred_region
          %s774 = sand.u32 %s53, 1
          %s775 = scalar_lea.sflag [#allocation22], %s774
          %s776 = sand.u32 %s361, 1
          %s777 = scalar_lea.vmem [#allocation21], %s776
          %s779 = ssub.s32 16, 16
          %780 = vsyncadd %s775, %s779
          %s781 = smul.addr %s61, 16
          %s782 = scalar_lea.hbm %s11, %s781
          %s784 = sshll.u32 %s777, 4
          %s785 = int_to_ptr.vmem [resolvable:$true] %s784
          %787 = dma.hbm_to_vmem [thread:$0]  %s782, 16, %s785, %s775
        $region64: #{reformer_res_forward.2} parent=15 // pred_fallthru
          _
        // Predicated region
        $region65: #{reformer_res_forward.2} parent=15 // pred_check
          %p788 = pneg %p397
        $region66: #{reformer_res_forward.2} parent=15 // pred_check_branch
          %790 = sbr.rel (%p788) target = $region68
        $region67: #{reformer_res_forward.2} parent=15 // pred_region
          %s791 = sand.u32 %s53, 1
          %s792 = scalar_lea.sflag [#allocation22], %s791
          %s793 = sand.u32 %s387, 1
          %s794 = scalar_lea.vmem [#allocation23], %s793
          %s796 = ssub.s32 16, 16
          %797 = vsyncadd %s792, %s796
          %s798 = smul.addr %s61, 16
          %s799 = scalar_lea.hbm %s12, %s798
          %s801 = sshll.u32 %s794, 4
          %s802 = int_to_ptr.vmem [resolvable:$true] %s801
          %804 = dma.hbm_to_vmem [thread:$0]  %s799, 16, %s802, %s792
        $region68: #{reformer_res_forward.2} parent=15 // pred_fallthru
          _
        // Predicated region
        $region69: #{reformer_res_forward.2} parent=15 // pred_check
          %p805 = pneg %p423
        $region70: #{reformer_res_forward.2} parent=15 // pred_check_branch
          %807 = sbr.rel (%p805) target = $region72
        $region71: #{reformer_res_forward.2} parent=15 // pred_region
          %s808 = sand.u32 %s53, 1
          %s809 = scalar_lea.sflag [#allocation25], %s808
          %s810 = sand.u32 %s413, 1
          %s811 = smul.addr %s810, 128
          %s812 = scalar_lea.vmem [#allocation24], %s811
          %s814 = ssub.s32 2048, 2048
          %815 = vsyncadd %s809, %s814
          %s816 = smul.addr %s61, 32
          %s817 = smul.addr %s816, 64
          %s818 = scalar_lea.hbm %s13, %s817
          %s819 = sshll.u32 %s812, 4
          %s820 = int_to_ptr.vmem [resolvable:$true] %s819
          %825 = dma.hbm_to_vmem [thread:$0]  %s818, 2048, %s820, %s809, 128, 128, 8
        $region72: #{reformer_res_forward.2} parent=15 // pred_fallthru
          _
        // Predicated region
        $region73: #{reformer_res_forward.2} parent=15 // pred_check
          %p826 = pneg %p449
        $region74: #{reformer_res_forward.2} parent=15 // pred_check_branch
          %828 = sbr.rel (%p826) target = $region76
        $region75: #{reformer_res_forward.2} parent=15 // pred_region
          %s829 = sand.u32 %s53, 1
          %s830 = scalar_lea.sflag [#allocation25], %s829
          %s831 = sand.u32 %s439, 1
          %s832 = smul.addr %s831, 2
          %s833 = scalar_lea.vmem [#allocation26], %s832
          %s835 = ssub.s32 32, 32
          %836 = vsyncadd %s830, %s835
          %s837 = smul.addr %s61, 2
          %s838 = smul.addr %s837, 16
          %s839 = scalar_lea.hbm %s14, %s838
          %s841 = sshll.u32 %s833, 4
          %s842 = int_to_ptr.vmem [resolvable:$true] %s841
          %844 = dma.hbm_to_vmem [thread:$0]  %s839, 32, %s842, %s830
        $region76: #{reformer_res_forward.2} parent=15 // pred_fallthru
          _
        // Predicated region
        $region77: #{reformer_res_forward.2} parent=15 // pred_check
          %p845 = pneg %p475
        $region78: #{reformer_res_forward.2} parent=15 // pred_check_branch
          %847 = sbr.rel (%p845) target = $region80
        $region79: #{reformer_res_forward.2} parent=15 // pred_region
          %s848 = sand.u32 %s53, 1
          %s849 = scalar_lea.sflag [#allocation28], %s848
          %s850 = sand.u32 %s465, 1
          %s851 = smul.addr %s850, 128
          %s852 = scalar_lea.vmem [#allocation27], %s851
          %s854 = ssub.s32 2048, 2048
          %855 = vsyncadd %s849, %s854
          %s856 = smul.addr %s61, 32
          %s857 = smul.addr %s856, 64
          %s858 = scalar_lea.hbm %s15, %s857
          %s859 = sshll.u32 %s852, 4
          %s860 = int_to_ptr.vmem [resolvable:$true] %s859
          %865 = dma.hbm_to_vmem [thread:$0]  %s858, 2048, %s860, %s849, 64, 64, 4
        $region80: #{reformer_res_forward.2} parent=15 // pred_fallthru
          _
        // Predicated region
        $region81: #{reformer_res_forward.2} parent=15 // pred_check
          %p866 = pneg %p501
        $region82: #{reformer_res_forward.2} parent=15 // pred_check_branch
          %868 = sbr.rel (%p866) target = $region84
        $region83: #{reformer_res_forward.2} parent=15 // pred_region
          %s869 = sand.u32 %s53, 1
          %s870 = scalar_lea.sflag [#allocation28], %s869
          %s871 = sand.u32 %s491, 1
          %s872 = scalar_lea.vmem [#allocation29], %s871
          %s874 = ssub.s32 16, 16
          %875 = vsyncadd %s870, %s874
          %s876 = smul.addr %s61, 16
          %s877 = scalar_lea.hbm %s16, %s876
          %s879 = sshll.u32 %s872, 4
          %s880 = int_to_ptr.vmem [resolvable:$true] %s879
          %882 = dma.hbm_to_vmem [thread:$0]  %s877, 16, %s880, %s870
        $region84: #{reformer_res_forward.2} parent=15 // pred_fallthru
          _
      $region16: #{reformer_res_forward.2} parent=5 // pred_fallthru
        _
      %p883 = scmp.le.s32.totalorder 1, %s53
      %p884 = scmp.lt.s32.totalorder %s53, 5
      %p885 = pnand %p883, %p884
      %p886 = pneg %p885
      // Predicated region
      $region85: #{reformer_res_forward.2} parent=5 // pred_check
        _
      $region86: #{reformer_res_forward.2} parent=5 // pred_check_branch
        %888 = sbr.rel (%p885) target = $region88
      $region87: #{reformer_res_forward.2} parent=5 // pred_region
        %s889 = ssub.s32 %s53, 1
        %s890 = sand.u32 %s78, 1
        %s891 = scalar_lea.sflag [#allocation4], %s890
        %s892 = sand.u32 %s78, 1
        %s893 = smul.addr %s892, 16
        %s894 = scalar_lea.vmem [#allocation3], %s893
        // Predicated region
        $region89: #{reformer_res_forward.2} parent=87 // pred_check
          %p895 = pneg %p91
        $region90: #{reformer_res_forward.2} parent=87 // pred_check_branch
          %897 = sbr.rel (%p895) target = $region92
        $region91: #{reformer_res_forward.2} parent=87 // pred_region
          %898 = dma.done %s891, 256
        $region92: #{reformer_res_forward.2} parent=87 // pred_fallthru
          _
        %s899 = sand.u32 %s58, 1
        %s900 = scalar_lea.sflag [#allocation7], %s899
        %s901 = sand.u32 %s104, 1
        %s902 = scalar_lea.vmem [#allocation6], %s901
        // Predicated region
        $region93: #{reformer_res_forward.2} parent=87 // pred_check
          %p903 = pneg %p117
        $region94: #{reformer_res_forward.2} parent=87 // pred_check_branch
          %905 = sbr.rel (%p903) target = $region96
        $region95: #{reformer_res_forward.2} parent=87 // pred_region
          %906 = dma.done %s900, 16
        $region96: #{reformer_res_forward.2} parent=87 // pred_fallthru
          _
        %s907 = sand.u32 %s58, 1
        %s908 = scalar_lea.sflag [#allocation7], %s907
        %s909 = sand.u32 %s130, 1
        %s910 = scalar_lea.vmem [#allocation8], %s909
        // Predicated region
        $region97: #{reformer_res_forward.2} parent=87 // pred_check
          %p911 = pneg %p143
        $region98: #{reformer_res_forward.2} parent=87 // pred_check_branch
          %913 = sbr.rel (%p911) target = $region100
        $region99: #{reformer_res_forward.2} parent=87 // pred_region
          %914 = dma.done %s908, 16
        $region100: #{reformer_res_forward.2} parent=87 // pred_fallthru
          _
        %s915 = sand.u32 %s58, 1
        %s916 = scalar_lea.sflag [#allocation10], %s915
        %s917 = sand.u32 %s156, 1
        %s918 = smul.addr %s917, 256
        %s919 = scalar_lea.vmem [#allocation9], %s918
        // Predicated region
        $region101: #{reformer_res_forward.2} parent=87 // pred_check
          %p920 = pneg %p169
        $region102: #{reformer_res_forward.2} parent=87 // pred_check_branch
          %922 = sbr.rel (%p920) target = $region104
        $region103: #{reformer_res_forward.2} parent=87 // pred_region
          %923 = dma.done %s916, 4096
        $region104: #{reformer_res_forward.2} parent=87 // pred_fallthru
          _
        %s924 = sand.u32 %s58, 1
        %s925 = scalar_lea.sflag [#allocation10], %s924
        %s926 = sand.u32 %s182, 1
        %s927 = smul.addr %s926, 4
        %s928 = scalar_lea.vmem [#allocation11], %s927
        // Predicated region
        $region105: #{reformer_res_forward.2} parent=87 // pred_check
          %p929 = pneg %p195
        $region106: #{reformer_res_forward.2} parent=87 // pred_check_branch
          %931 = sbr.rel (%p929) target = $region108
        $region107: #{reformer_res_forward.2} parent=87 // pred_region
          %932 = dma.done %s925, 64
        $region108: #{reformer_res_forward.2} parent=87 // pred_fallthru
          _
        %s933 = sand.u32 %s58, 1
        %s934 = scalar_lea.sflag [#allocation13], %s933
        %s935 = sand.u32 %s208, 1
        %s936 = smul.addr %s935, 256
        %s937 = scalar_lea.vmem [#allocation12], %s936
        // Predicated region
        $region109: #{reformer_res_forward.2} parent=87 // pred_check
          %p938 = pneg %p221
        $region110: #{reformer_res_forward.2} parent=87 // pred_check_branch
          %940 = sbr.rel (%p938) target = $region112
        $region111: #{reformer_res_forward.2} parent=87 // pred_region
          %941 = dma.done %s934, 4096
        $region112: #{reformer_res_forward.2} parent=87 // pred_fallthru
          _
        %s942 = sand.u32 %s58, 1
        %s943 = scalar_lea.sflag [#allocation13], %s942
        %s944 = sand.u32 %s234, 1
        %s945 = smul.addr %s944, 4
        %s946 = scalar_lea.vmem [#allocation14], %s945
        // Predicated region
        $region113: #{reformer_res_forward.2} parent=87 // pred_check
          %p947 = pneg %p247
        $region114: #{reformer_res_forward.2} parent=87 // pred_check_branch
          %949 = sbr.rel (%p947) target = $region116
        $region115: #{reformer_res_forward.2} parent=87 // pred_region
          %950 = dma.done %s943, 64
        $region116: #{reformer_res_forward.2} parent=87 // pred_fallthru
          _
        %s951 = sand.u32 %s58, 1
        %s952 = scalar_lea.sflag [#allocation16], %s951
        %s953 = sand.u32 %s260, 1
        %s954 = smul.addr %s953, 256
        %s955 = scalar_lea.vmem [#allocation15], %s954
        // Predicated region
        $region117: #{reformer_res_forward.2} parent=87 // pred_check
          %p956 = pneg %p273
        $region118: #{reformer_res_forward.2} parent=87 // pred_check_branch
          %958 = sbr.rel (%p956) target = $region120
        $region119: #{reformer_res_forward.2} parent=87 // pred_region
          %959 = dma.done %s952, 4096
        $region120: #{reformer_res_forward.2} parent=87 // pred_fallthru
          _
        %s960 = sand.u32 %s58, 1
        %s961 = scalar_lea.sflag [#allocation16], %s960
        %s962 = sand.u32 %s286, 1
        %s963 = smul.addr %s962, 4
        %s964 = scalar_lea.vmem [#allocation17], %s963
        // Predicated region
        $region121: #{reformer_res_forward.2} parent=87 // pred_check
          %p965 = pneg %p299
        $region122: #{reformer_res_forward.2} parent=87 // pred_check_branch
          %967 = sbr.rel (%p965) target = $region124
        $region123: #{reformer_res_forward.2} parent=87 // pred_region
          %968 = dma.done %s961, 64
        $region124: #{reformer_res_forward.2} parent=87 // pred_fallthru
          _
        %s969 = sand.u32 %s58, 1
        %s970 = scalar_lea.sflag [#allocation19], %s969
        %s971 = sand.u32 %s312, 1
        %s972 = smul.addr %s971, 64
        %s973 = scalar_lea.vmem [#allocation18], %s972
        // Predicated region
        $region125: #{reformer_res_forward.2} parent=87 // pred_check
          %p974 = pneg %p325
        $region126: #{reformer_res_forward.2} parent=87 // pred_check_branch
          %976 = sbr.rel (%p974) target = $region128
        $region127: #{reformer_res_forward.2} parent=87 // pred_region
          %977 = dma.done %s970, 1024
        $region128: #{reformer_res_forward.2} parent=87 // pred_fallthru
          _
        %s978 = sand.u32 %s58, 1
        %s979 = scalar_lea.sflag [#allocation19], %s978
        %s980 = sand.u32 %s338, 1
        %s981 = scalar_lea.vmem [#allocation20], %s980
        // Predicated region
        $region129: #{reformer_res_forward.2} parent=87 // pred_check
          %p982 = pneg %p351
        $region130: #{reformer_res_forward.2} parent=87 // pred_check_branch
          %984 = sbr.rel (%p982) target = $region132
        $region131: #{reformer_res_forward.2} parent=87 // pred_region
          %985 = dma.done %s979, 16
        $region132: #{reformer_res_forward.2} parent=87 // pred_fallthru
          _
        %s986 = sand.u32 %s58, 1
        %s987 = scalar_lea.sflag [#allocation22], %s986
        %s988 = sand.u32 %s364, 1
        %s989 = scalar_lea.vmem [#allocation21], %s988
        // Predicated region
        $region133: #{reformer_res_forward.2} parent=87 // pred_check
          %p990 = pneg %p377
        $region134: #{reformer_res_forward.2} parent=87 // pred_check_branch
          %992 = sbr.rel (%p990) target = $region136
        $region135: #{reformer_res_forward.2} parent=87 // pred_region
          %993 = dma.done %s987, 16
        $region136: #{reformer_res_forward.2} parent=87 // pred_fallthru
          _
        %s994 = sand.u32 %s58, 1
        %s995 = scalar_lea.sflag [#allocation22], %s994
        %s996 = sand.u32 %s390, 1
        %s997 = scalar_lea.vmem [#allocation23], %s996
        // Predicated region
        $region137: #{reformer_res_forward.2} parent=87 // pred_check
          %p998 = pneg %p403
        $region138: #{reformer_res_forward.2} parent=87 // pred_check_branch
          %1000 = sbr.rel (%p998) target = $region140
        $region139: #{reformer_res_forward.2} parent=87 // pred_region
          %1001 = dma.done %s995, 16
        $region140: #{reformer_res_forward.2} parent=87 // pred_fallthru
          _
        %s1002 = sand.u32 %s58, 1
        %s1003 = scalar_lea.sflag [#allocation25], %s1002
        %s1004 = sand.u32 %s416, 1
        %s1005 = smul.addr %s1004, 128
        %s1006 = scalar_lea.vmem [#allocation24], %s1005
        // Predicated region
        $region141: #{reformer_res_forward.2} parent=87 // pred_check
          %p1007 = pneg %p429
        $region142: #{reformer_res_forward.2} parent=87 // pred_check_branch
          %1009 = sbr.rel (%p1007) target = $region144
        $region143: #{reformer_res_forward.2} parent=87 // pred_region
          %1010 = dma.done %s1003, 2048
        $region144: #{reformer_res_forward.2} parent=87 // pred_fallthru
          _
        %s1011 = sand.u32 %s58, 1
        %s1012 = scalar_lea.sflag [#allocation25], %s1011
        %s1013 = sand.u32 %s442, 1
        %s1014 = smul.addr %s1013, 2
        %s1015 = scalar_lea.vmem [#allocation26], %s1014
        // Predicated region
        $region145: #{reformer_res_forward.2} parent=87 // pred_check
          %p1016 = pneg %p455
        $region146: #{reformer_res_forward.2} parent=87 // pred_check_branch
          %1018 = sbr.rel (%p1016) target = $region148
        $region147: #{reformer_res_forward.2} parent=87 // pred_region
          %1019 = dma.done %s1012, 32
        $region148: #{reformer_res_forward.2} parent=87 // pred_fallthru
          _
        %s1020 = sand.u32 %s58, 1
        %s1021 = scalar_lea.sflag [#allocation28], %s1020
        %s1022 = sand.u32 %s468, 1
        %s1023 = smul.addr %s1022, 128
        %s1024 = scalar_lea.vmem [#allocation27], %s1023
        // Predicated region
        $region149: #{reformer_res_forward.2} parent=87 // pred_check
          %p1025 = pneg %p481
        $region150: #{reformer_res_forward.2} parent=87 // pred_check_branch
          %1027 = sbr.rel (%p1025) target = $region152
        $region151: #{reformer_res_forward.2} parent=87 // pred_region
          %1028 = dma.done %s1021, 2048
        $region152: #{reformer_res_forward.2} parent=87 // pred_fallthru
          _
        %s1029 = sand.u32 %s58, 1
        %s1030 = scalar_lea.sflag [#allocation28], %s1029
        %s1031 = sand.u32 %s494, 1
        %s1032 = scalar_lea.vmem [#allocation29], %s1031
        // Predicated region
        $region153: #{reformer_res_forward.2} parent=87 // pred_check
          %p1033 = pneg %p507
        $region154: #{reformer_res_forward.2} parent=87 // pred_check_branch
          %1035 = sbr.rel (%p1033) target = $region156
        $region155: #{reformer_res_forward.2} parent=87 // pred_region
          %1036 = dma.done %s1030, 16
        $region156: #{reformer_res_forward.2} parent=87 // pred_fallthru
          _
        %s1037 = sand.u32 %s78, 1
        %s1038 = scalar_lea.sflag [#allocation4], %s1037
        %s1039 = sand.u32 %s78, 1
        %s1040 = smul.addr %s1039, 16
        %s1041 = scalar_lea.vmem [#allocation3], %s1040
        %p1042 = pneg %p91
        %p1043 = pneg %p88
        %s1044 = sand.u32 %s58, 1
        %s1045 = scalar_lea.sflag [#allocation7], %s1044
        %s1046 = sand.u32 %s104, 1
        %s1047 = scalar_lea.vmem [#allocation6], %s1046
        %p1048 = pneg %p117
        %p1049 = pneg %p114
        %s1050 = sand.u32 %s58, 1
        %s1051 = scalar_lea.sflag [#allocation7], %s1050
        %s1052 = sand.u32 %s130, 1
        %s1053 = scalar_lea.vmem [#allocation8], %s1052
        %p1054 = pneg %p143
        %p1055 = pneg %p140
        %s1056 = sand.u32 %s58, 1
        %s1057 = scalar_lea.sflag [#allocation10], %s1056
        %s1058 = sand.u32 %s156, 1
        %s1059 = smul.addr %s1058, 256
        %s1060 = scalar_lea.vmem [#allocation9], %s1059
        %p1061 = pneg %p169
        %p1062 = pneg %p166
        %s1063 = sand.u32 %s58, 1
        %s1064 = scalar_lea.sflag [#allocation10], %s1063
        %s1065 = sand.u32 %s182, 1
        %s1066 = smul.addr %s1065, 4
        %s1067 = scalar_lea.vmem [#allocation11], %s1066
        %p1068 = pneg %p195
        %p1069 = pneg %p192
        %s1070 = sand.u32 %s58, 1
        %s1071 = scalar_lea.sflag [#allocation13], %s1070
        %s1072 = sand.u32 %s208, 1
        %s1073 = smul.addr %s1072, 256
        %s1074 = scalar_lea.vmem [#allocation12], %s1073
        %p1075 = pneg %p221
        %p1076 = pneg %p218
        %s1077 = sand.u32 %s58, 1
        %s1078 = scalar_lea.sflag [#allocation13], %s1077
        %s1079 = sand.u32 %s234, 1
        %s1080 = smul.addr %s1079, 4
        %s1081 = scalar_lea.vmem [#allocation14], %s1080
        %p1082 = pneg %p247
        %p1083 = pneg %p244
        %s1084 = sand.u32 %s58, 1
        %s1085 = scalar_lea.sflag [#allocation16], %s1084
        %s1086 = sand.u32 %s260, 1
        %s1087 = smul.addr %s1086, 256
        %s1088 = scalar_lea.vmem [#allocation15], %s1087
        %p1089 = pneg %p273
        %p1090 = pneg %p270
        %s1091 = sand.u32 %s58, 1
        %s1092 = scalar_lea.sflag [#allocation16], %s1091
        %s1093 = sand.u32 %s286, 1
        %s1094 = smul.addr %s1093, 4
        %s1095 = scalar_lea.vmem [#allocation17], %s1094
        %p1096 = pneg %p299
        %p1097 = pneg %p296
        %s1098 = sand.u32 %s58, 1
        %s1099 = scalar_lea.sflag [#allocation19], %s1098
        %s1100 = sand.u32 %s312, 1
        %s1101 = smul.addr %s1100, 64
        %s1102 = scalar_lea.vmem [#allocation18], %s1101
        %p1103 = pneg %p325
        %p1104 = pneg %p322
        %s1105 = sand.u32 %s58, 1
        %s1106 = scalar_lea.sflag [#allocation19], %s1105
        %s1107 = sand.u32 %s338, 1
        %s1108 = scalar_lea.vmem [#allocation20], %s1107
        %p1109 = pneg %p351
        %p1110 = pneg %p348
        %s1111 = sand.u32 %s58, 1
        %s1112 = scalar_lea.sflag [#allocation22], %s1111
        %s1113 = sand.u32 %s364, 1
        %s1114 = scalar_lea.vmem [#allocation21], %s1113
        %p1115 = pneg %p377
        %p1116 = pneg %p374
        %s1117 = sand.u32 %s58, 1
        %s1118 = scalar_lea.sflag [#allocation22], %s1117
        %s1119 = sand.u32 %s390, 1
        %s1120 = scalar_lea.vmem [#allocation23], %s1119
        %p1121 = pneg %p403
        %p1122 = pneg %p400
        %s1123 = sand.u32 %s58, 1
        %s1124 = scalar_lea.sflag [#allocation25], %s1123
        %s1125 = sand.u32 %s416, 1
        %s1126 = smul.addr %s1125, 128
        %s1127 = scalar_lea.vmem [#allocation24], %s1126
        %p1128 = pneg %p429
        %p1129 = pneg %p426
        %s1130 = sand.u32 %s58, 1
        %s1131 = scalar_lea.sflag [#allocation25], %s1130
        %s1132 = sand.u32 %s442, 1
        %s1133 = smul.addr %s1132, 2
        %s1134 = scalar_lea.vmem [#allocation26], %s1133
        %p1135 = pneg %p455
        %p1136 = pneg %p452
        %s1137 = sand.u32 %s58, 1
        %s1138 = scalar_lea.sflag [#allocation28], %s1137
        %s1139 = sand.u32 %s468, 1
        %s1140 = smul.addr %s1139, 128
        %s1141 = scalar_lea.vmem [#allocation27], %s1140
        %p1142 = pneg %p481
        %p1143 = pneg %p478
        %s1144 = sand.u32 %s58, 1
        %s1145 = scalar_lea.sflag [#allocation28], %s1144
        %s1146 = sand.u32 %s494, 1
        %s1147 = scalar_lea.vmem [#allocation29], %s1146
        %p1148 = pneg %p507
        %p1149 = pneg %p504
        %p1150 = pneg %p533
        %p1151 = pneg %p530
        %s1152 = sand.u32 %s520, 1
        %s1153 = scalar_lea.sflag [#allocation5], %s1152
        %s1154 = sand.u32 %s520, 1
        %s1155 = smul.addr %s1154, 16
        %s1156 = scalar_lea.vmem [#allocation30], %s1155
        %p1158 = scmp.eq.s32.totalorder %s63, 0
        // Predicated region
        $region157: #{reformer_res_forward.2} parent=87 // pred_check
          %p1159 = pneg %p1158
        $region158: #{reformer_res_forward.2} parent=87 // pred_check_branch
          %1161 = sbr.rel (%p1159) target = $region160
        $region159: #{reformer_res_forward.2} parent=87 // pred_region
          %v1162 = vld [vmem:[%s894] sm:$0xff]
          %v1163 = vld [vmem:[%s894 + $0x8] sm:$0xff]
          %1164 = vst [vmem:[#allocation2] sm:$0xff] %v1162
          %1165 = vst [vmem:[#allocation2 + $0x8] sm:$0xff] %v1163
          %1166 = vst [vmem:[%s1156] sm:$0xff] %v1162
          %1167 = vst [vmem:[%s1156 + $0x8] sm:$0xff] %v1163
        $region160: #{reformer_res_forward.2} parent=87 // pred_fallthru
          _
        %v1168 = vld [vmem:[#allocation2] sm:$0xff]
        %v1169 = vld [vmem:[#allocation2 + $0x8] sm:$0xff]
        %v1170 = vld [vmem:[%s1156] sm:$0xff]
        %v1171 = vld [vmem:[%s1156 + $0x8] sm:$0xff]
        %v1172 = vld [vmem:[%s902] sm:$0x1]
        %v1173 = vld [vmem:[%s910] sm:$0x1]
        %1174 = vadd.xlane.f32.xlu0 %v1170
        %v1175 = vpop.xlane.xlu0 %1174
        %1176 = vadd.xlane.f32.xlu0 %v1171
        %v1177 = vpop.xlane.xlu0 %1176
        %v1178 = vrcp.pop 128.0
        %v1179 = vmul.f32 %v1175, %v1178
        %v1180 = vmul.f32 %v1177, %v1178
        %v1181 = vsub.f32 %v1170, %v1179
        %v1182 = vsub.f32 %v1171, %v1180
        %v1183 = vmul.f32 %v1181, %v1181
        %v1184 = vmul.f32 %v1182, %v1182
        %1185 = vadd.xlane.f32.xlu0 %v1183
        %v1186 = vpop.xlane.xlu0 %1185
        %1187 = vadd.xlane.f32.xlu0 %v1184
        %v1188 = vpop.xlane.xlu0 %1187
        %v1189 = vmul.f32 %v1186, %v1178
        %v1190 = vmul.f32 %v1188, %v1178
        %v1191 = vadd.f32 %v1189, 1e-05
        %v1192 = vadd.f32 %v1190, 1e-05
        %v1193 = vrsqrt.pop %v1191
        %v1194 = vrsqrt.pop %v1192
        %v1195 = vmul.f32 %v1181, %v1193
        %v1196 = vmul.f32 %v1182, %v1194
        %v1198 = vlaneseq
        %v1199 = vshrl.u32 %v1198, 7
        %v1200 = vsub.s32 0, %v1199
        %v1201 = vrot.slane %v1172, %v1200
        %v1203 = vmul.f32 %v1195, %v1201
        %v1204 = vmul.f32 %v1196, %v1201
        %v1206 = vlaneseq
        %v1207 = vshrl.u32 %v1206, 7
        %v1208 = vsub.s32 0, %v1207
        %v1209 = vrot.slane %v1173, %v1208
        %v1211 = vadd.f32 %v1203, %v1209
        %v1212 = vadd.f32 %v1204, %v1209
        %v1213 = vpack.c.bf16 %v1212, %v1211
        %v1214 = vld [vmem:[%s919] sm:$0xf]
        %v1215 = vld [vmem:[%s919 + $0x4] sm:$0xf]
        %v1216 = vld [vmem:[%s919 + $0x8] sm:$0xf]
        %v1217 = vld [vmem:[%s919 + $0xc] sm:$0xf]
        %v1218 = vld [vmem:[%s919 + $0x10] sm:$0xf]
        %v1219 = vld [vmem:[%s919 + $0x14] sm:$0xf]
        %v1220 = vld [vmem:[%s919 + $0x18] sm:$0xf]
        %v1221 = vld [vmem:[%s919 + $0x1c] sm:$0xf]
        %v1222 = vld [vmem:[%s919 + $0x20] sm:$0xf]
        %v1223 = vld [vmem:[%s919 + $0x24] sm:$0xf]
        %v1224 = vld [vmem:[%s919 + $0x28] sm:$0xf]
        %v1225 = vld [vmem:[%s919 + $0x2c] sm:$0xf]
        %v1226 = vld [vmem:[%s919 + $0x30] sm:$0xf]
        %v1227 = vld [vmem:[%s919 + $0x34] sm:$0xf]
        %v1228 = vld [vmem:[%s919 + $0x38] sm:$0xf]
        %v1229 = vld [vmem:[%s919 + $0x3c] sm:$0xf]
        %v1230 = vld [vmem:[%s928] sm:$0x1]
        %v1232 = vlaneseq
        %v1233 = vshrl.u32 %v1232, 7
        %v1234 = vsub.s32 0, %v1233
        %v1235 = vrot.slane %v1230, %v1234
        %v1253 = vunpack.c.l.b16 %v1214
        %v1254 = vunpack.c.l.b16 %v1215
        %v1255 = vunpack.c.l.b16 %v1216
        %v1256 = vunpack.c.l.b16 %v1217
        %v1257 = vunpack.c.l.b16 %v1218
        %v1258 = vunpack.c.l.b16 %v1219
        %v1259 = vunpack.c.l.b16 %v1220
        %v1260 = vunpack.c.l.b16 %v1221
        %v1261 = vunpack.c.l.b16 %v1222
        %v1262 = vunpack.c.l.b16 %v1223
        %v1263 = vunpack.c.l.b16 %v1224
        %v1264 = vunpack.c.l.b16 %v1225
        %v1265 = vunpack.c.l.b16 %v1226
        %v1266 = vunpack.c.l.b16 %v1227
        %v1267 = vunpack.c.l.b16 %v1228
        %v1268 = vunpack.c.l.b16 %v1229
        %v1269 = vpack.c.b16 %v1254, %v1253
        %v1270 = vpack.c.b16 %v1256, %v1255
        %v1271 = vpack.c.b16 %v1258, %v1257
        %v1272 = vpack.c.b16 %v1260, %v1259
        %v1273 = vpack.c.b16 %v1262, %v1261
        %v1274 = vpack.c.b16 %v1264, %v1263
        %v1275 = vpack.c.b16 %v1266, %v1265
        %v1276 = vpack.c.b16 %v1268, %v1267
        %1285 = vmatprep.subr.bf16.mxu0 0
        %1286 = vmatpush1.bf16.msra.mxu0 %v1269
        %1287 = vmatprep.subr.bf16.mxu0 0
        %1288 = vmatpush1.bf16.msra.mxu0 %v1270
        %1289 = vmatprep.subr.bf16.mxu0 0
        %1290 = vmatpush1.bf16.msra.mxu0 %v1271
        %1291 = vmatprep.subr.bf16.mxu0 0
        %1292 = vmatpush1.bf16.msra.mxu0 %v1272
        %1293 = vmatprep.subr.bf16.mxu0 0
        %1294 = vmatpush1.bf16.msra.mxu0 %v1273
        %1295 = vmatprep.subr.bf16.mxu0 0
        %1296 = vmatpush1.bf16.msra.mxu0 %v1274
        %1297 = vmatprep.subr.bf16.mxu0 0
        %1298 = vmatpush1.bf16.msra.mxu0 %v1275
        %1299 = vmatprep.subr.bf16.mxu0 0
        %1300 = vmatpush1.bf16.msra.mxu0 %v1276
        %1301 = vmatprep.subr.bf16.mxu0 0
        %1302 = vmatpush1.bf16.msra.mxu0 0
        %1303 = vmatprep.subr.bf16.mxu0 0
        %1304 = vmatpush1.bf16.msra.mxu0 0
        %1305 = vmatprep.subr.bf16.mxu0 0
        %1306 = vmatpush1.bf16.msra.mxu0 0
        %1307 = vmatprep.subr.bf16.mxu0 0
        %1308 = vmatpush1.bf16.msra.mxu0 0
        %1309 = vmatprep.subr.bf16.mxu0 0
        %1310 = vmatpush1.bf16.msra.mxu0 0
        %1311 = vmatprep.subr.bf16.mxu0 0
        %1312 = vmatpush1.bf16.msra.mxu0 0
        %1313 = vmatprep.subr.bf16.mxu0 0
        %1314 = vmatpush1.bf16.msra.mxu0 0
        %1315 = vmatprep.subr.bf16.mxu0 0
        %1316 = vmatpush1.bf16.msra.mxu0 0
        %1317 = vmatprep.mubr.bf16.mxu0 0
        %1318 = vmatmul.mubr.bf16.gmra.mrb[0].mxu0 %v1213
        %v1319 = vpop.f32.mrb[0].mxu0
        %v1320 = vadd.f32 %v1235, %v1319
        %v1321 = vpop.f32.mrb[0].mxu0
        %v1322 = vpop.f32.mrb[0].mxu0
        %v1323 = vadd.f32 %v1235, %v1322
        %v1324 = vpop.f32.mrb[0].mxu0
        %1325 = vdwg.mxu0
        %v1326 = vmul.f32 %v1320, 0.17677669
        %v1327 = vmul.f32 %v1323, 0.17677669
        %v1328 = vld [vmem:[%s937] sm:$0xf]
        %v1329 = vld [vmem:[%s937 + $0x4] sm:$0xf]
        %v1330 = vld [vmem:[%s937 + $0x8] sm:$0xf]
        %v1331 = vld [vmem:[%s937 + $0xc] sm:$0xf]
        %v1332 = vld [vmem:[%s937 + $0x10] sm:$0xf]
        %v1333 = vld [vmem:[%s937 + $0x14] sm:$0xf]
        %v1334 = vld [vmem:[%s937 + $0x18] sm:$0xf]
        %v1335 = vld [vmem:[%s937 + $0x1c] sm:$0xf]
        %v1336 = vld [vmem:[%s937 + $0x20] sm:$0xf]
        %v1337 = vld [vmem:[%s937 + $0x24] sm:$0xf]
        %v1338 = vld [vmem:[%s937 + $0x28] sm:$0xf]
        %v1339 = vld [vmem:[%s937 + $0x2c] sm:$0xf]
        %v1340 = vld [vmem:[%s937 + $0x30] sm:$0xf]
        %v1341 = vld [vmem:[%s937 + $0x34] sm:$0xf]
        %v1342 = vld [vmem:[%s937 + $0x38] sm:$0xf]
        %v1343 = vld [vmem:[%s937 + $0x3c] sm:$0xf]
        %v1344 = vld [vmem:[%s946] sm:$0x1]
        %v1346 = vlaneseq
        %v1347 = vshrl.u32 %v1346, 7
        %v1348 = vsub.s32 0, %v1347
        %v1349 = vrot.slane %v1344, %v1348
        %v1367 = vunpack.c.l.b16 %v1328
        %v1368 = vunpack.c.l.b16 %v1329
        %v1369 = vunpack.c.l.b16 %v1330
        %v1370 = vunpack.c.l.b16 %v1331
        %v1371 = vunpack.c.l.b16 %v1332
        %v1372 = vunpack.c.l.b16 %v1333
        %v1373 = vunpack.c.l.b16 %v1334
        %v1374 = vunpack.c.l.b16 %v1335
        %v1375 = vunpack.c.l.b16 %v1336
        %v1376 = vunpack.c.l.b16 %v1337
        %v1377 = vunpack.c.l.b16 %v1338
        %v1378 = vunpack.c.l.b16 %v1339
        %v1379 = vunpack.c.l.b16 %v1340
        %v1380 = vunpack.c.l.b16 %v1341
        %v1381 = vunpack.c.l.b16 %v1342
        %v1382 = vunpack.c.l.b16 %v1343
        %v1383 = vpack.c.b16 %v1368, %v1367
        %v1384 = vpack.c.b16 %v1370, %v1369
        %v1385 = vpack.c.b16 %v1372, %v1371
        %v1386 = vpack.c.b16 %v1374, %v1373
        %v1387 = vpack.c.b16 %v1376, %v1375
        %v1388 = vpack.c.b16 %v1378, %v1377
        %v1389 = vpack.c.b16 %v1380, %v1379
        %v1390 = vpack.c.b16 %v1382, %v1381
        %1399 = vmatprep.subr.bf16.mxu0 0
        %1400 = vmatpush1.bf16.msra.mxu0 %v1383
        %1401 = vmatprep.subr.bf16.mxu0 0
        %1402 = vmatpush1.bf16.msra.mxu0 %v1384
        %1403 = vmatprep.subr.bf16.mxu0 0
        %1404 = vmatpush1.bf16.msra.mxu0 %v1385
        %1405 = vmatprep.subr.bf16.mxu0 0
        %1406 = vmatpush1.bf16.msra.mxu0 %v1386
        %1407 = vmatprep.subr.bf16.mxu0 0
        %1408 = vmatpush1.bf16.msra.mxu0 %v1387
        %1409 = vmatprep.subr.bf16.mxu0 0
        %1410 = vmatpush1.bf16.msra.mxu0 %v1388
        %1411 = vmatprep.subr.bf16.mxu0 0
        %1412 = vmatpush1.bf16.msra.mxu0 %v1389
        %1413 = vmatprep.subr.bf16.mxu0 0
        %1414 = vmatpush1.bf16.msra.mxu0 %v1390
        %1415 = vmatprep.subr.bf16.mxu0 0
        %1416 = vmatpush1.bf16.msra.mxu0 0
        %1417 = vmatprep.subr.bf16.mxu0 0
        %1418 = vmatpush1.bf16.msra.mxu0 0
        %1419 = vmatprep.subr.bf16.mxu0 0
        %1420 = vmatpush1.bf16.msra.mxu0 0
        %1421 = vmatprep.subr.bf16.mxu0 0
        %1422 = vmatpush1.bf16.msra.mxu0 0
        %1423 = vmatprep.subr.bf16.mxu0 0
        %1424 = vmatpush1.bf16.msra.mxu0 0
        %1425 = vmatprep.subr.bf16.mxu0 0
        %1426 = vmatpush1.bf16.msra.mxu0 0
        %1427 = vmatprep.subr.bf16.mxu0 0
        %1428 = vmatpush1.bf16.msra.mxu0 0
        %1429 = vmatprep.subr.bf16.mxu0 0
        %1430 = vmatpush1.bf16.msra.mxu0 0
        %1431 = vmatprep.mubr.bf16.mxu0 0
        %1432 = vmatmul.mubr.bf16.gmra.mrb[0].mxu0 %v1213
        %v1433 = vpop.f32.mrb[0].mxu0
        %v1434 = vadd.f32 %v1349, %v1433
        %v1435 = vpop.f32.mrb[0].mxu0
        %v1436 = vpop.f32.mrb[0].mxu0
        %v1437 = vadd.f32 %v1349, %v1436
        %v1438 = vpop.f32.mrb[0].mxu0
        %1439 = vdwg.mxu0
        %v1440 = vld [vmem:[%s955] sm:$0xf]
        %v1441 = vld [vmem:[%s955 + $0x4] sm:$0xf]
        %v1442 = vld [vmem:[%s955 + $0x8] sm:$0xf]
        %v1443 = vld [vmem:[%s955 + $0xc] sm:$0xf]
        %v1444 = vld [vmem:[%s955 + $0x10] sm:$0xf]
        %v1445 = vld [vmem:[%s955 + $0x14] sm:$0xf]
        %v1446 = vld [vmem:[%s955 + $0x18] sm:$0xf]
        %v1447 = vld [vmem:[%s955 + $0x1c] sm:$0xf]
        %v1448 = vld [vmem:[%s955 + $0x20] sm:$0xf]
        %v1449 = vld [vmem:[%s955 + $0x24] sm:$0xf]
        %v1450 = vld [vmem:[%s955 + $0x28] sm:$0xf]
        %v1451 = vld [vmem:[%s955 + $0x2c] sm:$0xf]
        %v1452 = vld [vmem:[%s955 + $0x30] sm:$0xf]
        %v1453 = vld [vmem:[%s955 + $0x34] sm:$0xf]
        %v1454 = vld [vmem:[%s955 + $0x38] sm:$0xf]
        %v1455 = vld [vmem:[%s955 + $0x3c] sm:$0xf]
        %v1456 = vld [vmem:[%s964] sm:$0x1]
        %v1458 = vlaneseq
        %v1459 = vshrl.u32 %v1458, 7
        %v1460 = vsub.s32 0, %v1459
        %v1461 = vrot.slane %v1456, %v1460
        %v1479 = vunpack.c.l.b16 %v1440
        %v1480 = vunpack.c.l.b16 %v1441
        %v1481 = vunpack.c.l.b16 %v1442
        %v1482 = vunpack.c.l.b16 %v1443
        %v1483 = vunpack.c.l.b16 %v1444
        %v1484 = vunpack.c.l.b16 %v1445
        %v1485 = vunpack.c.l.b16 %v1446
        %v1486 = vunpack.c.l.b16 %v1447
        %v1487 = vunpack.c.l.b16 %v1448
        %v1488 = vunpack.c.l.b16 %v1449
        %v1489 = vunpack.c.l.b16 %v1450
        %v1490 = vunpack.c.l.b16 %v1451
        %v1491 = vunpack.c.l.b16 %v1452
        %v1492 = vunpack.c.l.b16 %v1453
        %v1493 = vunpack.c.l.b16 %v1454
        %v1494 = vunpack.c.l.b16 %v1455
        %v1495 = vpack.c.b16 %v1480, %v1479
        %v1496 = vpack.c.b16 %v1482, %v1481
        %v1497 = vpack.c.b16 %v1484, %v1483
        %v1498 = vpack.c.b16 %v1486, %v1485
        %v1499 = vpack.c.b16 %v1488, %v1487
        %v1500 = vpack.c.b16 %v1490, %v1489
        %v1501 = vpack.c.b16 %v1492, %v1491
        %v1502 = vpack.c.b16 %v1494, %v1493
        %1511 = vmatprep.subr.bf16.mxu0 0
        %1512 = vmatpush1.bf16.msra.mxu0 %v1495
        %1513 = vmatprep.subr.bf16.mxu0 0
        %1514 = vmatpush1.bf16.msra.mxu0 %v1496
        %1515 = vmatprep.subr.bf16.mxu0 0
        %1516 = vmatpush1.bf16.msra.mxu0 %v1497
        %1517 = vmatprep.subr.bf16.mxu0 0
        %1518 = vmatpush1.bf16.msra.mxu0 %v1498
        %1519 = vmatprep.subr.bf16.mxu0 0
        %1520 = vmatpush1.bf16.msra.mxu0 %v1499
        %1521 = vmatprep.subr.bf16.mxu0 0
        %1522 = vmatpush1.bf16.msra.mxu0 %v1500
        %1523 = vmatprep.subr.bf16.mxu0 0
        %1524 = vmatpush1.bf16.msra.mxu0 %v1501
        %1525 = vmatprep.subr.bf16.mxu0 0
        %1526 = vmatpush1.bf16.msra.mxu0 %v1502
        %1527 = vmatprep.subr.bf16.mxu0 0
        %1528 = vmatpush1.bf16.msra.mxu0 0
        %1529 = vmatprep.subr.bf16.mxu0 0
        %1530 = vmatpush1.bf16.msra.mxu0 0
        %1531 = vmatprep.subr.bf16.mxu0 0
        %1532 = vmatpush1.bf16.msra.mxu0 0
        %1533 = vmatprep.subr.bf16.mxu0 0
        %1534 = vmatpush1.bf16.msra.mxu0 0
        %1535 = vmatprep.subr.bf16.mxu0 0
        %1536 = vmatpush1.bf16.msra.mxu0 0
        %1537 = vmatprep.subr.bf16.mxu0 0
        %1538 = vmatpush1.bf16.msra.mxu0 0
        %1539 = vmatprep.subr.bf16.mxu0 0
        %1540 = vmatpush1.bf16.msra.mxu0 0
        %1541 = vmatprep.subr.bf16.mxu0 0
        %1542 = vmatpush1.bf16.msra.mxu0 0
        %1543 = vmatprep.mubr.bf16.mxu0 0
        %1544 = vmatmul.mubr.bf16.gmra.mrb[0].mxu0 %v1213
        %v1545 = vpop.f32.mrb[0].mxu0
        %v1546 = vadd.f32 %v1461, %v1545
        %v1547 = vpop.f32.mrb[0].mxu0
        %v1548 = vpop.f32.mrb[0].mxu0
        %v1549 = vadd.f32 %v1461, %v1548
        %v1550 = vpop.f32.mrb[0].mxu0
        %1551 = vdwg.mxu0
        %v1552 = vpack.c.bf16 %v1327, %v1326
        %v1553 = vpack.c.bf16 %v1437, %v1434
        %vm1554 = vcmask 261120
        %v1556 = vsel %vm1554, %v1552, 0
        %v1559 = vsel %vm1554, %v1553, 0
        %1561 = vmatprep.subr.bf16.mxu0 0
        %1562 = vmatpush1.bf16.xpose.msra.mxu0 %v1559
        %1563 = vmatprep.subr.bf16.mxu0 0
        %1564 = vmatpush1.bf16.xpose.msra.mxu0 0
        %1565 = vmatprep.subr.bf16.mxu0 0
        %1566 = vmatpush1.bf16.xpose.msra.mxu0 0
        %1567 = vmatprep.subr.bf16.mxu0 0
        %1568 = vmatpush1.bf16.xpose.msra.mxu0 0
        %1569 = vmatprep.subr.bf16.mxu0 0
        %1570 = vmatpush1.bf16.xpose.msra.mxu0 0
        %1571 = vmatprep.subr.bf16.mxu0 0
        %1572 = vmatpush1.bf16.xpose.msra.mxu0 0
        %1573 = vmatprep.subr.bf16.mxu0 0
        %1574 = vmatpush1.bf16.xpose.msra.mxu0 0
        %1575 = vmatprep.subr.bf16.mxu0 0
        %1576 = vmatpush1.bf16.xpose.msra.mxu0 0
        %1577 = vmatprep.subr.bf16.mxu0 0
        %1578 = vmatpush1.bf16.xpose.msra.mxu0 0
        %1579 = vmatprep.subr.bf16.mxu0 0
        %1580 = vmatpush1.bf16.xpose.msra.mxu0 0
        %1581 = vmatprep.subr.bf16.mxu0 0
        %1582 = vmatpush1.bf16.xpose.msra.mxu0 0
        %1583 = vmatprep.subr.bf16.mxu0 0
        %1584 = vmatpush1.bf16.xpose.msra.mxu0 0
        %1585 = vmatprep.subr.bf16.mxu0 0
        %1586 = vmatpush1.bf16.xpose.msra.mxu0 0
        %1587 = vmatprep.subr.bf16.mxu0 0
        %1588 = vmatpush1.bf16.xpose.msra.mxu0 0
        %1589 = vmatprep.subr.bf16.mxu0 0
        %1590 = vmatpush1.bf16.xpose.msra.mxu0 0
        %1591 = vmatprep.subr.bf16.mxu0 0
        %1592 = vmatpush1.bf16.xpose.msra.mxu0 0
        %1593 = vmatprep.mubr.bf16.mxu0 0
        %1594 = vmatmul.mubr.bf16.gmra.mrb[0].mxu0 %v1556
        %v1595 = vpop.f32.mrb[0].mxu0
        %v1596 = vadd.f32 0.0, %v1595
        %v1597 = vpop.f32.mrb[0].mxu0
        %v1598 = vpop.f32.mrb[0].mxu0
        %v1599 = vadd.f32 0.0, %v1598
        %v1600 = vpop.f32.mrb[0].mxu0
        %1601 = vdwg.mxu0
        %vm1602 = vcmask 130048
        %v1603 = vsel %vm1602, %v1596, -inf
        %1604 = vmax.xlane.f32.xlu0 %v1603
        %v1605 = vpop.xlane.xlu0 %1604
        %v1606 = vsel %vm1602, %v1599, -inf
        %1607 = vmax.xlane.f32.xlu0 %v1606
        %v1608 = vpop.xlane.xlu0 %1607
        %v1609 = vsub.f32 %v1596, %v1605
        %v1610 = vsub.f32 %v1599, %v1608
        %v1611 = vmul.f32 %v1609, 1.442695
        %v1612 = vpow.pop %v1611
        %v1613 = vmul.f32 %v1610, 1.442695
        %v1614 = vpow.pop %v1613
        %v1615 = vsel %vm1602, %v1612, 0.0
        %1616 = vadd.xlane.f32.xlu0 %v1615
        %v1617 = vpop.xlane.xlu0 %1616
        %v1618 = vsel %vm1602, %v1614, 0.0
        %1619 = vadd.xlane.f32.xlu0 %v1618
        %v1620 = vpop.xlane.xlu0 %1619
        %v1621 = vpack.c.bf16 %v1614, %v1612
        %v1622 = vpack.c.bf16 %v1549, %v1546
        %v1624 = vsel %vm1602, %v1621, 0
        %1626 = vmatprep.subr.bf16.mxu0 0
        %1627 = vmatpush1.bf16.msra.mxu0 %v1622
        %1628 = vmatprep.subr.bf16.mxu0 0
        %1629 = vmatpush1.bf16.msra.mxu0 0
        %1630 = vmatprep.subr.bf16.mxu0 0
        %1631 = vmatpush1.bf16.msra.mxu0 0
        %1632 = vmatprep.subr.bf16.mxu0 0
        %1633 = vmatpush1.bf16.msra.mxu0 0
        %1634 = vmatprep.subr.bf16.mxu0 0
        %1635 = vmatpush1.bf16.msra.mxu0 0
        %1636 = vmatprep.subr.bf16.mxu0 0
        %1637 = vmatpush1.bf16.msra.mxu0 0
        %1638 = vmatprep.subr.bf16.mxu0 0
        %1639 = vmatpush1.bf16.msra.mxu0 0
        %1640 = vmatprep.subr.bf16.mxu0 0
        %1641 = vmatpush1.bf16.msra.mxu0 0
        %1642 = vmatprep.subr.bf16.mxu0 0
        %1643 = vmatpush1.bf16.msra.mxu0 0
        %1644 = vmatprep.subr.bf16.mxu0 0
        %1645 = vmatpush1.bf16.msra.mxu0 0
        %1646 = vmatprep.subr.bf16.mxu0 0
        %1647 = vmatpush1.bf16.msra.mxu0 0
        %1648 = vmatprep.subr.bf16.mxu0 0
        %1649 = vmatpush1.bf16.msra.mxu0 0
        %1650 = vmatprep.subr.bf16.mxu0 0
        %1651 = vmatpush1.bf16.msra.mxu0 0
        %1652 = vmatprep.subr.bf16.mxu0 0
        %1653 = vmatpush1.bf16.msra.mxu0 0
        %1654 = vmatprep.subr.bf16.mxu0 0
        %1655 = vmatpush1.bf16.msra.mxu0 0
        %1656 = vmatprep.subr.bf16.mxu0 0
        %1657 = vmatpush1.bf16.msra.mxu0 0
        %1658 = vmatprep.mubr.bf16.mxu0 0
        %1659 = vmatmul.mubr.bf16.gmra.mrb[0].mxu0 %v1624
        %v1660 = vpop.f32.mrb[0].mxu0
        %v1661 = vadd.f32 0.0, %v1660
        %v1662 = vpop.f32.mrb[0].mxu0
        %v1663 = vpop.f32.mrb[0].mxu0
        %v1664 = vadd.f32 0.0, %v1663
        %v1665 = vpop.f32.mrb[0].mxu0
        %1666 = vdwg.mxu0
        %v1667 = vrcp.pop %v1617
        %v1668 = vrcp.pop %v1620
        %v1669 = vmul.f32 %v1661, %v1667
        %v1670 = vmul.f32 %v1664, %v1668
        %v1671 = vpack.c.bf16 %v1670, %v1669
        %v1672 = vld [vmem:[%s973] sm:$0xf]
        %v1673 = vld [vmem:[%s973 + $0x4] sm:$0xf]
        %v1674 = vld [vmem:[%s973 + $0x8] sm:$0xf]
        %v1675 = vld [vmem:[%s973 + $0xc] sm:$0xf]
        %s1676 = scalar_lea.vmem %s919, 64 [#allocation9]
        %v1677 = vld [vmem:[%s1676] sm:$0xf]
        %v1678 = vld [vmem:[%s1676 + $0x4] sm:$0xf]
        %v1679 = vld [vmem:[%s1676 + $0x8] sm:$0xf]
        %v1680 = vld [vmem:[%s1676 + $0xc] sm:$0xf]
        %v1681 = vld [vmem:[%s1676 + $0x10] sm:$0xf]
        %v1682 = vld [vmem:[%s1676 + $0x14] sm:$0xf]
        %v1683 = vld [vmem:[%s1676 + $0x18] sm:$0xf]
        %v1684 = vld [vmem:[%s1676 + $0x1c] sm:$0xf]
        %v1685 = vld [vmem:[%s1676 + $0x20] sm:$0xf]
        %v1686 = vld [vmem:[%s1676 + $0x24] sm:$0xf]
        %v1687 = vld [vmem:[%s1676 + $0x28] sm:$0xf]
        %v1688 = vld [vmem:[%s1676 + $0x2c] sm:$0xf]
        %v1689 = vld [vmem:[%s1676 + $0x30] sm:$0xf]
        %v1690 = vld [vmem:[%s1676 + $0x34] sm:$0xf]
        %v1691 = vld [vmem:[%s1676 + $0x38] sm:$0xf]
        %v1692 = vld [vmem:[%s1676 + $0x3c] sm:$0xf]
        %s1693 = scalar_lea.vmem %s928, 1 [#allocation11]
        %v1694 = vld [vmem:[%s1693] sm:$0x1]
        %v1696 = vlaneseq
        %v1697 = vshrl.u32 %v1696, 7
        %v1698 = vsub.s32 0, %v1697
        %v1699 = vrot.slane %v1694, %v1698
        %v1717 = vunpack.c.l.b16 %v1677
        %v1718 = vunpack.c.l.b16 %v1678
        %v1719 = vunpack.c.l.b16 %v1679
        %v1720 = vunpack.c.l.b16 %v1680
        %v1721 = vunpack.c.l.b16 %v1681
        %v1722 = vunpack.c.l.b16 %v1682
        %v1723 = vunpack.c.l.b16 %v1683
        %v1724 = vunpack.c.l.b16 %v1684
        %v1725 = vunpack.c.l.b16 %v1685
        %v1726 = vunpack.c.l.b16 %v1686
        %v1727 = vunpack.c.l.b16 %v1687
        %v1728 = vunpack.c.l.b16 %v1688
        %v1729 = vunpack.c.l.b16 %v1689
        %v1730 = vunpack.c.l.b16 %v1690
        %v1731 = vunpack.c.l.b16 %v1691
        %v1732 = vunpack.c.l.b16 %v1692
        %v1733 = vpack.c.b16 %v1718, %v1717
        %v1734 = vpack.c.b16 %v1720, %v1719
        %v1735 = vpack.c.b16 %v1722, %v1721
        %v1736 = vpack.c.b16 %v1724, %v1723
        %v1737 = vpack.c.b16 %v1726, %v1725
        %v1738 = vpack.c.b16 %v1728, %v1727
        %v1739 = vpack.c.b16 %v1730, %v1729
        %v1740 = vpack.c.b16 %v1732, %v1731
        %1749 = vmatprep.subr.bf16.mxu0 0
        %1750 = vmatpush1.bf16.msra.mxu0 %v1733
        %1751 = vmatprep.subr.bf16.mxu0 0
        %1752 = vmatpush1.bf16.msra.mxu0 %v1734
        %1753 = vmatprep.subr.bf16.mxu0 0
        %1754 = vmatpush1.bf16.msra.mxu0 %v1735
        %1755 = vmatprep.subr.bf16.mxu0 0
        %1756 = vmatpush1.bf16.msra.mxu0 %v1736
        %1757 = vmatprep.subr.bf16.mxu0 0
        %1758 = vmatpush1.bf16.msra.mxu0 %v1737
        %1759 = vmatprep.subr.bf16.mxu0 0
        %1760 = vmatpush1.bf16.msra.mxu0 %v1738
        %1761 = vmatprep.subr.bf16.mxu0 0
        %1762 = vmatpush1.bf16.msra.mxu0 %v1739
        %1763 = vmatprep.subr.bf16.mxu0 0
        %1764 = vmatpush1.bf16.msra.mxu0 %v1740
        %1765 = vmatprep.subr.bf16.mxu0 0
        %1766 = vmatpush1.bf16.msra.mxu0 0
        %1767 = vmatprep.subr.bf16.mxu0 0
        %1768 = vmatpush1.bf16.msra.mxu0 0
        %1769 = vmatprep.subr.bf16.mxu0 0
        %1770 = vmatpush1.bf16.msra.mxu0 0
        %1771 = vmatprep.subr.bf16.mxu0 0
        %1772 = vmatpush1.bf16.msra.mxu0 0
        %1773 = vmatprep.subr.bf16.mxu0 0
        %1774 = vmatpush1.bf16.msra.mxu0 0
        %1775 = vmatprep.subr.bf16.mxu0 0
        %1776 = vmatpush1.bf16.msra.mxu0 0
        %1777 = vmatprep.subr.bf16.mxu0 0
        %1778 = vmatpush1.bf16.msra.mxu0 0
        %1779 = vmatprep.subr.bf16.mxu0 0
        %1780 = vmatpush1.bf16.msra.mxu0 0
        %1781 = vmatprep.mubr.bf16.mxu0 0
        %1782 = vmatmul.mubr.bf16.gmra.mrb[0].mxu0 %v1213
        %v1783 = vpop.f32.mrb[0].mxu0
        %v1784 = vadd.f32 %v1699, %v1783
        %v1785 = vpop.f32.mrb[0].mxu0
        %v1786 = vpop.f32.mrb[0].mxu0
        %v1787 = vadd.f32 %v1699, %v1786
        %v1788 = vpop.f32.mrb[0].mxu0
        %1789 = vdwg.mxu0
        %v1790 = vmul.f32 %v1784, 0.17677669
        %v1791 = vmul.f32 %v1787, 0.17677669
        %s1792 = scalar_lea.vmem %s937, 64 [#allocation12]
        %v1793 = vld [vmem:[%s1792] sm:$0xf]
        %v1794 = vld [vmem:[%s1792 + $0x4] sm:$0xf]
        %v1795 = vld [vmem:[%s1792 + $0x8] sm:$0xf]
        %v1796 = vld [vmem:[%s1792 + $0xc] sm:$0xf]
        %v1797 = vld [vmem:[%s1792 + $0x10] sm:$0xf]
        %v1798 = vld [vmem:[%s1792 + $0x14] sm:$0xf]
        %v1799 = vld [vmem:[%s1792 + $0x18] sm:$0xf]
        %v1800 = vld [vmem:[%s1792 + $0x1c] sm:$0xf]
        %v1801 = vld [vmem:[%s1792 + $0x20] sm:$0xf]
        %v1802 = vld [vmem:[%s1792 + $0x24] sm:$0xf]
        %v1803 = vld [vmem:[%s1792 + $0x28] sm:$0xf]
        %v1804 = vld [vmem:[%s1792 + $0x2c] sm:$0xf]
        %v1805 = vld [vmem:[%s1792 + $0x30] sm:$0xf]
        %v1806 = vld [vmem:[%s1792 + $0x34] sm:$0xf]
        %v1807 = vld [vmem:[%s1792 + $0x38] sm:$0xf]
        %v1808 = vld [vmem:[%s1792 + $0x3c] sm:$0xf]
        %s1809 = scalar_lea.vmem %s946, 1 [#allocation14]
        %v1810 = vld [vmem:[%s1809] sm:$0x1]
        %v1812 = vlaneseq
        %v1813 = vshrl.u32 %v1812, 7
        %v1814 = vsub.s32 0, %v1813
        %v1815 = vrot.slane %v1810, %v1814
        %v1833 = vunpack.c.l.b16 %v1793
        %v1834 = vunpack.c.l.b16 %v1794
        %v1835 = vunpack.c.l.b16 %v1795
        %v1836 = vunpack.c.l.b16 %v1796
        %v1837 = vunpack.c.l.b16 %v1797
        %v1838 = vunpack.c.l.b16 %v1798
        %v1839 = vunpack.c.l.b16 %v1799
        %v1840 = vunpack.c.l.b16 %v1800
        %v1841 = vunpack.c.l.b16 %v1801
        %v1842 = vunpack.c.l.b16 %v1802
        %v1843 = vunpack.c.l.b16 %v1803
        %v1844 = vunpack.c.l.b16 %v1804
        %v1845 = vunpack.c.l.b16 %v1805
        %v1846 = vunpack.c.l.b16 %v1806
        %v1847 = vunpack.c.l.b16 %v1807
        %v1848 = vunpack.c.l.b16 %v1808
        %v1849 = vpack.c.b16 %v1834, %v1833
        %v1850 = vpack.c.b16 %v1836, %v1835
        %v1851 = vpack.c.b16 %v1838, %v1837
        %v1852 = vpack.c.b16 %v1840, %v1839
        %v1853 = vpack.c.b16 %v1842, %v1841
        %v1854 = vpack.c.b16 %v1844, %v1843
        %v1855 = vpack.c.b16 %v1846, %v1845
        %v1856 = vpack.c.b16 %v1848, %v1847
        %1865 = vmatprep.subr.bf16.mxu0 0
        %1866 = vmatpush1.bf16.msra.mxu0 %v1849
        %1867 = vmatprep.subr.bf16.mxu0 0
        %1868 = vmatpush1.bf16.msra.mxu0 %v1850
        %1869 = vmatprep.subr.bf16.mxu0 0
        %1870 = vmatpush1.bf16.msra.mxu0 %v1851
        %1871 = vmatprep.subr.bf16.mxu0 0
        %1872 = vmatpush1.bf16.msra.mxu0 %v1852
        %1873 = vmatprep.subr.bf16.mxu0 0
        %1874 = vmatpush1.bf16.msra.mxu0 %v1853
        %1875 = vmatprep.subr.bf16.mxu0 0
        %1876 = vmatpush1.bf16.msra.mxu0 %v1854
        %1877 = vmatprep.subr.bf16.mxu0 0
        %1878 = vmatpush1.bf16.msra.mxu0 %v1855
        %1879 = vmatprep.subr.bf16.mxu0 0
        %1880 = vmatpush1.bf16.msra.mxu0 %v1856
        %1881 = vmatprep.subr.bf16.mxu0 0
        %1882 = vmatpush1.bf16.msra.mxu0 0
        %1883 = vmatprep.subr.bf16.mxu0 0
        %1884 = vmatpush1.bf16.msra.mxu0 0
        %1885 = vmatprep.subr.bf16.mxu0 0
        %1886 = vmatpush1.bf16.msra.mxu0 0
        %1887 = vmatprep.subr.bf16.mxu0 0
        %1888 = vmatpush1.bf16.msra.mxu0 0
        %1889 = vmatprep.subr.bf16.mxu0 0
        %1890 = vmatpush1.bf16.msra.mxu0 0
        %1891 = vmatprep.subr.bf16.mxu0 0
        %1892 = vmatpush1.bf16.msra.mxu0 0
        %1893 = vmatprep.subr.bf16.mxu0 0
        %1894 = vmatpush1.bf16.msra.mxu0 0
        %1895 = vmatprep.subr.bf16.mxu0 0
        %1896 = vmatpush1.bf16.msra.mxu0 0
        %1897 = vmatprep.mubr.bf16.mxu0 0
        %1898 = vmatmul.mubr.bf16.gmra.mrb[0].mxu0 %v1213
        %v1899 = vpop.f32.mrb[0].mxu0
        %v1900 = vadd.f32 %v1815, %v1899
        %v1901 = vpop.f32.mrb[0].mxu0
        %v1902 = vpop.f32.mrb[0].mxu0
        %v1903 = vadd.f32 %v1815, %v1902
        %v1904 = vpop.f32.mrb[0].mxu0
        %1905 = vdwg.mxu0
        %s1906 = scalar_lea.vmem %s955, 64 [#allocation15]
        %v1907 = vld [vmem:[%s1906] sm:$0xf]
        %v1908 = vld [vmem:[%s1906 + $0x4] sm:$0xf]
        %v1909 = vld [vmem:[%s1906 + $0x8] sm:$0xf]
        %v1910 = vld [vmem:[%s1906 + $0xc] sm:$0xf]
        %v1911 = vld [vmem:[%s1906 + $0x10] sm:$0xf]
        %v1912 = vld [vmem:[%s1906 + $0x14] sm:$0xf]
        %v1913 = vld [vmem:[%s1906 + $0x18] sm:$0xf]
        %v1914 = vld [vmem:[%s1906 + $0x1c] sm:$0xf]
        %v1915 = vld [vmem:[%s1906 + $0x20] sm:$0xf]
        %v1916 = vld [vmem:[%s1906 + $0x24] sm:$0xf]
        %v1917 = vld [vmem:[%s1906 + $0x28] sm:$0xf]
        %v1918 = vld [vmem:[%s1906 + $0x2c] sm:$0xf]
        %v1919 = vld [vmem:[%s1906 + $0x30] sm:$0xf]
        %v1920 = vld [vmem:[%s1906 + $0x34] sm:$0xf]
        %v1921 = vld [vmem:[%s1906 + $0x38] sm:$0xf]
        %v1922 = vld [vmem:[%s1906 + $0x3c] sm:$0xf]
        %s1923 = scalar_lea.vmem %s964, 1 [#allocation17]
        %v1924 = vld [vmem:[%s1923] sm:$0x1]
        %v1926 = vlaneseq
        %v1927 = vshrl.u32 %v1926, 7
        %v1928 = vsub.s32 0, %v1927
        %v1929 = vrot.slane %v1924, %v1928
        %v1947 = vunpack.c.l.b16 %v1907
        %v1948 = vunpack.c.l.b16 %v1908
        %v1949 = vunpack.c.l.b16 %v1909
        %v1950 = vunpack.c.l.b16 %v1910
        %v1951 = vunpack.c.l.b16 %v1911
        %v1952 = vunpack.c.l.b16 %v1912
        %v1953 = vunpack.c.l.b16 %v1913
        %v1954 = vunpack.c.l.b16 %v1914
        %v1955 = vunpack.c.l.b16 %v1915
        %v1956 = vunpack.c.l.b16 %v1916
        %v1957 = vunpack.c.l.b16 %v1917
        %v1958 = vunpack.c.l.b16 %v1918
        %v1959 = vunpack.c.l.b16 %v1919
        %v1960 = vunpack.c.l.b16 %v1920
        %v1961 = vunpack.c.l.b16 %v1921
        %v1962 = vunpack.c.l.b16 %v1922
        %v1963 = vpack.c.b16 %v1948, %v1947
        %v1964 = vpack.c.b16 %v1950, %v1949
        %v1965 = vpack.c.b16 %v1952, %v1951
        %v1966 = vpack.c.b16 %v1954, %v1953
        %v1967 = vpack.c.b16 %v1956, %v1955
        %v1968 = vpack.c.b16 %v1958, %v1957
        %v1969 = vpack.c.b16 %v1960, %v1959
        %v1970 = vpack.c.b16 %v1962, %v1961
        %1979 = vmatprep.subr.bf16.mxu0 0
        %1980 = vmatpush1.bf16.msra.mxu0 %v1963
        %1981 = vmatprep.subr.bf16.mxu0 0
        %1982 = vmatpush1.bf16.msra.mxu0 %v1964
        %1983 = vmatprep.subr.bf16.mxu0 0
        %1984 = vmatpush1.bf16.msra.mxu0 %v1965
        %1985 = vmatprep.subr.bf16.mxu0 0
        %1986 = vmatpush1.bf16.msra.mxu0 %v1966
        %1987 = vmatprep.subr.bf16.mxu0 0
        %1988 = vmatpush1.bf16.msra.mxu0 %v1967
        %1989 = vmatprep.subr.bf16.mxu0 0
        %1990 = vmatpush1.bf16.msra.mxu0 %v1968
        %1991 = vmatprep.subr.bf16.mxu0 0
        %1992 = vmatpush1.bf16.msra.mxu0 %v1969
        %1993 = vmatprep.subr.bf16.mxu0 0
        %1994 = vmatpush1.bf16.msra.mxu0 %v1970
        %1995 = vmatprep.subr.bf16.mxu0 0
        %1996 = vmatpush1.bf16.msra.mxu0 0
        %1997 = vmatprep.subr.bf16.mxu0 0
        %1998 = vmatpush1.bf16.msra.mxu0 0
        %1999 = vmatprep.subr.bf16.mxu0 0
        %2000 = vmatpush1.bf16.msra.mxu0 0
        %2001 = vmatprep.subr.bf16.mxu0 0
        %2002 = vmatpush1.bf16.msra.mxu0 0
        %2003 = vmatprep.subr.bf16.mxu0 0
        %2004 = vmatpush1.bf16.msra.mxu0 0
        %2005 = vmatprep.subr.bf16.mxu0 0
        %2006 = vmatpush1.bf16.msra.mxu0 0
        %2007 = vmatprep.subr.bf16.mxu0 0
        %2008 = vmatpush1.bf16.msra.mxu0 0
        %2009 = vmatprep.subr.bf16.mxu0 0
        %2010 = vmatpush1.bf16.msra.mxu0 0
        %2011 = vmatprep.mubr.bf16.mxu0 0
        %2012 = vmatmul.mubr.bf16.gmra.mrb[0].mxu0 %v1213
        %v2013 = vpop.f32.mrb[0].mxu0
        %v2014 = vadd.f32 %v1929, %v2013
        %v2015 = vpop.f32.mrb[0].mxu0
        %v2016 = vpop.f32.mrb[0].mxu0
        %v2017 = vadd.f32 %v1929, %v2016
        %v2018 = vpop.f32.mrb[0].mxu0
        %2019 = vdwg.mxu0
        %v2020 = vpack.c.bf16 %v1791, %v1790
        %v2021 = vpack.c.bf16 %v1903, %v1900
        %v2023 = vsel %vm1554, %v2020, 0
        %v2026 = vsel %vm1554, %v2021, 0
        %2028 = vmatprep.subr.bf16.mxu0 0
        %2029 = vmatpush1.bf16.xpose.msra.mxu0 %v2026
        %2030 = vmatprep.subr.bf16.mxu0 0
        %2031 = vmatpush1.bf16.xpose.msra.mxu0 0
        %2032 = vmatprep.subr.bf16.mxu0 0
        %2033 = vmatpush1.bf16.xpose.msra.mxu0 0
        %2034 = vmatprep.subr.bf16.mxu0 0
        %2035 = vmatpush1.bf16.xpose.msra.mxu0 0
        %2036 = vmatprep.subr.bf16.mxu0 0
        %2037 = vmatpush1.bf16.xpose.msra.mxu0 0
        %2038 = vmatprep.subr.bf16.mxu0 0
        %2039 = vmatpush1.bf16.xpose.msra.mxu0 0
        %2040 = vmatprep.subr.bf16.mxu0 0
        %2041 = vmatpush1.bf16.xpose.msra.mxu0 0
        %2042 = vmatprep.subr.bf16.mxu0 0
        %2043 = vmatpush1.bf16.xpose.msra.mxu0 0
        %2044 = vmatprep.subr.bf16.mxu0 0
        %2045 = vmatpush1.bf16.xpose.msra.mxu0 0
        %2046 = vmatprep.subr.bf16.mxu0 0
        %2047 = vmatpush1.bf16.xpose.msra.mxu0 0
        %2048 = vmatprep.subr.bf16.mxu0 0
        %2049 = vmatpush1.bf16.xpose.msra.mxu0 0
        %2050 = vmatprep.subr.bf16.mxu0 0
        %2051 = vmatpush1.bf16.xpose.msra.mxu0 0
        %2052 = vmatprep.subr.bf16.mxu0 0
        %2053 = vmatpush1.bf16.xpose.msra.mxu0 0
        %2054 = vmatprep.subr.bf16.mxu0 0
        %2055 = vmatpush1.bf16.xpose.msra.mxu0 0
        %2056 = vmatprep.subr.bf16.mxu0 0
        %2057 = vmatpush1.bf16.xpose.msra.mxu0 0
        %2058 = vmatprep.subr.bf16.mxu0 0
        %2059 = vmatpush1.bf16.xpose.msra.mxu0 0
        %2060 = vmatprep.mubr.bf16.mxu0 0
        %2061 = vmatmul.mubr.bf16.gmra.mrb[0].mxu0 %v2023
        %v2062 = vpop.f32.mrb[0].mxu0
        %v2063 = vadd.f32 0.0, %v2062
        %v2064 = vpop.f32.mrb[0].mxu0
        %v2065 = vpop.f32.mrb[0].mxu0
        %v2066 = vadd.f32 0.0, %v2065
        %v2067 = vpop.f32.mrb[0].mxu0
        %2068 = vdwg.mxu0
        %v2069 = vsel %vm1602, %v2063, -inf
        %2070 = vmax.xlane.f32.xlu0 %v2069
        %v2071 = vpop.xlane.xlu0 %2070
        %v2072 = vsel %vm1602, %v2066, -inf
        %2073 = vmax.xlane.f32.xlu0 %v2072
        %v2074 = vpop.xlane.xlu0 %2073
        %v2075 = vsub.f32 %v2063, %v2071
        %v2076 = vsub.f32 %v2066, %v2074
        %v2077 = vmul.f32 %v2075, 1.442695
        %v2078 = vpow.pop %v2077
        %v2079 = vmul.f32 %v2076, 1.442695
        %v2080 = vpow.pop %v2079
        %v2081 = vsel %vm1602, %v2078, 0.0
        %2082 = vadd.xlane.f32.xlu0 %v2081
        %v2083 = vpop.xlane.xlu0 %2082
        %v2084 = vsel %vm1602, %v2080, 0.0
        %2085 = vadd.xlane.f32.xlu0 %v2084
        %v2086 = vpop.xlane.xlu0 %2085
        %v2087 = vpack.c.bf16 %v2080, %v2078
        %v2088 = vpack.c.bf16 %v2017, %v2014
        %v2090 = vsel %vm1602, %v2087, 0
        %2092 = vmatprep.subr.bf16.mxu0 0
        %2093 = vmatpush1.bf16.msra.mxu0 %v2088
        %2094 = vmatprep.subr.bf16.mxu0 0
        %2095 = vmatpush1.bf16.msra.mxu0 0
        %2096 = vmatprep.subr.bf16.mxu0 0
        %2097 = vmatpush1.bf16.msra.mxu0 0
        %2098 = vmatprep.subr.bf16.mxu0 0
        %2099 = vmatpush1.bf16.msra.mxu0 0
        %2100 = vmatprep.subr.bf16.mxu0 0
        %2101 = vmatpush1.bf16.msra.mxu0 0
        %2102 = vmatprep.subr.bf16.mxu0 0
        %2103 = vmatpush1.bf16.msra.mxu0 0
        %2104 = vmatprep.subr.bf16.mxu0 0
        %2105 = vmatpush1.bf16.msra.mxu0 0
        %2106 = vmatprep.subr.bf16.mxu0 0
        %2107 = vmatpush1.bf16.msra.mxu0 0
        %2108 = vmatprep.subr.bf16.mxu0 0
        %2109 = vmatpush1.bf16.msra.mxu0 0
        %2110 = vmatprep.subr.bf16.mxu0 0
        %2111 = vmatpush1.bf16.msra.mxu0 0
        %2112 = vmatprep.subr.bf16.mxu0 0
        %2113 = vmatpush1.bf16.msra.mxu0 0
        %2114 = vmatprep.subr.bf16.mxu0 0
        %2115 = vmatpush1.bf16.msra.mxu0 0
        %2116 = vmatprep.subr.bf16.mxu0 0
        %2117 = vmatpush1.bf16.msra.mxu0 0
        %2118 = vmatprep.subr.bf16.mxu0 0
        %2119 = vmatpush1.bf16.msra.mxu0 0
        %2120 = vmatprep.subr.bf16.mxu0 0
        %2121 = vmatpush1.bf16.msra.mxu0 0
        %2122 = vmatprep.subr.bf16.mxu0 0
        %2123 = vmatpush1.bf16.msra.mxu0 0
        %2124 = vmatprep.mubr.bf16.mxu0 0
        %2125 = vmatmul.mubr.bf16.gmra.mrb[0].mxu0 %v2090
        %v2126 = vpop.f32.mrb[0].mxu0
        %v2127 = vadd.f32 0.0, %v2126
        %v2128 = vpop.f32.mrb[0].mxu0
        %v2129 = vpop.f32.mrb[0].mxu0
        %v2130 = vadd.f32 0.0, %v2129
        %v2131 = vpop.f32.mrb[0].mxu0
        %2132 = vdwg.mxu0
        %v2133 = vrcp.pop %v2083
        %v2134 = vrcp.pop %v2086
        %v2135 = vmul.f32 %v2127, %v2133
        %v2136 = vmul.f32 %v2130, %v2134
        %v2137 = vpack.c.bf16 %v2136, %v2135
        %s2138 = scalar_lea.vmem %s973, 16 [#allocation18]
        %v2139 = vld [vmem:[%s2138] sm:$0xf]
        %v2140 = vld [vmem:[%s2138 + $0x4] sm:$0xf]
        %v2141 = vld [vmem:[%s2138 + $0x8] sm:$0xf]
        %v2142 = vld [vmem:[%s2138 + $0xc] sm:$0xf]
        %v2147 = vunpack.c.l.b16 %v2139
        %v2148 = vunpack.c.l.b16 %v2140
        %v2149 = vunpack.c.l.b16 %v2141
        %v2150 = vunpack.c.l.b16 %v2142
        %v2151 = vpack.c.b16 %v2148, %v2147
        %v2152 = vpack.c.b16 %v2150, %v2149
        %v2156 = vsel %vm1554, %v2137, 0
        %2158 = vmatprep.subr.bf16.mxu0 0
        %2159 = vmatpush1.bf16.msra.mxu0 %v2151
        %2160 = vmatprep.subr.bf16.mxu0 0
        %2161 = vmatpush1.bf16.msra.mxu0 %v2152
        %2162 = vmatprep.subr.bf16.mxu0 0
        %2163 = vmatpush1.bf16.msra.mxu0 0
        %2164 = vmatprep.subr.bf16.mxu0 0
        %2165 = vmatpush1.bf16.msra.mxu0 0
        %2166 = vmatprep.subr.bf16.mxu0 0
        %2167 = vmatpush1.bf16.msra.mxu0 0
        %2168 = vmatprep.subr.bf16.mxu0 0
        %2169 = vmatpush1.bf16.msra.mxu0 0
        %2170 = vmatprep.subr.bf16.mxu0 0
        %2171 = vmatpush1.bf16.msra.mxu0 0
        %2172 = vmatprep.subr.bf16.mxu0 0
        %2173 = vmatpush1.bf16.msra.mxu0 0
        %2174 = vmatprep.subr.bf16.mxu0 0
        %2175 = vmatpush1.bf16.msra.mxu0 0
        %2176 = vmatprep.subr.bf16.mxu0 0
        %2177 = vmatpush1.bf16.msra.mxu0 0
        %2178 = vmatprep.subr.bf16.mxu0 0
        %2179 = vmatpush1.bf16.msra.mxu0 0
        %2180 = vmatprep.subr.bf16.mxu0 0
        %2181 = vmatpush1.bf16.msra.mxu0 0
        %2182 = vmatprep.subr.bf16.mxu0 0
        %2183 = vmatpush1.bf16.msra.mxu0 0
        %2184 = vmatprep.subr.bf16.mxu0 0
        %2185 = vmatpush1.bf16.msra.mxu0 0
        %2186 = vmatprep.subr.bf16.mxu0 0
        %2187 = vmatpush1.bf16.msra.mxu0 0
        %2188 = vmatprep.subr.bf16.mxu0 0
        %2189 = vmatpush1.bf16.msra.mxu0 0
        %2190 = vmatprep.mubr.bf16.mxu0 0
        %2191 = vmatmul.mubr.bf16.gmra.mrb[0].mxu0 %v2156
        %v2192 = vpop.f32.mrb[0].mxu0
        %v2193 = vadd.f32 0.0, %v2192
        %v2194 = vpop.f32.mrb[0].mxu0
        %v2195 = vpop.f32.mrb[0].mxu0
        %v2196 = vadd.f32 0.0, %v2195
        %v2197 = vpop.f32.mrb[0].mxu0
        %2198 = vdwg.mxu0
        %v2203 = vunpack.c.l.b16 %v1672
        %v2204 = vunpack.c.l.b16 %v1673
        %v2205 = vunpack.c.l.b16 %v1674
        %v2206 = vunpack.c.l.b16 %v1675
        %v2207 = vpack.c.b16 %v2204, %v2203
        %v2208 = vpack.c.b16 %v2206, %v2205
        %v2212 = vsel %vm1554, %v1671, 0
        %2214 = vmatprep.subr.bf16.mxu0 0
        %2215 = vmatpush1.bf16.msra.mxu0 %v2207
        %2216 = vmatprep.subr.bf16.mxu0 0
        %2217 = vmatpush1.bf16.msra.mxu0 %v2208
        %2218 = vmatprep.subr.bf16.mxu0 0
        %2219 = vmatpush1.bf16.msra.mxu0 0
        %2220 = vmatprep.subr.bf16.mxu0 0
        %2221 = vmatpush1.bf16.msra.mxu0 0
        %2222 = vmatprep.subr.bf16.mxu0 0
        %2223 = vmatpush1.bf16.msra.mxu0 0
        %2224 = vmatprep.subr.bf16.mxu0 0
        %2225 = vmatpush1.bf16.msra.mxu0 0
        %2226 = vmatprep.subr.bf16.mxu0 0
        %2227 = vmatpush1.bf16.msra.mxu0 0
        %2228 = vmatprep.subr.bf16.mxu0 0
        %2229 = vmatpush1.bf16.msra.mxu0 0
        %2230 = vmatprep.subr.bf16.mxu0 0
        %2231 = vmatpush1.bf16.msra.mxu0 0
        %2232 = vmatprep.subr.bf16.mxu0 0
        %2233 = vmatpush1.bf16.msra.mxu0 0
        %2234 = vmatprep.subr.bf16.mxu0 0
        %2235 = vmatpush1.bf16.msra.mxu0 0
        %2236 = vmatprep.subr.bf16.mxu0 0
        %2237 = vmatpush1.bf16.msra.mxu0 0
        %2238 = vmatprep.subr.bf16.mxu0 0
        %2239 = vmatpush1.bf16.msra.mxu0 0
        %2240 = vmatprep.subr.bf16.mxu0 0
        %2241 = vmatpush1.bf16.msra.mxu0 0
        %2242 = vmatprep.subr.bf16.mxu0 0
        %2243 = vmatpush1.bf16.msra.mxu0 0
        %2244 = vmatprep.subr.bf16.mxu0 0
        %2245 = vmatpush1.bf16.msra.mxu0 0
        %2246 = vmatprep.mubr.bf16.mxu0 0
        %2247 = vmatmul.mubr.bf16.gmra.mrb[0].mxu0 %v2212
        %v2248 = vpop.f32.mrb[0].mxu0
        %v2249 = vadd.f32 %v2193, %v2248
        %v2250 = vpop.f32.mrb[0].mxu0
        %v2251 = vpop.f32.mrb[0].mxu0
        %v2252 = vadd.f32 %v2196, %v2251
        %v2253 = vpop.f32.mrb[0].mxu0
        %2254 = vdwg.mxu0
        %s2255 = scalar_lea.vmem %s919, 128 [#allocation9]
        %v2256 = vld [vmem:[%s2255] sm:$0xf]
        %v2257 = vld [vmem:[%s2255 + $0x4] sm:$0xf]
        %v2258 = vld [vmem:[%s2255 + $0x8] sm:$0xf]
        %v2259 = vld [vmem:[%s2255 + $0xc] sm:$0xf]
        %v2260 = vld [vmem:[%s2255 + $0x10] sm:$0xf]
        %v2261 = vld [vmem:[%s2255 + $0x14] sm:$0xf]
        %v2262 = vld [vmem:[%s2255 + $0x18] sm:$0xf]
        %v2263 = vld [vmem:[%s2255 + $0x1c] sm:$0xf]
        %v2264 = vld [vmem:[%s2255 + $0x20] sm:$0xf]
        %v2265 = vld [vmem:[%s2255 + $0x24] sm:$0xf]
        %v2266 = vld [vmem:[%s2255 + $0x28] sm:$0xf]
        %v2267 = vld [vmem:[%s2255 + $0x2c] sm:$0xf]
        %v2268 = vld [vmem:[%s2255 + $0x30] sm:$0xf]
        %v2269 = vld [vmem:[%s2255 + $0x34] sm:$0xf]
        %v2270 = vld [vmem:[%s2255 + $0x38] sm:$0xf]
        %v2271 = vld [vmem:[%s2255 + $0x3c] sm:$0xf]
        %s2272 = scalar_lea.vmem %s928, 2 [#allocation11]
        %v2273 = vld [vmem:[%s2272] sm:$0x1]
        %v2275 = vlaneseq
        %v2276 = vshrl.u32 %v2275, 7
        %v2277 = vsub.s32 0, %v2276
        %v2278 = vrot.slane %v2273, %v2277
        %v2296 = vunpack.c.l.b16 %v2256
        %v2297 = vunpack.c.l.b16 %v2257
        %v2298 = vunpack.c.l.b16 %v2258
        %v2299 = vunpack.c.l.b16 %v2259
        %v2300 = vunpack.c.l.b16 %v2260
        %v2301 = vunpack.c.l.b16 %v2261
        %v2302 = vunpack.c.l.b16 %v2262
        %v2303 = vunpack.c.l.b16 %v2263
        %v2304 = vunpack.c.l.b16 %v2264
        %v2305 = vunpack.c.l.b16 %v2265
        %v2306 = vunpack.c.l.b16 %v2266
        %v2307 = vunpack.c.l.b16 %v2267
        %v2308 = vunpack.c.l.b16 %v2268
        %v2309 = vunpack.c.l.b16 %v2269
        %v2310 = vunpack.c.l.b16 %v2270
        %v2311 = vunpack.c.l.b16 %v2271
        %v2312 = vpack.c.b16 %v2297, %v2296
        %v2313 = vpack.c.b16 %v2299, %v2298
        %v2314 = vpack.c.b16 %v2301, %v2300
        %v2315 = vpack.c.b16 %v2303, %v2302
        %v2316 = vpack.c.b16 %v2305, %v2304
        %v2317 = vpack.c.b16 %v2307, %v2306
        %v2318 = vpack.c.b16 %v2309, %v2308
        %v2319 = vpack.c.b16 %v2311, %v2310
        %2328 = vmatprep.subr.bf16.mxu0 0
        %2329 = vmatpush1.bf16.msra.mxu0 %v2312
        %2330 = vmatprep.subr.bf16.mxu0 0
        %2331 = vmatpush1.bf16.msra.mxu0 %v2313
        %2332 = vmatprep.subr.bf16.mxu0 0
        %2333 = vmatpush1.bf16.msra.mxu0 %v2314
        %2334 = vmatprep.subr.bf16.mxu0 0
        %2335 = vmatpush1.bf16.msra.mxu0 %v2315
        %2336 = vmatprep.subr.bf16.mxu0 0
        %2337 = vmatpush1.bf16.msra.mxu0 %v2316
        %2338 = vmatprep.subr.bf16.mxu0 0
        %2339 = vmatpush1.bf16.msra.mxu0 %v2317
        %2340 = vmatprep.subr.bf16.mxu0 0
        %2341 = vmatpush1.bf16.msra.mxu0 %v2318
        %2342 = vmatprep.subr.bf16.mxu0 0
        %2343 = vmatpush1.bf16.msra.mxu0 %v2319
        %2344 = vmatprep.subr.bf16.mxu0 0
        %2345 = vmatpush1.bf16.msra.mxu0 0
        %2346 = vmatprep.subr.bf16.mxu0 0
        %2347 = vmatpush1.bf16.msra.mxu0 0
        %2348 = vmatprep.subr.bf16.mxu0 0
        %2349 = vmatpush1.bf16.msra.mxu0 0
        %2350 = vmatprep.subr.bf16.mxu0 0
        %2351 = vmatpush1.bf16.msra.mxu0 0
        %2352 = vmatprep.subr.bf16.mxu0 0
        %2353 = vmatpush1.bf16.msra.mxu0 0
        %2354 = vmatprep.subr.bf16.mxu0 0
        %2355 = vmatpush1.bf16.msra.mxu0 0
        %2356 = vmatprep.subr.bf16.mxu0 0
        %2357 = vmatpush1.bf16.msra.mxu0 0
        %2358 = vmatprep.subr.bf16.mxu0 0
        %2359 = vmatpush1.bf16.msra.mxu0 0
        %2360 = vmatprep.mubr.bf16.mxu0 0
        %2361 = vmatmul.mubr.bf16.gmra.mrb[0].mxu0 %v1213
        %v2362 = vpop.f32.mrb[0].mxu0
        %v2363 = vadd.f32 %v2278, %v2362
        %v2364 = vpop.f32.mrb[0].mxu0
        %v2365 = vpop.f32.mrb[0].mxu0
        %v2366 = vadd.f32 %v2278, %v2365
        %v2367 = vpop.f32.mrb[0].mxu0
        %2368 = vdwg.mxu0
        %v2369 = vmul.f32 %v2363, 0.17677669
        %v2370 = vmul.f32 %v2366, 0.17677669
        %s2371 = scalar_lea.vmem %s937, 128 [#allocation12]
        %v2372 = vld [vmem:[%s2371] sm:$0xf]
        %v2373 = vld [vmem:[%s2371 + $0x4] sm:$0xf]
        %v2374 = vld [vmem:[%s2371 + $0x8] sm:$0xf]
        %v2375 = vld [vmem:[%s2371 + $0xc] sm:$0xf]
        %v2376 = vld [vmem:[%s2371 + $0x10] sm:$0xf]
        %v2377 = vld [vmem:[%s2371 + $0x14] sm:$0xf]
        %v2378 = vld [vmem:[%s2371 + $0x18] sm:$0xf]
        %v2379 = vld [vmem:[%s2371 + $0x1c] sm:$0xf]
        %v2380 = vld [vmem:[%s2371 + $0x20] sm:$0xf]
        %v2381 = vld [vmem:[%s2371 + $0x24] sm:$0xf]
        %v2382 = vld [vmem:[%s2371 + $0x28] sm:$0xf]
        %v2383 = vld [vmem:[%s2371 + $0x2c] sm:$0xf]
        %v2384 = vld [vmem:[%s2371 + $0x30] sm:$0xf]
        %v2385 = vld [vmem:[%s2371 + $0x34] sm:$0xf]
        %v2386 = vld [vmem:[%s2371 + $0x38] sm:$0xf]
        %v2387 = vld [vmem:[%s2371 + $0x3c] sm:$0xf]
        %s2388 = scalar_lea.vmem %s946, 2 [#allocation14]
        %v2389 = vld [vmem:[%s2388] sm:$0x1]
        %v2391 = vlaneseq
        %v2392 = vshrl.u32 %v2391, 7
        %v2393 = vsub.s32 0, %v2392
        %v2394 = vrot.slane %v2389, %v2393
        %v2412 = vunpack.c.l.b16 %v2372
        %v2413 = vunpack.c.l.b16 %v2373
        %v2414 = vunpack.c.l.b16 %v2374
        %v2415 = vunpack.c.l.b16 %v2375
        %v2416 = vunpack.c.l.b16 %v2376
        %v2417 = vunpack.c.l.b16 %v2377
        %v2418 = vunpack.c.l.b16 %v2378
        %v2419 = vunpack.c.l.b16 %v2379
        %v2420 = vunpack.c.l.b16 %v2380
        %v2421 = vunpack.c.l.b16 %v2381
        %v2422 = vunpack.c.l.b16 %v2382
        %v2423 = vunpack.c.l.b16 %v2383
        %v2424 = vunpack.c.l.b16 %v2384
        %v2425 = vunpack.c.l.b16 %v2385
        %v2426 = vunpack.c.l.b16 %v2386
        %v2427 = vunpack.c.l.b16 %v2387
        %v2428 = vpack.c.b16 %v2413, %v2412
        %v2429 = vpack.c.b16 %v2415, %v2414
        %v2430 = vpack.c.b16 %v2417, %v2416
        %v2431 = vpack.c.b16 %v2419, %v2418
        %v2432 = vpack.c.b16 %v2421, %v2420
        %v2433 = vpack.c.b16 %v2423, %v2422
        %v2434 = vpack.c.b16 %v2425, %v2424
        %v2435 = vpack.c.b16 %v2427, %v2426
        %2444 = vmatprep.subr.bf16.mxu0 0
        %2445 = vmatpush1.bf16.msra.mxu0 %v2428
        %2446 = vmatprep.subr.bf16.mxu0 0
        %2447 = vmatpush1.bf16.msra.mxu0 %v2429
        %2448 = vmatprep.subr.bf16.mxu0 0
        %2449 = vmatpush1.bf16.msra.mxu0 %v2430
        %2450 = vmatprep.subr.bf16.mxu0 0
        %2451 = vmatpush1.bf16.msra.mxu0 %v2431
        %2452 = vmatprep.subr.bf16.mxu0 0
        %2453 = vmatpush1.bf16.msra.mxu0 %v2432
        %2454 = vmatprep.subr.bf16.mxu0 0
        %2455 = vmatpush1.bf16.msra.mxu0 %v2433
        %2456 = vmatprep.subr.bf16.mxu0 0
        %2457 = vmatpush1.bf16.msra.mxu0 %v2434
        %2458 = vmatprep.subr.bf16.mxu0 0
        %2459 = vmatpush1.bf16.msra.mxu0 %v2435
        %2460 = vmatprep.subr.bf16.mxu0 0
        %2461 = vmatpush1.bf16.msra.mxu0 0
        %2462 = vmatprep.subr.bf16.mxu0 0
        %2463 = vmatpush1.bf16.msra.mxu0 0
        %2464 = vmatprep.subr.bf16.mxu0 0
        %2465 = vmatpush1.bf16.msra.mxu0 0
        %2466 = vmatprep.subr.bf16.mxu0 0
        %2467 = vmatpush1.bf16.msra.mxu0 0
        %2468 = vmatprep.subr.bf16.mxu0 0
        %2469 = vmatpush1.bf16.msra.mxu0 0
        %2470 = vmatprep.subr.bf16.mxu0 0
        %2471 = vmatpush1.bf16.msra.mxu0 0
        %2472 = vmatprep.subr.bf16.mxu0 0
        %2473 = vmatpush1.bf16.msra.mxu0 0
        %2474 = vmatprep.subr.bf16.mxu0 0
        %2475 = vmatpush1.bf16.msra.mxu0 0
        %2476 = vmatprep.mubr.bf16.mxu0 0
        %2477 = vmatmul.mubr.bf16.gmra.mrb[0].mxu0 %v1213
        %v2478 = vpop.f32.mrb[0].mxu0
        %v2479 = vadd.f32 %v2394, %v2478
        %v2480 = vpop.f32.mrb[0].mxu0
        %v2481 = vpop.f32.mrb[0].mxu0
        %v2482 = vadd.f32 %v2394, %v2481
        %v2483 = vpop.f32.mrb[0].mxu0
        %2484 = vdwg.mxu0
        %s2485 = scalar_lea.vmem %s955, 128 [#allocation15]
        %v2486 = vld [vmem:[%s2485] sm:$0xf]
        %v2487 = vld [vmem:[%s2485 + $0x4] sm:$0xf]
        %v2488 = vld [vmem:[%s2485 + $0x8] sm:$0xf]
        %v2489 = vld [vmem:[%s2485 + $0xc] sm:$0xf]
        %v2490 = vld [vmem:[%s2485 + $0x10] sm:$0xf]
        %v2491 = vld [vmem:[%s2485 + $0x14] sm:$0xf]
        %v2492 = vld [vmem:[%s2485 + $0x18] sm:$0xf]
        %v2493 = vld [vmem:[%s2485 + $0x1c] sm:$0xf]
        %v2494 = vld [vmem:[%s2485 + $0x20] sm:$0xf]
        %v2495 = vld [vmem:[%s2485 + $0x24] sm:$0xf]
        %v2496 = vld [vmem:[%s2485 + $0x28] sm:$0xf]
        %v2497 = vld [vmem:[%s2485 + $0x2c] sm:$0xf]
        %v2498 = vld [vmem:[%s2485 + $0x30] sm:$0xf]
        %v2499 = vld [vmem:[%s2485 + $0x34] sm:$0xf]
        %v2500 = vld [vmem:[%s2485 + $0x38] sm:$0xf]
        %v2501 = vld [vmem:[%s2485 + $0x3c] sm:$0xf]
        %s2502 = scalar_lea.vmem %s964, 2 [#allocation17]
        %v2503 = vld [vmem:[%s2502] sm:$0x1]
        %v2505 = vlaneseq
        %v2506 = vshrl.u32 %v2505, 7
        %v2507 = vsub.s32 0, %v2506
        %v2508 = vrot.slane %v2503, %v2507
        %v2526 = vunpack.c.l.b16 %v2486
        %v2527 = vunpack.c.l.b16 %v2487
        %v2528 = vunpack.c.l.b16 %v2488
        %v2529 = vunpack.c.l.b16 %v2489
        %v2530 = vunpack.c.l.b16 %v2490
        %v2531 = vunpack.c.l.b16 %v2491
        %v2532 = vunpack.c.l.b16 %v2492
        %v2533 = vunpack.c.l.b16 %v2493
        %v2534 = vunpack.c.l.b16 %v2494
        %v2535 = vunpack.c.l.b16 %v2495
        %v2536 = vunpack.c.l.b16 %v2496
        %v2537 = vunpack.c.l.b16 %v2497
        %v2538 = vunpack.c.l.b16 %v2498
        %v2539 = vunpack.c.l.b16 %v2499
        %v2540 = vunpack.c.l.b16 %v2500
        %v2541 = vunpack.c.l.b16 %v2501
        %v2542 = vpack.c.b16 %v2527, %v2526
        %v2543 = vpack.c.b16 %v2529, %v2528
        %v2544 = vpack.c.b16 %v2531, %v2530
        %v2545 = vpack.c.b16 %v2533, %v2532
        %v2546 = vpack.c.b16 %v2535, %v2534
        %v2547 = vpack.c.b16 %v2537, %v2536
        %v2548 = vpack.c.b16 %v2539, %v2538
        %v2549 = vpack.c.b16 %v2541, %v2540
        %2558 = vmatprep.subr.bf16.mxu0 0
        %2559 = vmatpush1.bf16.msra.mxu0 %v2542
        %2560 = vmatprep.subr.bf16.mxu0 0
        %2561 = vmatpush1.bf16.msra.mxu0 %v2543
        %2562 = vmatprep.subr.bf16.mxu0 0
        %2563 = vmatpush1.bf16.msra.mxu0 %v2544
        %2564 = vmatprep.subr.bf16.mxu0 0
        %2565 = vmatpush1.bf16.msra.mxu0 %v2545
        %2566 = vmatprep.subr.bf16.mxu0 0
        %2567 = vmatpush1.bf16.msra.mxu0 %v2546
        %2568 = vmatprep.subr.bf16.mxu0 0
        %2569 = vmatpush1.bf16.msra.mxu0 %v2547
        %2570 = vmatprep.subr.bf16.mxu0 0
        %2571 = vmatpush1.bf16.msra.mxu0 %v2548
        %2572 = vmatprep.subr.bf16.mxu0 0
        %2573 = vmatpush1.bf16.msra.mxu0 %v2549
        %2574 = vmatprep.subr.bf16.mxu0 0
        %2575 = vmatpush1.bf16.msra.mxu0 0
        %2576 = vmatprep.subr.bf16.mxu0 0
        %2577 = vmatpush1.bf16.msra.mxu0 0
        %2578 = vmatprep.subr.bf16.mxu0 0
        %2579 = vmatpush1.bf16.msra.mxu0 0
        %2580 = vmatprep.subr.bf16.mxu0 0
        %2581 = vmatpush1.bf16.msra.mxu0 0
        %2582 = vmatprep.subr.bf16.mxu0 0
        %2583 = vmatpush1.bf16.msra.mxu0 0
        %2584 = vmatprep.subr.bf16.mxu0 0
        %2585 = vmatpush1.bf16.msra.mxu0 0
        %2586 = vmatprep.subr.bf16.mxu0 0
        %2587 = vmatpush1.bf16.msra.mxu0 0
        %2588 = vmatprep.subr.bf16.mxu0 0
        %2589 = vmatpush1.bf16.msra.mxu0 0
        %2590 = vmatprep.mubr.bf16.mxu0 0
        %2591 = vmatmul.mubr.bf16.gmra.mrb[0].mxu0 %v1213
        %v2592 = vpop.f32.mrb[0].mxu0
        %v2593 = vadd.f32 %v2508, %v2592
        %v2594 = vpop.f32.mrb[0].mxu0
        %v2595 = vpop.f32.mrb[0].mxu0
        %v2596 = vadd.f32 %v2508, %v2595
        %v2597 = vpop.f32.mrb[0].mxu0
        %2598 = vdwg.mxu0
        %v2599 = vpack.c.bf16 %v2370, %v2369
        %v2600 = vpack.c.bf16 %v2482, %v2479
        %v2602 = vsel %vm1554, %v2599, 0
        %v2605 = vsel %vm1554, %v2600, 0
        %2607 = vmatprep.subr.bf16.mxu0 0
        %2608 = vmatpush1.bf16.xpose.msra.mxu0 %v2605
        %2609 = vmatprep.subr.bf16.mxu0 0
        %2610 = vmatpush1.bf16.xpose.msra.mxu0 0
        %2611 = vmatprep.subr.bf16.mxu0 0
        %2612 = vmatpush1.bf16.xpose.msra.mxu0 0
        %2613 = vmatprep.subr.bf16.mxu0 0
        %2614 = vmatpush1.bf16.xpose.msra.mxu0 0
        %2615 = vmatprep.subr.bf16.mxu0 0
        %2616 = vmatpush1.bf16.xpose.msra.mxu0 0
        %2617 = vmatprep.subr.bf16.mxu0 0
        %2618 = vmatpush1.bf16.xpose.msra.mxu0 0
        %2619 = vmatprep.subr.bf16.mxu0 0
        %2620 = vmatpush1.bf16.xpose.msra.mxu0 0
        %2621 = vmatprep.subr.bf16.mxu0 0
        %2622 = vmatpush1.bf16.xpose.msra.mxu0 0
        %2623 = vmatprep.subr.bf16.mxu0 0
        %2624 = vmatpush1.bf16.xpose.msra.mxu0 0
        %2625 = vmatprep.subr.bf16.mxu0 0
        %2626 = vmatpush1.bf16.xpose.msra.mxu0 0
        %2627 = vmatprep.subr.bf16.mxu0 0
        %2628 = vmatpush1.bf16.xpose.msra.mxu0 0
        %2629 = vmatprep.subr.bf16.mxu0 0
        %2630 = vmatpush1.bf16.xpose.msra.mxu0 0
        %2631 = vmatprep.subr.bf16.mxu0 0
        %2632 = vmatpush1.bf16.xpose.msra.mxu0 0
        %2633 = vmatprep.subr.bf16.mxu0 0
        %2634 = vmatpush1.bf16.xpose.msra.mxu0 0
        %2635 = vmatprep.subr.bf16.mxu0 0
        %2636 = vmatpush1.bf16.xpose.msra.mxu0 0
        %2637 = vmatprep.subr.bf16.mxu0 0
        %2638 = vmatpush1.bf16.xpose.msra.mxu0 0
        %2639 = vmatprep.mubr.bf16.mxu0 0
        %2640 = vmatmul.mubr.bf16.gmra.mrb[0].mxu0 %v2602
        %v2641 = vpop.f32.mrb[0].mxu0
        %v2642 = vadd.f32 0.0, %v2641
        %v2643 = vpop.f32.mrb[0].mxu0
        %v2644 = vpop.f32.mrb[0].mxu0
        %v2645 = vadd.f32 0.0, %v2644
        %v2646 = vpop.f32.mrb[0].mxu0
        %2647 = vdwg.mxu0
        %v2648 = vsel %vm1602, %v2642, -inf
        %2649 = vmax.xlane.f32.xlu0 %v2648
        %v2650 = vpop.xlane.xlu0 %2649
        %v2651 = vsel %vm1602, %v2645, -inf
        %2652 = vmax.xlane.f32.xlu0 %v2651
        %v2653 = vpop.xlane.xlu0 %2652
        %v2654 = vsub.f32 %v2642, %v2650
        %v2655 = vsub.f32 %v2645, %v2653
        %v2656 = vmul.f32 %v2654, 1.442695
        %v2657 = vpow.pop %v2656
        %v2658 = vmul.f32 %v2655, 1.442695
        %v2659 = vpow.pop %v2658
        %v2660 = vsel %vm1602, %v2657, 0.0
        %2661 = vadd.xlane.f32.xlu0 %v2660
        %v2662 = vpop.xlane.xlu0 %2661
        %v2663 = vsel %vm1602, %v2659, 0.0
        %2664 = vadd.xlane.f32.xlu0 %v2663
        %v2665 = vpop.xlane.xlu0 %2664
        %v2666 = vpack.c.bf16 %v2659, %v2657
        %v2667 = vpack.c.bf16 %v2596, %v2593
        %v2669 = vsel %vm1602, %v2666, 0
        %2671 = vmatprep.subr.bf16.mxu0 0
        %2672 = vmatpush1.bf16.msra.mxu0 %v2667
        %2673 = vmatprep.subr.bf16.mxu0 0
        %2674 = vmatpush1.bf16.msra.mxu0 0
        %2675 = vmatprep.subr.bf16.mxu0 0
        %2676 = vmatpush1.bf16.msra.mxu0 0
        %2677 = vmatprep.subr.bf16.mxu0 0
        %2678 = vmatpush1.bf16.msra.mxu0 0
        %2679 = vmatprep.subr.bf16.mxu0 0
        %2680 = vmatpush1.bf16.msra.mxu0 0
        %2681 = vmatprep.subr.bf16.mxu0 0
        %2682 = vmatpush1.bf16.msra.mxu0 0
        %2683 = vmatprep.subr.bf16.mxu0 0
        %2684 = vmatpush1.bf16.msra.mxu0 0
        %2685 = vmatprep.subr.bf16.mxu0 0
        %2686 = vmatpush1.bf16.msra.mxu0 0
        %2687 = vmatprep.subr.bf16.mxu0 0
        %2688 = vmatpush1.bf16.msra.mxu0 0
        %2689 = vmatprep.subr.bf16.mxu0 0
        %2690 = vmatpush1.bf16.msra.mxu0 0
        %2691 = vmatprep.subr.bf16.mxu0 0
        %2692 = vmatpush1.bf16.msra.mxu0 0
        %2693 = vmatprep.subr.bf16.mxu0 0
        %2694 = vmatpush1.bf16.msra.mxu0 0
        %2695 = vmatprep.subr.bf16.mxu0 0
        %2696 = vmatpush1.bf16.msra.mxu0 0
        %2697 = vmatprep.subr.bf16.mxu0 0
        %2698 = vmatpush1.bf16.msra.mxu0 0
        %2699 = vmatprep.subr.bf16.mxu0 0
        %2700 = vmatpush1.bf16.msra.mxu0 0
        %2701 = vmatprep.subr.bf16.mxu0 0
        %2702 = vmatpush1.bf16.msra.mxu0 0
        %2703 = vmatprep.mubr.bf16.mxu0 0
        %2704 = vmatmul.mubr.bf16.gmra.mrb[0].mxu0 %v2669
        %v2705 = vpop.f32.mrb[0].mxu0
        %v2706 = vadd.f32 0.0, %v2705
        %v2707 = vpop.f32.mrb[0].mxu0
        %v2708 = vpop.f32.mrb[0].mxu0
        %v2709 = vadd.f32 0.0, %v2708
        %v2710 = vpop.f32.mrb[0].mxu0
        %2711 = vdwg.mxu0
        %v2712 = vrcp.pop %v2662
        %v2713 = vrcp.pop %v2665
        %v2714 = vmul.f32 %v2706, %v2712
        %v2715 = vmul.f32 %v2709, %v2713
        %v2716 = vpack.c.bf16 %v2715, %v2714
        %s2717 = scalar_lea.vmem %s973, 32 [#allocation18]
        %v2718 = vld [vmem:[%s2717] sm:$0xf]
        %v2719 = vld [vmem:[%s2717 + $0x4] sm:$0xf]
        %v2720 = vld [vmem:[%s2717 + $0x8] sm:$0xf]
        %v2721 = vld [vmem:[%s2717 + $0xc] sm:$0xf]
        %v2726 = vunpack.c.l.b16 %v2718
        %v2727 = vunpack.c.l.b16 %v2719
        %v2728 = vunpack.c.l.b16 %v2720
        %v2729 = vunpack.c.l.b16 %v2721
        %v2730 = vpack.c.b16 %v2727, %v2726
        %v2731 = vpack.c.b16 %v2729, %v2728
        %v2735 = vsel %vm1554, %v2716, 0
        %2737 = vmatprep.subr.bf16.mxu0 0
        %2738 = vmatpush1.bf16.msra.mxu0 %v2730
        %2739 = vmatprep.subr.bf16.mxu0 0
        %2740 = vmatpush1.bf16.msra.mxu0 %v2731
        %2741 = vmatprep.subr.bf16.mxu0 0
        %2742 = vmatpush1.bf16.msra.mxu0 0
        %2743 = vmatprep.subr.bf16.mxu0 0
        %2744 = vmatpush1.bf16.msra.mxu0 0
        %2745 = vmatprep.subr.bf16.mxu0 0
        %2746 = vmatpush1.bf16.msra.mxu0 0
        %2747 = vmatprep.subr.bf16.mxu0 0
        %2748 = vmatpush1.bf16.msra.mxu0 0
        %2749 = vmatprep.subr.bf16.mxu0 0
        %2750 = vmatpush1.bf16.msra.mxu0 0
        %2751 = vmatprep.subr.bf16.mxu0 0
        %2752 = vmatpush1.bf16.msra.mxu0 0
        %2753 = vmatprep.subr.bf16.mxu0 0
        %2754 = vmatpush1.bf16.msra.mxu0 0
        %2755 = vmatprep.subr.bf16.mxu0 0
        %2756 = vmatpush1.bf16.msra.mxu0 0
        %2757 = vmatprep.subr.bf16.mxu0 0
        %2758 = vmatpush1.bf16.msra.mxu0 0
        %2759 = vmatprep.subr.bf16.mxu0 0
        %2760 = vmatpush1.bf16.msra.mxu0 0
        %2761 = vmatprep.subr.bf16.mxu0 0
        %2762 = vmatpush1.bf16.msra.mxu0 0
        %2763 = vmatprep.subr.bf16.mxu0 0
        %2764 = vmatpush1.bf16.msra.mxu0 0
        %2765 = vmatprep.subr.bf16.mxu0 0
        %2766 = vmatpush1.bf16.msra.mxu0 0
        %2767 = vmatprep.subr.bf16.mxu0 0
        %2768 = vmatpush1.bf16.msra.mxu0 0
        %2769 = vmatprep.mubr.bf16.mxu0 0
        %2770 = vmatmul.mubr.bf16.gmra.mrb[0].mxu0 %v2735
        %v2771 = vpop.f32.mrb[0].mxu0
        %v2772 = vadd.f32 0.0, %v2771
        %v2773 = vpop.f32.mrb[0].mxu0
        %v2774 = vpop.f32.mrb[0].mxu0
        %v2775 = vadd.f32 0.0, %v2774
        %v2776 = vpop.f32.mrb[0].mxu0
        %2777 = vdwg.mxu0
        %v2778 = vadd.f32 %v2249, %v2772
        %v2779 = vadd.f32 %v2252, %v2775
        %s2780 = scalar_lea.vmem %s919, 192 [#allocation9]
        %v2781 = vld [vmem:[%s2780] sm:$0xf]
        %v2782 = vld [vmem:[%s2780 + $0x4] sm:$0xf]
        %v2783 = vld [vmem:[%s2780 + $0x8] sm:$0xf]
        %v2784 = vld [vmem:[%s2780 + $0xc] sm:$0xf]
        %v2785 = vld [vmem:[%s2780 + $0x10] sm:$0xf]
        %v2786 = vld [vmem:[%s2780 + $0x14] sm:$0xf]
        %v2787 = vld [vmem:[%s2780 + $0x18] sm:$0xf]
        %v2788 = vld [vmem:[%s2780 + $0x1c] sm:$0xf]
        %v2789 = vld [vmem:[%s2780 + $0x20] sm:$0xf]
        %v2790 = vld [vmem:[%s2780 + $0x24] sm:$0xf]
        %v2791 = vld [vmem:[%s2780 + $0x28] sm:$0xf]
        %v2792 = vld [vmem:[%s2780 + $0x2c] sm:$0xf]
        %v2793 = vld [vmem:[%s2780 + $0x30] sm:$0xf]
        %v2794 = vld [vmem:[%s2780 + $0x34] sm:$0xf]
        %v2795 = vld [vmem:[%s2780 + $0x38] sm:$0xf]
        %v2796 = vld [vmem:[%s2780 + $0x3c] sm:$0xf]
        %s2797 = scalar_lea.vmem %s928, 3 [#allocation11]
        %v2798 = vld [vmem:[%s2797] sm:$0x1]
        %v2800 = vlaneseq
        %v2801 = vshrl.u32 %v2800, 7
        %v2802 = vsub.s32 0, %v2801
        %v2803 = vrot.slane %v2798, %v2802
        %v2821 = vunpack.c.l.b16 %v2781
        %v2822 = vunpack.c.l.b16 %v2782
        %v2823 = vunpack.c.l.b16 %v2783
        %v2824 = vunpack.c.l.b16 %v2784
        %v2825 = vunpack.c.l.b16 %v2785
        %v2826 = vunpack.c.l.b16 %v2786
        %v2827 = vunpack.c.l.b16 %v2787
        %v2828 = vunpack.c.l.b16 %v2788
        %v2829 = vunpack.c.l.b16 %v2789
        %v2830 = vunpack.c.l.b16 %v2790
        %v2831 = vunpack.c.l.b16 %v2791
        %v2832 = vunpack.c.l.b16 %v2792
        %v2833 = vunpack.c.l.b16 %v2793
        %v2834 = vunpack.c.l.b16 %v2794
        %v2835 = vunpack.c.l.b16 %v2795
        %v2836 = vunpack.c.l.b16 %v2796
        %v2837 = vpack.c.b16 %v2822, %v2821
        %v2838 = vpack.c.b16 %v2824, %v2823
        %v2839 = vpack.c.b16 %v2826, %v2825
        %v2840 = vpack.c.b16 %v2828, %v2827
        %v2841 = vpack.c.b16 %v2830, %v2829
        %v2842 = vpack.c.b16 %v2832, %v2831
        %v2843 = vpack.c.b16 %v2834, %v2833
        %v2844 = vpack.c.b16 %v2836, %v2835
        %2853 = vmatprep.subr.bf16.mxu0 0
        %2854 = vmatpush1.bf16.msra.mxu0 %v2837
        %2855 = vmatprep.subr.bf16.mxu0 0
        %2856 = vmatpush1.bf16.msra.mxu0 %v2838
        %2857 = vmatprep.subr.bf16.mxu0 0
        %2858 = vmatpush1.bf16.msra.mxu0 %v2839
        %2859 = vmatprep.subr.bf16.mxu0 0
        %2860 = vmatpush1.bf16.msra.mxu0 %v2840
        %2861 = vmatprep.subr.bf16.mxu0 0
        %2862 = vmatpush1.bf16.msra.mxu0 %v2841
        %2863 = vmatprep.subr.bf16.mxu0 0
        %2864 = vmatpush1.bf16.msra.mxu0 %v2842
        %2865 = vmatprep.subr.bf16.mxu0 0
        %2866 = vmatpush1.bf16.msra.mxu0 %v2843
        %2867 = vmatprep.subr.bf16.mxu0 0
        %2868 = vmatpush1.bf16.msra.mxu0 %v2844
        %2869 = vmatprep.subr.bf16.mxu0 0
        %2870 = vmatpush1.bf16.msra.mxu0 0
        %2871 = vmatprep.subr.bf16.mxu0 0
        %2872 = vmatpush1.bf16.msra.mxu0 0
        %2873 = vmatprep.subr.bf16.mxu0 0
        %2874 = vmatpush1.bf16.msra.mxu0 0
        %2875 = vmatprep.subr.bf16.mxu0 0
        %2876 = vmatpush1.bf16.msra.mxu0 0
        %2877 = vmatprep.subr.bf16.mxu0 0
        %2878 = vmatpush1.bf16.msra.mxu0 0
        %2879 = vmatprep.subr.bf16.mxu0 0
        %2880 = vmatpush1.bf16.msra.mxu0 0
        %2881 = vmatprep.subr.bf16.mxu0 0
        %2882 = vmatpush1.bf16.msra.mxu0 0
        %2883 = vmatprep.subr.bf16.mxu0 0
        %2884 = vmatpush1.bf16.msra.mxu0 0
        %2885 = vmatprep.mubr.bf16.mxu0 0
        %2886 = vmatmul.mubr.bf16.gmra.mrb[0].mxu0 %v1213
        %v2887 = vpop.f32.mrb[0].mxu0
        %v2888 = vadd.f32 %v2803, %v2887
        %v2889 = vpop.f32.mrb[0].mxu0
        %v2890 = vpop.f32.mrb[0].mxu0
        %v2891 = vadd.f32 %v2803, %v2890
        %v2892 = vpop.f32.mrb[0].mxu0
        %2893 = vdwg.mxu0
        %v2894 = vmul.f32 %v2888, 0.17677669
        %v2895 = vmul.f32 %v2891, 0.17677669
        %s2896 = scalar_lea.vmem %s937, 192 [#allocation12]
        %v2897 = vld [vmem:[%s2896] sm:$0xf]
        %v2898 = vld [vmem:[%s2896 + $0x4] sm:$0xf]
        %v2899 = vld [vmem:[%s2896 + $0x8] sm:$0xf]
        %v2900 = vld [vmem:[%s2896 + $0xc] sm:$0xf]
        %v2901 = vld [vmem:[%s2896 + $0x10] sm:$0xf]
        %v2902 = vld [vmem:[%s2896 + $0x14] sm:$0xf]
        %v2903 = vld [vmem:[%s2896 + $0x18] sm:$0xf]
        %v2904 = vld [vmem:[%s2896 + $0x1c] sm:$0xf]
        %v2905 = vld [vmem:[%s2896 + $0x20] sm:$0xf]
        %v2906 = vld [vmem:[%s2896 + $0x24] sm:$0xf]
        %v2907 = vld [vmem:[%s2896 + $0x28] sm:$0xf]
        %v2908 = vld [vmem:[%s2896 + $0x2c] sm:$0xf]
        %v2909 = vld [vmem:[%s2896 + $0x30] sm:$0xf]
        %v2910 = vld [vmem:[%s2896 + $0x34] sm:$0xf]
        %v2911 = vld [vmem:[%s2896 + $0x38] sm:$0xf]
        %v2912 = vld [vmem:[%s2896 + $0x3c] sm:$0xf]
        %s2913 = scalar_lea.vmem %s946, 3 [#allocation14]
        %v2914 = vld [vmem:[%s2913] sm:$0x1]
        %v2916 = vlaneseq
        %v2917 = vshrl.u32 %v2916, 7
        %v2918 = vsub.s32 0, %v2917
        %v2919 = vrot.slane %v2914, %v2918
        %v2937 = vunpack.c.l.b16 %v2897
        %v2938 = vunpack.c.l.b16 %v2898
        %v2939 = vunpack.c.l.b16 %v2899
        %v2940 = vunpack.c.l.b16 %v2900
        %v2941 = vunpack.c.l.b16 %v2901
        %v2942 = vunpack.c.l.b16 %v2902
        %v2943 = vunpack.c.l.b16 %v2903
        %v2944 = vunpack.c.l.b16 %v2904
        %v2945 = vunpack.c.l.b16 %v2905
        %v2946 = vunpack.c.l.b16 %v2906
        %v2947 = vunpack.c.l.b16 %v2907
        %v2948 = vunpack.c.l.b16 %v2908
        %v2949 = vunpack.c.l.b16 %v2909
        %v2950 = vunpack.c.l.b16 %v2910
        %v2951 = vunpack.c.l.b16 %v2911
        %v2952 = vunpack.c.l.b16 %v2912
        %v2953 = vpack.c.b16 %v2938, %v2937
        %v2954 = vpack.c.b16 %v2940, %v2939
        %v2955 = vpack.c.b16 %v2942, %v2941
        %v2956 = vpack.c.b16 %v2944, %v2943
        %v2957 = vpack.c.b16 %v2946, %v2945
        %v2958 = vpack.c.b16 %v2948, %v2947
        %v2959 = vpack.c.b16 %v2950, %v2949
        %v2960 = vpack.c.b16 %v2952, %v2951
        %2969 = vmatprep.subr.bf16.mxu0 0
        %2970 = vmatpush1.bf16.msra.mxu0 %v2953
        %2971 = vmatprep.subr.bf16.mxu0 0
        %2972 = vmatpush1.bf16.msra.mxu0 %v2954
        %2973 = vmatprep.subr.bf16.mxu0 0
        %2974 = vmatpush1.bf16.msra.mxu0 %v2955
        %2975 = vmatprep.subr.bf16.mxu0 0
        %2976 = vmatpush1.bf16.msra.mxu0 %v2956
        %2977 = vmatprep.subr.bf16.mxu0 0
        %2978 = vmatpush1.bf16.msra.mxu0 %v2957
        %2979 = vmatprep.subr.bf16.mxu0 0
        %2980 = vmatpush1.bf16.msra.mxu0 %v2958
        %2981 = vmatprep.subr.bf16.mxu0 0
        %2982 = vmatpush1.bf16.msra.mxu0 %v2959
        %2983 = vmatprep.subr.bf16.mxu0 0
        %2984 = vmatpush1.bf16.msra.mxu0 %v2960
        %2985 = vmatprep.subr.bf16.mxu0 0
        %2986 = vmatpush1.bf16.msra.mxu0 0
        %2987 = vmatprep.subr.bf16.mxu0 0
        %2988 = vmatpush1.bf16.msra.mxu0 0
        %2989 = vmatprep.subr.bf16.mxu0 0
        %2990 = vmatpush1.bf16.msra.mxu0 0
        %2991 = vmatprep.subr.bf16.mxu0 0
        %2992 = vmatpush1.bf16.msra.mxu0 0
        %2993 = vmatprep.subr.bf16.mxu0 0
        %2994 = vmatpush1.bf16.msra.mxu0 0
        %2995 = vmatprep.subr.bf16.mxu0 0
        %2996 = vmatpush1.bf16.msra.mxu0 0
        %2997 = vmatprep.subr.bf16.mxu0 0
        %2998 = vmatpush1.bf16.msra.mxu0 0
        %2999 = vmatprep.subr.bf16.mxu0 0
        %3000 = vmatpush1.bf16.msra.mxu0 0
        %3001 = vmatprep.mubr.bf16.mxu0 0
        %3002 = vmatmul.mubr.bf16.gmra.mrb[0].mxu0 %v1213
        %v3003 = vpop.f32.mrb[0].mxu0
        %v3004 = vadd.f32 %v2919, %v3003
        %v3005 = vpop.f32.mrb[0].mxu0
        %v3006 = vpop.f32.mrb[0].mxu0
        %v3007 = vadd.f32 %v2919, %v3006
        %v3008 = vpop.f32.mrb[0].mxu0
        %3009 = vdwg.mxu0
        %s3010 = scalar_lea.vmem %s955, 192 [#allocation15]
        %v3011 = vld [vmem:[%s3010] sm:$0xf]
        %v3012 = vld [vmem:[%s3010 + $0x4] sm:$0xf]
        %v3013 = vld [vmem:[%s3010 + $0x8] sm:$0xf]
        %v3014 = vld [vmem:[%s3010 + $0xc] sm:$0xf]
        %v3015 = vld [vmem:[%s3010 + $0x10] sm:$0xf]
        %v3016 = vld [vmem:[%s3010 + $0x14] sm:$0xf]
        %v3017 = vld [vmem:[%s3010 + $0x18] sm:$0xf]
        %v3018 = vld [vmem:[%s3010 + $0x1c] sm:$0xf]
        %v3019 = vld [vmem:[%s3010 + $0x20] sm:$0xf]
        %v3020 = vld [vmem:[%s3010 + $0x24] sm:$0xf]
        %v3021 = vld [vmem:[%s3010 + $0x28] sm:$0xf]
        %v3022 = vld [vmem:[%s3010 + $0x2c] sm:$0xf]
        %v3023 = vld [vmem:[%s3010 + $0x30] sm:$0xf]
        %v3024 = vld [vmem:[%s3010 + $0x34] sm:$0xf]
        %v3025 = vld [vmem:[%s3010 + $0x38] sm:$0xf]
        %v3026 = vld [vmem:[%s3010 + $0x3c] sm:$0xf]
        %s3027 = scalar_lea.vmem %s964, 3 [#allocation17]
        %v3028 = vld [vmem:[%s3027] sm:$0x1]
        %v3030 = vlaneseq
        %v3031 = vshrl.u32 %v3030, 7
        %v3032 = vsub.s32 0, %v3031
        %v3033 = vrot.slane %v3028, %v3032
        %v3051 = vunpack.c.l.b16 %v3011
        %v3052 = vunpack.c.l.b16 %v3012
        %v3053 = vunpack.c.l.b16 %v3013
        %v3054 = vunpack.c.l.b16 %v3014
        %v3055 = vunpack.c.l.b16 %v3015
        %v3056 = vunpack.c.l.b16 %v3016
        %v3057 = vunpack.c.l.b16 %v3017
        %v3058 = vunpack.c.l.b16 %v3018
        %v3059 = vunpack.c.l.b16 %v3019
        %v3060 = vunpack.c.l.b16 %v3020
        %v3061 = vunpack.c.l.b16 %v3021
        %v3062 = vunpack.c.l.b16 %v3022
        %v3063 = vunpack.c.l.b16 %v3023
        %v3064 = vunpack.c.l.b16 %v3024
        %v3065 = vunpack.c.l.b16 %v3025
        %v3066 = vunpack.c.l.b16 %v3026
        %v3067 = vpack.c.b16 %v3052, %v3051
        %v3068 = vpack.c.b16 %v3054, %v3053
        %v3069 = vpack.c.b16 %v3056, %v3055
        %v3070 = vpack.c.b16 %v3058, %v3057
        %v3071 = vpack.c.b16 %v3060, %v3059
        %v3072 = vpack.c.b16 %v3062, %v3061
        %v3073 = vpack.c.b16 %v3064, %v3063
        %v3074 = vpack.c.b16 %v3066, %v3065
        %3083 = vmatprep.subr.bf16.mxu0 0
        %3084 = vmatpush1.bf16.msra.mxu0 %v3067
        %3085 = vmatprep.subr.bf16.mxu0 0
        %3086 = vmatpush1.bf16.msra.mxu0 %v3068
        %3087 = vmatprep.subr.bf16.mxu0 0
        %3088 = vmatpush1.bf16.msra.mxu0 %v3069
        %3089 = vmatprep.subr.bf16.mxu0 0
        %3090 = vmatpush1.bf16.msra.mxu0 %v3070
        %3091 = vmatprep.subr.bf16.mxu0 0
        %3092 = vmatpush1.bf16.msra.mxu0 %v3071
        %3093 = vmatprep.subr.bf16.mxu0 0
        %3094 = vmatpush1.bf16.msra.mxu0 %v3072
        %3095 = vmatprep.subr.bf16.mxu0 0
        %3096 = vmatpush1.bf16.msra.mxu0 %v3073
        %3097 = vmatprep.subr.bf16.mxu0 0
        %3098 = vmatpush1.bf16.msra.mxu0 %v3074
        %3099 = vmatprep.subr.bf16.mxu0 0
        %3100 = vmatpush1.bf16.msra.mxu0 0
        %3101 = vmatprep.subr.bf16.mxu0 0
        %3102 = vmatpush1.bf16.msra.mxu0 0
        %3103 = vmatprep.subr.bf16.mxu0 0
        %3104 = vmatpush1.bf16.msra.mxu0 0
        %3105 = vmatprep.subr.bf16.mxu0 0
        %3106 = vmatpush1.bf16.msra.mxu0 0
        %3107 = vmatprep.subr.bf16.mxu0 0
        %3108 = vmatpush1.bf16.msra.mxu0 0
        %3109 = vmatprep.subr.bf16.mxu0 0
        %3110 = vmatpush1.bf16.msra.mxu0 0
        %3111 = vmatprep.subr.bf16.mxu0 0
        %3112 = vmatpush1.bf16.msra.mxu0 0
        %3113 = vmatprep.subr.bf16.mxu0 0
        %3114 = vmatpush1.bf16.msra.mxu0 0
        %3115 = vmatprep.mubr.bf16.mxu0 0
        %3116 = vmatmul.mubr.bf16.gmra.mrb[0].mxu0 %v1213
        %v3117 = vpop.f32.mrb[0].mxu0
        %v3118 = vadd.f32 %v3033, %v3117
        %v3119 = vpop.f32.mrb[0].mxu0
        %v3120 = vpop.f32.mrb[0].mxu0
        %v3121 = vadd.f32 %v3033, %v3120
        %v3122 = vpop.f32.mrb[0].mxu0
        %3123 = vdwg.mxu0
        %v3124 = vpack.c.bf16 %v2895, %v2894
        %v3125 = vpack.c.bf16 %v3007, %v3004
        %v3127 = vsel %vm1554, %v3124, 0
        %v3130 = vsel %vm1554, %v3125, 0
        %3132 = vmatprep.subr.bf16.mxu0 0
        %3133 = vmatpush1.bf16.xpose.msra.mxu0 %v3130
        %3134 = vmatprep.subr.bf16.mxu0 0
        %3135 = vmatpush1.bf16.xpose.msra.mxu0 0
        %3136 = vmatprep.subr.bf16.mxu0 0
        %3137 = vmatpush1.bf16.xpose.msra.mxu0 0
        %3138 = vmatprep.subr.bf16.mxu0 0
        %3139 = vmatpush1.bf16.xpose.msra.mxu0 0
        %3140 = vmatprep.subr.bf16.mxu0 0
        %3141 = vmatpush1.bf16.xpose.msra.mxu0 0
        %3142 = vmatprep.subr.bf16.mxu0 0
        %3143 = vmatpush1.bf16.xpose.msra.mxu0 0
        %3144 = vmatprep.subr.bf16.mxu0 0
        %3145 = vmatpush1.bf16.xpose.msra.mxu0 0
        %3146 = vmatprep.subr.bf16.mxu0 0
        %3147 = vmatpush1.bf16.xpose.msra.mxu0 0
        %3148 = vmatprep.subr.bf16.mxu0 0
        %3149 = vmatpush1.bf16.xpose.msra.mxu0 0
        %3150 = vmatprep.subr.bf16.mxu0 0
        %3151 = vmatpush1.bf16.xpose.msra.mxu0 0
        %3152 = vmatprep.subr.bf16.mxu0 0
        %3153 = vmatpush1.bf16.xpose.msra.mxu0 0
        %3154 = vmatprep.subr.bf16.mxu0 0
        %3155 = vmatpush1.bf16.xpose.msra.mxu0 0
        %3156 = vmatprep.subr.bf16.mxu0 0
        %3157 = vmatpush1.bf16.xpose.msra.mxu0 0
        %3158 = vmatprep.subr.bf16.mxu0 0
        %3159 = vmatpush1.bf16.xpose.msra.mxu0 0
        %3160 = vmatprep.subr.bf16.mxu0 0
        %3161 = vmatpush1.bf16.xpose.msra.mxu0 0
        %3162 = vmatprep.subr.bf16.mxu0 0
        %3163 = vmatpush1.bf16.xpose.msra.mxu0 0
        %3164 = vmatprep.mubr.bf16.mxu0 0
        %3165 = vmatmul.mubr.bf16.gmra.mrb[0].mxu0 %v3127
        %v3166 = vpop.f32.mrb[0].mxu0
        %v3167 = vadd.f32 0.0, %v3166
        %v3168 = vpop.f32.mrb[0].mxu0
        %v3169 = vpop.f32.mrb[0].mxu0
        %v3170 = vadd.f32 0.0, %v3169
        %v3171 = vpop.f32.mrb[0].mxu0
        %3172 = vdwg.mxu0
        %v3173 = vsel %vm1602, %v3167, -inf
        %3174 = vmax.xlane.f32.xlu0 %v3173
        %v3175 = vpop.xlane.xlu0 %3174
        %v3176 = vsel %vm1602, %v3170, -inf
        %3177 = vmax.xlane.f32.xlu0 %v3176
        %v3178 = vpop.xlane.xlu0 %3177
        %v3179 = vsub.f32 %v3167, %v3175
        %v3180 = vsub.f32 %v3170, %v3178
        %v3181 = vmul.f32 %v3179, 1.442695
        %v3182 = vpow.pop %v3181
        %v3183 = vmul.f32 %v3180, 1.442695
        %v3184 = vpow.pop %v3183
        %v3185 = vsel %vm1602, %v3182, 0.0
        %3186 = vadd.xlane.f32.xlu0 %v3185
        %v3187 = vpop.xlane.xlu0 %3186
        %v3188 = vsel %vm1602, %v3184, 0.0
        %3189 = vadd.xlane.f32.xlu0 %v3188
        %v3190 = vpop.xlane.xlu0 %3189
        %v3191 = vpack.c.bf16 %v3184, %v3182
        %v3192 = vpack.c.bf16 %v3121, %v3118
        %v3194 = vsel %vm1602, %v3191, 0
        %3196 = vmatprep.subr.bf16.mxu0 0
        %3197 = vmatpush1.bf16.msra.mxu0 %v3192
        %3198 = vmatprep.subr.bf16.mxu0 0
        %3199 = vmatpush1.bf16.msra.mxu0 0
        %3200 = vmatprep.subr.bf16.mxu0 0
        %3201 = vmatpush1.bf16.msra.mxu0 0
        %3202 = vmatprep.subr.bf16.mxu0 0
        %3203 = vmatpush1.bf16.msra.mxu0 0
        %3204 = vmatprep.subr.bf16.mxu0 0
        %3205 = vmatpush1.bf16.msra.mxu0 0
        %3206 = vmatprep.subr.bf16.mxu0 0
        %3207 = vmatpush1.bf16.msra.mxu0 0
        %3208 = vmatprep.subr.bf16.mxu0 0
        %3209 = vmatpush1.bf16.msra.mxu0 0
        %3210 = vmatprep.subr.bf16.mxu0 0
        %3211 = vmatpush1.bf16.msra.mxu0 0
        %3212 = vmatprep.subr.bf16.mxu0 0
        %3213 = vmatpush1.bf16.msra.mxu0 0
        %3214 = vmatprep.subr.bf16.mxu0 0
        %3215 = vmatpush1.bf16.msra.mxu0 0
        %3216 = vmatprep.subr.bf16.mxu0 0
        %3217 = vmatpush1.bf16.msra.mxu0 0
        %3218 = vmatprep.subr.bf16.mxu0 0
        %3219 = vmatpush1.bf16.msra.mxu0 0
        %3220 = vmatprep.subr.bf16.mxu0 0
        %3221 = vmatpush1.bf16.msra.mxu0 0
        %3222 = vmatprep.subr.bf16.mxu0 0
        %3223 = vmatpush1.bf16.msra.mxu0 0
        %3224 = vmatprep.subr.bf16.mxu0 0
        %3225 = vmatpush1.bf16.msra.mxu0 0
        %3226 = vmatprep.subr.bf16.mxu0 0
        %3227 = vmatpush1.bf16.msra.mxu0 0
        %3228 = vmatprep.mubr.bf16.mxu0 0
        %3229 = vmatmul.mubr.bf16.gmra.mrb[0].mxu0 %v3194
        %v3230 = vpop.f32.mrb[0].mxu0
        %v3231 = vadd.f32 0.0, %v3230
        %v3232 = vpop.f32.mrb[0].mxu0
        %v3233 = vpop.f32.mrb[0].mxu0
        %v3234 = vadd.f32 0.0, %v3233
        %v3235 = vpop.f32.mrb[0].mxu0
        %3236 = vdwg.mxu0
        %v3237 = vrcp.pop %v3187
        %v3238 = vrcp.pop %v3190
        %v3239 = vmul.f32 %v3231, %v3237
        %v3240 = vmul.f32 %v3234, %v3238
        %v3241 = vpack.c.bf16 %v3240, %v3239
        %s3242 = scalar_lea.vmem %s973, 48 [#allocation18]
        %v3243 = vld [vmem:[%s3242] sm:$0xf]
        %v3244 = vld [vmem:[%s3242 + $0x4] sm:$0xf]
        %v3245 = vld [vmem:[%s3242 + $0x8] sm:$0xf]
        %v3246 = vld [vmem:[%s3242 + $0xc] sm:$0xf]
        %v3251 = vunpack.c.l.b16 %v3243
        %v3252 = vunpack.c.l.b16 %v3244
        %v3253 = vunpack.c.l.b16 %v3245
        %v3254 = vunpack.c.l.b16 %v3246
        %v3255 = vpack.c.b16 %v3252, %v3251
        %v3256 = vpack.c.b16 %v3254, %v3253
        %v3260 = vsel %vm1554, %v3241, 0
        %3262 = vmatprep.subr.bf16.mxu0 0
        %3263 = vmatpush1.bf16.msra.mxu0 %v3255
        %3264 = vmatprep.subr.bf16.mxu0 0
        %3265 = vmatpush1.bf16.msra.mxu0 %v3256
        %3266 = vmatprep.subr.bf16.mxu0 0
        %3267 = vmatpush1.bf16.msra.mxu0 0
        %3268 = vmatprep.subr.bf16.mxu0 0
        %3269 = vmatpush1.bf16.msra.mxu0 0
        %3270 = vmatprep.subr.bf16.mxu0 0
        %3271 = vmatpush1.bf16.msra.mxu0 0
        %3272 = vmatprep.subr.bf16.mxu0 0
        %3273 = vmatpush1.bf16.msra.mxu0 0
        %3274 = vmatprep.subr.bf16.mxu0 0
        %3275 = vmatpush1.bf16.msra.mxu0 0
        %3276 = vmatprep.subr.bf16.mxu0 0
        %3277 = vmatpush1.bf16.msra.mxu0 0
        %3278 = vmatprep.subr.bf16.mxu0 0
        %3279 = vmatpush1.bf16.msra.mxu0 0
        %3280 = vmatprep.subr.bf16.mxu0 0
        %3281 = vmatpush1.bf16.msra.mxu0 0
        %3282 = vmatprep.subr.bf16.mxu0 0
        %3283 = vmatpush1.bf16.msra.mxu0 0
        %3284 = vmatprep.subr.bf16.mxu0 0
        %3285 = vmatpush1.bf16.msra.mxu0 0
        %3286 = vmatprep.subr.bf16.mxu0 0
        %3287 = vmatpush1.bf16.msra.mxu0 0
        %3288 = vmatprep.subr.bf16.mxu0 0
        %3289 = vmatpush1.bf16.msra.mxu0 0
        %3290 = vmatprep.subr.bf16.mxu0 0
        %3291 = vmatpush1.bf16.msra.mxu0 0
        %3292 = vmatprep.subr.bf16.mxu0 0
        %3293 = vmatpush1.bf16.msra.mxu0 0
        %3294 = vmatprep.mubr.bf16.mxu0 0
        %3295 = vmatmul.mubr.bf16.gmra.mrb[0].mxu0 %v3260
        %v3296 = vpop.f32.mrb[0].mxu0
        %v3297 = vadd.f32 0.0, %v3296
        %v3298 = vpop.f32.mrb[0].mxu0
        %v3299 = vpop.f32.mrb[0].mxu0
        %v3300 = vadd.f32 0.0, %v3299
        %v3301 = vpop.f32.mrb[0].mxu0
        %3302 = vdwg.mxu0
        %v3303 = vadd.f32 %v2778, %v3297
        %v3304 = vadd.f32 %v2779, %v3300
        %v3305 = vadd.f32 %v1168, %v3303
        %v3306 = vadd.f32 %v1169, %v3304
        %v3307 = vld [vmem:[%s981] sm:$0x1]
        %v3309 = vlaneseq
        %v3310 = vshrl.u32 %v3309, 7
        %v3311 = vsub.s32 0, %v3310
        %v3312 = vrot.slane %v3307, %v3311
        %v3314 = vadd.f32 %v3305, %v3312
        %v3315 = vadd.f32 %v3306, %v3312
        %v3316 = vld [vmem:[%s989] sm:$0x1]
        %v3317 = vld [vmem:[%s997] sm:$0x1]
        %3318 = vadd.xlane.f32.xlu0 %v3314
        %v3319 = vpop.xlane.xlu0 %3318
        %3320 = vadd.xlane.f32.xlu0 %v3315
        %v3321 = vpop.xlane.xlu0 %3320
        %v3322 = vmul.f32 %v3319, %v1178
        %v3323 = vmul.f32 %v3321, %v1178
        %v3324 = vsub.f32 %v3314, %v3322
        %v3325 = vsub.f32 %v3315, %v3323
        %v3326 = vmul.f32 %v3324, %v3324
        %v3327 = vmul.f32 %v3325, %v3325
        %3328 = vadd.xlane.f32.xlu0 %v3326
        %v3329 = vpop.xlane.xlu0 %3328
        %3330 = vadd.xlane.f32.xlu0 %v3327
        %v3331 = vpop.xlane.xlu0 %3330
        %v3332 = vmul.f32 %v3329, %v1178
        %v3333 = vmul.f32 %v3331, %v1178
        %v3334 = vadd.f32 %v3332, 1e-05
        %v3335 = vadd.f32 %v3333, 1e-05
        %v3336 = vrsqrt.pop %v3334
        %v3337 = vrsqrt.pop %v3335
        %v3338 = vmul.f32 %v3324, %v3336
        %v3339 = vmul.f32 %v3325, %v3337
        %v3341 = vlaneseq
        %v3342 = vshrl.u32 %v3341, 7
        %v3343 = vsub.s32 0, %v3342
        %v3344 = vrot.slane %v3316, %v3343
        %v3346 = vmul.f32 %v3338, %v3344
        %v3347 = vmul.f32 %v3339, %v3344
        %v3349 = vlaneseq
        %v3350 = vshrl.u32 %v3349, 7
        %v3351 = vsub.s32 0, %v3350
        %v3352 = vrot.slane %v3317, %v3351
        %v3354 = vadd.f32 %v3346, %v3352
        %v3355 = vadd.f32 %v3347, %v3352
        %v3356 = vpack.c.bf16 %v3355, %v3354
        %v3357 = vld [vmem:[%s1006] sm:$0xff]
        %v3358 = vld [vmem:[%s1006 + $0x8] sm:$0xff]
        %v3359 = vld [vmem:[%s1006 + $0x10] sm:$0xff]
        %v3360 = vld [vmem:[%s1006 + $0x18] sm:$0xff]
        %v3361 = vld [vmem:[%s1006 + $0x20] sm:$0xff]
        %v3362 = vld [vmem:[%s1006 + $0x28] sm:$0xff]
        %v3363 = vld [vmem:[%s1006 + $0x30] sm:$0xff]
        %v3364 = vld [vmem:[%s1006 + $0x38] sm:$0xff]
        %v3365 = vld [vmem:[%s1006 + $0x40] sm:$0xff]
        %v3366 = vld [vmem:[%s1006 + $0x48] sm:$0xff]
        %v3367 = vld [vmem:[%s1006 + $0x50] sm:$0xff]
        %v3368 = vld [vmem:[%s1006 + $0x58] sm:$0xff]
        %v3369 = vld [vmem:[%s1006 + $0x60] sm:$0xff]
        %v3370 = vld [vmem:[%s1006 + $0x68] sm:$0xff]
        %v3371 = vld [vmem:[%s1006 + $0x70] sm:$0xff]
        %v3372 = vld [vmem:[%s1006 + $0x78] sm:$0xff]
        %v3373 = vld [vmem:[%s1015] sm:$0x3]
        %v3375 = vlaneseq
        %v3376 = vshrl.u32 %v3375, 7
        %v3377 = vsub.s32 0, %v3376
        %v3378 = vrot.slane %v3373, %v3377
        %v3379 = vlaneseq
        %v3380 = vshrl.u32 %v3379, 7
        %v3381 = vsub.s32 1, %v3380
        %v3382 = vrot.slane %v3373, %v3381
        %v3401 = vunpack.c.l.b16 %v3357
        %v3402 = vunpack.c.h.b16 %v3357
        %v3403 = vunpack.c.l.b16 %v3358
        %v3404 = vunpack.c.h.b16 %v3358
        %v3405 = vunpack.c.l.b16 %v3359
        %v3406 = vunpack.c.h.b16 %v3359
        %v3407 = vunpack.c.l.b16 %v3360
        %v3408 = vunpack.c.h.b16 %v3360
        %v3409 = vunpack.c.l.b16 %v3361
        %v3410 = vunpack.c.h.b16 %v3361
        %v3411 = vunpack.c.l.b16 %v3362
        %v3412 = vunpack.c.h.b16 %v3362
        %v3413 = vunpack.c.l.b16 %v3363
        %v3414 = vunpack.c.h.b16 %v3363
        %v3415 = vunpack.c.l.b16 %v3364
        %v3416 = vunpack.c.h.b16 %v3364
        %v3417 = vunpack.c.l.b16 %v3365
        %v3418 = vunpack.c.h.b16 %v3365
        %v3419 = vunpack.c.l.b16 %v3366
        %v3420 = vunpack.c.h.b16 %v3366
        %v3421 = vunpack.c.l.b16 %v3367
        %v3422 = vunpack.c.h.b16 %v3367
        %v3423 = vunpack.c.l.b16 %v3368
        %v3424 = vunpack.c.h.b16 %v3368
        %v3425 = vunpack.c.l.b16 %v3369
        %v3426 = vunpack.c.h.b16 %v3369
        %v3427 = vunpack.c.l.b16 %v3370
        %v3428 = vunpack.c.h.b16 %v3370
        %v3429 = vunpack.c.l.b16 %v3371
        %v3430 = vunpack.c.h.b16 %v3371
        %v3431 = vunpack.c.l.b16 %v3372
        %v3432 = vunpack.c.h.b16 %v3372
        %v3433 = vpack.c.b16 %v3403, %v3401
        %v3434 = vpack.c.b16 %v3404, %v3402
        %v3435 = vpack.c.b16 %v3407, %v3405
        %v3436 = vpack.c.b16 %v3408, %v3406
        %v3437 = vpack.c.b16 %v3411, %v3409
        %v3438 = vpack.c.b16 %v3412, %v3410
        %v3439 = vpack.c.b16 %v3415, %v3413
        %v3440 = vpack.c.b16 %v3416, %v3414
        %v3441 = vpack.c.b16 %v3419, %v3417
        %v3442 = vpack.c.b16 %v3420, %v3418
        %v3443 = vpack.c.b16 %v3423, %v3421
        %v3444 = vpack.c.b16 %v3424, %v3422
        %v3445 = vpack.c.b16 %v3427, %v3425
        %v3446 = vpack.c.b16 %v3428, %v3426
        %v3447 = vpack.c.b16 %v3431, %v3429
        %v3448 = vpack.c.b16 %v3432, %v3430
        %3465 = vmatprep.subr.bf16.mxu0 %v3434
        %3466 = vmatpush1.bf16.msra.mxu0 %v3433
        %3467 = vmatprep.subr.bf16.mxu0 %v3436
        %3468 = vmatpush1.bf16.msra.mxu0 %v3435
        %3469 = vmatprep.subr.bf16.mxu0 %v3438
        %3470 = vmatpush1.bf16.msra.mxu0 %v3437
        %3471 = vmatprep.subr.bf16.mxu0 %v3440
        %3472 = vmatpush1.bf16.msra.mxu0 %v3439
        %3473 = vmatprep.subr.bf16.mxu0 %v3442
        %3474 = vmatpush1.bf16.msra.mxu0 %v3441
        %3475 = vmatprep.subr.bf16.mxu0 %v3444
        %3476 = vmatpush1.bf16.msra.mxu0 %v3443
        %3477 = vmatprep.subr.bf16.mxu0 %v3446
        %3478 = vmatpush1.bf16.msra.mxu0 %v3445
        %3479 = vmatprep.subr.bf16.mxu0 %v3448
        %3480 = vmatpush1.bf16.msra.mxu0 %v3447
        %3481 = vmatprep.subr.bf16.mxu0 0
        %3482 = vmatpush1.bf16.msra.mxu0 0
        %3483 = vmatprep.subr.bf16.mxu0 0
        %3484 = vmatpush1.bf16.msra.mxu0 0
        %3485 = vmatprep.subr.bf16.mxu0 0
        %3486 = vmatpush1.bf16.msra.mxu0 0
        %3487 = vmatprep.subr.bf16.mxu0 0
        %3488 = vmatpush1.bf16.msra.mxu0 0
        %3489 = vmatprep.subr.bf16.mxu0 0
        %3490 = vmatpush1.bf16.msra.mxu0 0
        %3491 = vmatprep.subr.bf16.mxu0 0
        %3492 = vmatpush1.bf16.msra.mxu0 0
        %3493 = vmatprep.subr.bf16.mxu0 0
        %3494 = vmatpush1.bf16.msra.mxu0 0
        %3495 = vmatprep.subr.bf16.mxu0 0
        %3496 = vmatpush1.bf16.msra.mxu0 0
        %3497 = vmatprep.mubr.bf16.mxu0 0
        %3498 = vmatmul.mubr.bf16.gmra.mrb[0].mxu0 %v3356
        %v3499 = vpop.f32.mrb[0].mxu0
        %v3500 = vadd.f32 %v3378, %v3499
        %v3501 = vpop.f32.mrb[0].mxu0
        %v3502 = vadd.f32 %v3382, %v3501
        %v3503 = vpop.f32.mrb[0].mxu0
        %v3504 = vadd.f32 %v3378, %v3503
        %v3505 = vpop.f32.mrb[0].mxu0
        %v3506 = vadd.f32 %v3382, %v3505
        %3507 = vdwg.mxu0
        %v3508 = vmax.f32 %v3500, 0.0
        %v3509 = vmax.f32 %v3502, 0.0
        %v3510 = vmax.f32 %v3504, 0.0
        %v3511 = vmax.f32 %v3506, 0.0
        %v3512 = vpack.c.bf16 %v3510, %v3508
        %v3513 = vpack.c.bf16 %v3511, %v3509
        %v3514 = vld [vmem:[%s1024] sm:$0xf]
        %v3515 = vld [vmem:[%s1024 + $0x4] sm:$0xf]
        %v3516 = vld [vmem:[%s1024 + $0x8] sm:$0xf]
        %v3517 = vld [vmem:[%s1024 + $0xc] sm:$0xf]
        %v3518 = vld [vmem:[%s1024 + $0x10] sm:$0xf]
        %v3519 = vld [vmem:[%s1024 + $0x14] sm:$0xf]
        %v3520 = vld [vmem:[%s1024 + $0x18] sm:$0xf]
        %v3521 = vld [vmem:[%s1024 + $0x1c] sm:$0xf]
        %v3522 = vld [vmem:[%s1024 + $0x20] sm:$0xf]
        %v3523 = vld [vmem:[%s1024 + $0x24] sm:$0xf]
        %v3524 = vld [vmem:[%s1024 + $0x28] sm:$0xf]
        %v3525 = vld [vmem:[%s1024 + $0x2c] sm:$0xf]
        %v3526 = vld [vmem:[%s1024 + $0x30] sm:$0xf]
        %v3527 = vld [vmem:[%s1024 + $0x34] sm:$0xf]
        %v3528 = vld [vmem:[%s1024 + $0x38] sm:$0xf]
        %v3529 = vld [vmem:[%s1024 + $0x3c] sm:$0xf]
        %v3530 = vld [vmem:[%s1024 + $0x40] sm:$0xf]
        %v3531 = vld [vmem:[%s1024 + $0x44] sm:$0xf]
        %v3532 = vld [vmem:[%s1024 + $0x48] sm:$0xf]
        %v3533 = vld [vmem:[%s1024 + $0x4c] sm:$0xf]
        %v3534 = vld [vmem:[%s1024 + $0x50] sm:$0xf]
        %v3535 = vld [vmem:[%s1024 + $0x54] sm:$0xf]
        %v3536 = vld [vmem:[%s1024 + $0x58] sm:$0xf]
        %v3537 = vld [vmem:[%s1024 + $0x5c] sm:$0xf]
        %v3538 = vld [vmem:[%s1024 + $0x60] sm:$0xf]
        %v3539 = vld [vmem:[%s1024 + $0x64] sm:$0xf]
        %v3540 = vld [vmem:[%s1024 + $0x68] sm:$0xf]
        %v3541 = vld [vmem:[%s1024 + $0x6c] sm:$0xf]
        %v3542 = vld [vmem:[%s1024 + $0x70] sm:$0xf]
        %v3543 = vld [vmem:[%s1024 + $0x74] sm:$0xf]
        %v3544 = vld [vmem:[%s1024 + $0x78] sm:$0xf]
        %v3545 = vld [vmem:[%s1024 + $0x7c] sm:$0xf]
        %v3578 = vunpack.c.l.b16 %v3514
        %v3579 = vunpack.c.l.b16 %v3515
        %v3580 = vunpack.c.l.b16 %v3516
        %v3581 = vunpack.c.l.b16 %v3517
        %v3582 = vunpack.c.l.b16 %v3518
        %v3583 = vunpack.c.l.b16 %v3519
        %v3584 = vunpack.c.l.b16 %v3520
        %v3585 = vunpack.c.l.b16 %v3521
        %v3586 = vunpack.c.l.b16 %v3522
        %v3587 = vunpack.c.l.b16 %v3523
        %v3588 = vunpack.c.l.b16 %v3524
        %v3589 = vunpack.c.l.b16 %v3525
        %v3590 = vunpack.c.l.b16 %v3526
        %v3591 = vunpack.c.l.b16 %v3527
        %v3592 = vunpack.c.l.b16 %v3528
        %v3593 = vunpack.c.l.b16 %v3529
        %v3594 = vunpack.c.l.b16 %v3530
        %v3595 = vunpack.c.l.b16 %v3531
        %v3596 = vunpack.c.l.b16 %v3532
        %v3597 = vunpack.c.l.b16 %v3533
        %v3598 = vunpack.c.l.b16 %v3534
        %v3599 = vunpack.c.l.b16 %v3535
        %v3600 = vunpack.c.l.b16 %v3536
        %v3601 = vunpack.c.l.b16 %v3537
        %v3602 = vunpack.c.l.b16 %v3538
        %v3603 = vunpack.c.l.b16 %v3539
        %v3604 = vunpack.c.l.b16 %v3540
        %v3605 = vunpack.c.l.b16 %v3541
        %v3606 = vunpack.c.l.b16 %v3542
        %v3607 = vunpack.c.l.b16 %v3543
        %v3608 = vunpack.c.l.b16 %v3544
        %v3609 = vunpack.c.l.b16 %v3545
        %v3610 = vpack.c.b16 %v3579, %v3578
        %v3611 = vpack.c.b16 %v3581, %v3580
        %v3612 = vpack.c.b16 %v3583, %v3582
        %v3613 = vpack.c.b16 %v3585, %v3584
        %v3614 = vpack.c.b16 %v3587, %v3586
        %v3615 = vpack.c.b16 %v3589, %v3588
        %v3616 = vpack.c.b16 %v3591, %v3590
        %v3617 = vpack.c.b16 %v3593, %v3592
        %v3618 = vpack.c.b16 %v3595, %v3594
        %v3619 = vpack.c.b16 %v3597, %v3596
        %v3620 = vpack.c.b16 %v3599, %v3598
        %v3621 = vpack.c.b16 %v3601, %v3600
        %v3622 = vpack.c.b16 %v3603, %v3602
        %v3623 = vpack.c.b16 %v3605, %v3604
        %v3624 = vpack.c.b16 %v3607, %v3606
        %v3625 = vpack.c.b16 %v3609, %v3608
        %3642 = vmatprep.subr.bf16.mxu0 0
        %3643 = vmatpush1.bf16.msra.mxu0 %v3610
        %3644 = vmatprep.subr.bf16.mxu0 0
        %3645 = vmatpush1.bf16.msra.mxu0 %v3611
        %3646 = vmatprep.subr.bf16.mxu0 0
        %3647 = vmatpush1.bf16.msra.mxu0 %v3612
        %3648 = vmatprep.subr.bf16.mxu0 0
        %3649 = vmatpush1.bf16.msra.mxu0 %v3613
        %3650 = vmatprep.subr.bf16.mxu0 0
        %3651 = vmatpush1.bf16.msra.mxu0 %v3614
        %3652 = vmatprep.subr.bf16.mxu0 0
        %3653 = vmatpush1.bf16.msra.mxu0 %v3615
        %3654 = vmatprep.subr.bf16.mxu0 0
        %3655 = vmatpush1.bf16.msra.mxu0 %v3616
        %3656 = vmatprep.subr.bf16.mxu0 0
        %3657 = vmatpush1.bf16.msra.mxu0 %v3617
        %3658 = vmatprep.subr.bf16.mxu0 0
        %3659 = vmatpush1.bf16.msra.mxu0 %v3618
        %3660 = vmatprep.subr.bf16.mxu0 0
        %3661 = vmatpush1.bf16.msra.mxu0 %v3619
        %3662 = vmatprep.subr.bf16.mxu0 0
        %3663 = vmatpush1.bf16.msra.mxu0 %v3620
        %3664 = vmatprep.subr.bf16.mxu0 0
        %3665 = vmatpush1.bf16.msra.mxu0 %v3621
        %3666 = vmatprep.subr.bf16.mxu0 0
        %3667 = vmatpush1.bf16.msra.mxu0 %v3622
        %3668 = vmatprep.subr.bf16.mxu0 0
        %3669 = vmatpush1.bf16.msra.mxu0 %v3623
        %3670 = vmatprep.subr.bf16.mxu0 0
        %3671 = vmatpush1.bf16.msra.mxu0 %v3624
        %3672 = vmatprep.subr.bf16.mxu0 0
        %3673 = vmatpush1.bf16.msra.mxu0 %v3625
        %3674 = vmatprep.mubr.bf16.mxu0 %v3513
        %3675 = vmatmul.mubr.bf16.gmra.mrb[0].mxu0 %v3512
        %v3676 = vpop.f32.mrb[0].mxu0
        %v3677 = vadd.f32 0.0, %v3676
        %v3678 = vpop.f32.mrb[0].mxu0
        %v3679 = vpop.f32.mrb[0].mxu0
        %v3680 = vadd.f32 0.0, %v3679
        %v3681 = vpop.f32.mrb[0].mxu0
        %3682 = vdwg.mxu0
        %v3683 = vadd.f32 %v1170, %v3677
        %v3684 = vadd.f32 %v1171, %v3680
        %v3685 = vld [vmem:[%s1032] sm:$0x1]
        %v3687 = vlaneseq
        %v3688 = vshrl.u32 %v3687, 7
        %v3689 = vsub.s32 0, %v3688
        %v3690 = vrot.slane %v3685, %v3689
        %v3692 = vadd.f32 %v3683, %v3690
        %v3693 = vadd.f32 %v3684, %v3690
        %3694 = vst [vmem:[#allocation2] sm:$0xff] %v3314
        %3695 = vst [vmem:[#allocation2 + $0x8] sm:$0xff] %v3315
        %3696 = vst [vmem:[%s1156] sm:$0xff] %v3692
        %3697 = vst [vmem:[%s1156 + $0x8] sm:$0xff] %v3693
        %s3698 = sand.u32 %s520, 1
        %s3699 = scalar_lea.sflag [#allocation5], %s3698
        %s3700 = sand.u32 %s520, 1
        %s3701 = smul.addr %s3700, 16
        %s3702 = scalar_lea.vmem [#allocation30], %s3701
        // Predicated region
        $region161: #{reformer_res_forward.2} parent=87 // pred_check
          %p3703 = pneg %p530
        $region162: #{reformer_res_forward.2} parent=87 // pred_check_branch
          %3705 = sbr.rel (%p3703) target = $region164
        $region163: #{reformer_res_forward.2} parent=87 // pred_region
          %s3707 = ssub.s32 256, 256
          %3708 = vsyncadd %s3699, %s3707
          %s3709 = smul.addr %s62, 2
          %s3710 = smul.addr %s3709, 128
          %s3711 = scalar_lea.hbm %s17, %s3710
          %s3712 = sshll.u32 %s3702, 4
          %s3713 = int_to_ptr.vmem [resolvable:$true] %s3712
          %3718 = dma.vmem_to_hbm [thread:$0]  %s3713, 256, %s3711, %s3699, 128, 128, 8
        $region164: #{reformer_res_forward.2} parent=87 // pred_fallthru
          _
      $region88: #{reformer_res_forward.2} parent=5 // pred_fallthru
        _
      %p3719 = scmp.le.s32.totalorder 2, %s53
      // Predicated region
      $region165: #{reformer_res_forward.2} parent=5 // pred_check
        %p3720 = pneg %p3719
      $region166: #{reformer_res_forward.2} parent=5 // pred_check_branch
        %3722 = sbr.rel (%p3720) target = $region168
      $region167: #{reformer_res_forward.2} parent=5 // pred_region
        %s3723 = ssub.s32 %s53, 2
        // Predicated region
        $region169: #{reformer_res_forward.2} parent=167 // pred_check
          %p3724 = pneg %p536
        $region170: #{reformer_res_forward.2} parent=167 // pred_check_branch
          %3726 = sbr.rel (%p3724) target = $region172
        $region171: #{reformer_res_forward.2} parent=167 // pred_region
          %s3727 = sand.u32 %s521, 1
          %s3728 = scalar_lea.sflag [#allocation5], %s3727
          %s3729 = sand.u32 %s521, 1
          %s3730 = smul.addr %s3729, 16
          %s3731 = scalar_lea.vmem [#allocation30], %s3730
          %3732 = dma.done %s3728, 256
        $region172: #{reformer_res_forward.2} parent=167 // pred_fallthru
          _
      $region168: #{reformer_res_forward.2} parent=5 // pred_fallthru
        _
    $region6: #{reformer_res_forward.2} parent=1 // loop_footer
      %s57 = sadd.s32 1, %s53
    $region7: #{reformer_res_forward.2} parent=1 // loop_footer_branch
      %52 = sbr.rel target = $region3
    $region8: #{reformer_res_forward.2} parent=1 // loop_exit
      _
    %3733 = vsyncpa [#allocation4], 1
    %s3734 = scalar_lea.sflag [#allocation4], 1
    %3735 = vsyncpa %s3734, 1
    %3736 = vsyncpa [#allocation7], 1
    %s3737 = scalar_lea.sflag [#allocation7], 1
    %3738 = vsyncpa %s3737, 1
    %3739 = vsyncpa [#allocation10], 1
    %s3740 = scalar_lea.sflag [#allocation10], 1
    %3741 = vsyncpa %s3740, 1
    %3742 = vsyncpa [#allocation13], 1
    %s3743 = scalar_lea.sflag [#allocation13], 1
    %3744 = vsyncpa %s3743, 1
    %3745 = vsyncpa [#allocation16], 1
    %s3746 = scalar_lea.sflag [#allocation16], 1
    %3747 = vsyncpa %s3746, 1
    %3748 = vsyncpa [#allocation19], 1
    %s3749 = scalar_lea.sflag [#allocation19], 1
    %3750 = vsyncpa %s3749, 1
    %3751 = vsyncpa [#allocation22], 1
    %s3752 = scalar_lea.sflag [#allocation22], 1
    %3753 = vsyncpa %s3752, 1
    %3754 = vsyncpa [#allocation25], 1
    %s3755 = scalar_lea.sflag [#allocation25], 1
    %3756 = vsyncpa %s3755, 1
    %3757 = vsyncpa [#allocation28], 1
    %s3758 = scalar_lea.sflag [#allocation28], 1
    %3759 = vsyncpa %s3758, 1
    %3760 = vsyncpa [#allocation5], 1
    %s3761 = scalar_lea.sflag [#allocation5], 1
    %3762 = vsyncpa %s3761, 1

</llo_original>
